<compile_context>
chip_gen: v6e
topology: v6e:2x2x1
jax: 0.10.0
libtpu: 0.0.40
codegen_flags: <defaults>
</compile_context>

<pallas_src>
import functools
import math

import jax
import jax.numpy as jnp
from jax.experimental import pallas as pl
from jax.experimental.pallas import tpu as pltpu


# ----------------------------- in-kernel helpers -----------------------------

def _erf_approx(x):
    # Abramowitz & Stegun 7.1.26 rational approximation, |err| <= 1.5e-7 (f32 noise),
    # matching torch.nn.GELU()'s exact erf. The 1/(1+p*z) goes to the (otherwise idle)
    # EUP reciprocal instead of a VPU divide.
    a1, a2, a3, a4, a5 = 0.254829592, -0.284496736, 1.421413741, -1.453152027, 1.061405429
    p = 0.3275911
    z = jnp.abs(x)
    t = pl.reciprocal(1.0 + p * z, approx=True)
    poly = ((((a5 * t + a4) * t + a3) * t + a2) * t + a1) * t
    y = 1.0 - poly * jnp.exp(-z * z)
    return jnp.where(x >= 0.0, y, -y)


def _gelu_exact(x):
    return 0.5 * x * (1.0 + _erf_approx(x * (1.0 / math.sqrt(2.0))))


# --------------------------------- kernel ------------------------------------

def _psb_kernel(x_ref, nw_ref, nb_ref, wi_ref, bi_ref, wo_ref, bo_ref,
                o_ref, branch_ref, *, num_heads, head_dim, mlp_hidden, eps):
    # x_ref: (bt, N, C)   weights: constant-index (VMEM-resident)   o_ref: (bt, N, C)
    # branch_ref: VMEM scratch (bt*N, C + mlp_hidden) f32  — fused out-proj LHS.
    bt, n, c = x_ref.shape
    rows = bt * n

    x = x_ref[...].reshape(rows, c).astype(jnp.float32)

    # ---- in_norm: LayerNorm over channels (biased variance, like torch), f32 ----
    mu = jnp.mean(x, axis=-1, keepdims=True)
    xc = x - mu
    var = jnp.mean(xc * xc, axis=-1, keepdims=True)
    y = xc * jax.lax.rsqrt(var + eps)
    y = y * nw_ref[...] + nb_ref[...]

    # ---- fused in_proj [mlp fc1 | q*scale | k | v]: one bf16 MXU matmul, f32 acc ----
    yp = jnp.dot(y.astype(jnp.bfloat16), wi_ref[...],
                 preferred_element_type=jnp.float32)
    yp = yp + bi_ref[...]                                   # (rows, mlp_hidden + 3C)

    # ---- MLP branch: exact-erf GELU (f32), written straight into the scratch ----
    branch_ref[:, c:c + mlp_hidden] = _gelu_exact(yp[:, :mlp_hidden])

    # ---- attention: per (batch, head), deferred softmax normalization ----
    q_off = mlp_hidden
    k_off = mlp_hidden + c
    v_off = mlp_hidden + 2 * c
    for b in range(bt):                                     # batches inside the group
        r0 = b * n
        for h in range(num_heads):
            lo = h * head_dim
            qh = yp[r0:r0 + n, q_off + lo:q_off + lo + head_dim].astype(jnp.bfloat16)
            kh = yp[r0:r0 + n, k_off + lo:k_off + lo + head_dim].astype(jnp.bfloat16)
            vh = yp[r0:r0 + n, v_off + lo:v_off + lo + head_dim].astype(jnp.bfloat16)
            # scores (n, n); q columns are already pre-scaled by head_dim**-0.5
            s = jax.lax.dot_general(qh, kh, (((1,), (1,)), ((), ())),
                                    preferred_element_type=jnp.float32)
            s = s - jnp.max(s, axis=-1, keepdims=True)
            p = jnp.exp(s)                                  # unnormalized probs
            l = jnp.sum(p, axis=-1, keepdims=True)
            o_h = jnp.dot(p.astype(jnp.bfloat16), vh,
                          preferred_element_type=jnp.float32)          # (n, head_dim)
            branch_ref[r0:r0 + n, lo:lo + head_dim] = o_h * pl.reciprocal(l, approx=True)

    # ---- fused output projection: [x_attn | gelu(x_mlp)] @ [Wa^T ; Wm^T] + (ba+bm) ----
    out = jnp.dot(branch_ref[...].astype(jnp.bfloat16), wo_ref[...],
                  preferred_element_type=jnp.float32)
    out = out + bo_ref[...]

    # ---- residual (LayerScale / DropPath / Dropout are identity in this config) ----
    o_ref[...] = (x + out).reshape(bt, n, c).astype(o_ref.dtype)


# ------------------------------ host-side glue --------------------------------

def _vmem_limit_bytes():
    # Size the VMEM budget per TPU generation (leave headroom for Mosaic internal
    # scratch + pipeline buffers): ~40 MiB on v7x (64 MiB/TC), ~80 MiB on v5e/v6e.
    try:
        cap = pltpu.get_tpu_info().vmem_capacity_bytes
    except Exception:  # off-TPU / older jax -> conservative default
        cap = 64 * 1024 * 1024
    return int(max(32 * 1024 * 1024, min(cap * 5 // 8, 100 * 1024 * 1024)))


def _pick_batch_tile(batch, seq, target_rows=256):
    # Group batches so the projection matmuls see >= ~256 rows (v6e/v7x MXU depth)
    # whenever N alone is too small; must evenly divide the batch.
    bt = max(1, min(batch, target_rows // max(seq, 1)))
    while batch % bt:
        bt -= 1
    return bt


def prepare_psb_params(in_norm_w, in_norm_b, in_proj_w, mlp_bias,
                       attn_out_w, attn_out_b, mlp_out_w, mlp_out_b, *, num_heads):
    """One-time parameter prep: transposes, stacking, bias concat, scale folding and
    bf16 casts are done HERE, not on every forward call."""
    f32 = jnp.float32
    C = in_norm_w.shape[0]
    d_out = in_proj_w.shape[0]
    mlp_hidden = d_out - 3 * C
    head_dim = C // num_heads
    scale = head_dim ** -0.5

    wi = in_proj_w.T.astype(f32)                                   # (C, d_out)
    # Literal timm semantics: full bias = cat(qkv_zero_bias(3C), mlp_bias) applied to
    # output columns ordered [mlp | q | k | v].
    bi = jnp.concatenate([jnp.zeros((3 * C,), f32), mlp_bias.astype(f32)])
    # Fold the attention scale into the q columns of BOTH weight and bias (torch
    # applies the scale after the bias add, so the bias must be scaled too).
    col_scale = jnp.ones((d_out,), f32).at[mlp_hidden:mlp_hidden + C].set(scale)
    wi = wi * col_scale
    bi = bi * col_scale
    # Stacked output projection [Wa^T ; Wm^T] with a single summed bias.
    wo = jnp.concatenate([attn_out_w.T, mlp_out_w.T], axis=0).astype(f32)
    bo = (attn_out_b + mlp_out_b).astype(f32)

    return {
        "norm_w": in_norm_w.reshape(1, C).astype(f32),
        "norm_b": in_norm_b.reshape(1, C).astype(f32),
        "in_w": wi.astype(jnp.bfloat16),       # bf16 MXU operand (halves weight VMEM)
        "in_b": bi.reshape(1, d_out),          # f32, added after f32 accumulation
        "out_w": wo.astype(jnp.bfloat16),      # bf16 MXU operand
        "out_b": bo.reshape(1, C),
    }


@functools.partial(jax.jit, static_argnames=("num_heads", "eps", "batch_tile"))
def parallel_scaling_block_forward(x, params, *, num_heads, eps=1e-5, batch_tile=None):
    """Fused Pallas forward of ParallelScalingBlock.  x: (B, N, C) f32."""
    B, N, C = x.shape
    assert C % num_heads == 0, "dim should be divisible by num_heads"
    head_dim = C // num_heads
    d_out = params["in_w"].shape[1]
    mlp_hidden = d_out - 3 * C
    assert mlp_hidden > 0

    bt = batch_tile if batch_tile is not None else _pick_batch_tile(B, N)
    assert B % bt == 0
    rows = bt * N

    kernel = functools.partial(_psb_kernel, num_heads=num_heads, head_dim=head_dim,
                               mlp_hidden=mlp_hidden, eps=eps)

    grid_spec = pltpu.PrefetchScalarGridSpec(
        num_scalar_prefetch=0,
        grid=(B // bt,),
        in_specs=[
            pl.BlockSpec((bt, N, C), lambda g: (g, 0, 0)),          # x batch-group
            pl.BlockSpec((1, C), lambda g: (0, 0)),                 # LN weight (resident)
            pl.BlockSpec((1, C), lambda g: (0, 0)),                 # LN bias   (resident)
            pl.BlockSpec((C, d_out), lambda g: (0, 0)),             # fused in_proj W (bf16)
            pl.BlockSpec((1, d_out), lambda g: (0, 0)),             # fused in_proj bias
            pl.BlockSpec((C + mlp_hidden, C), lambda g: (0, 0)),    # stacked out W (bf16)
            pl.BlockSpec((1, C), lambda g: (0, 0)),                 # summed out bias
        ],
        out_specs=pl.BlockSpec((bt, N, C), lambda g: (g, 0, 0)),
        scratch_shapes=[pltpu.VMEM((rows, C + mlp_hidden), jnp.float32)],
    )

    return pl.pallas_call(
        kernel,
        out_shape=jax.ShapeDtypeStruct((B, N, C), x.dtype),
        grid_spec=grid_spec,
        compiler_params=pltpu.CompilerParams(
            dimension_semantics=("parallel",),          # batch groups are independent
            vmem_limit_bytes=_vmem_limit_bytes(),
        ),
    )(x, params["norm_w"], params["norm_b"], params["in_w"], params["in_b"],
      params["out_w"], params["out_b"])


# ------------------------------- reference -----------------------------------

def _reference_forward(x, in_norm_w, in_norm_b, in_proj_w, mlp_bias,
                       attn_out_w, attn_out_b, mlp_out_w, mlp_out_b,
                       *, num_heads, eps=1e-5):
    """Pure-JAX reference, line-by-line faithful to the PyTorch module.  Matmul
    operands are cast to bf16 (f32 accumulation) to mirror the kernel's MXU dtype
    policy so the comparison tolerance can stay tight."""
    f32, bf16 = jnp.float32, jnp.bfloat16
    B, N, C = x.shape
    d_out = in_proj_w.shape[0]
    mlp_hidden = d_out - 3 * C
    head_dim = C // num_heads

    mu = jnp.mean(x, axis=-1, keepdims=True)
    var = jnp.mean((x - mu) ** 2, axis=-1, keepdims=True)
    y = (x - mu) * jax.lax.rsqrt(var + eps) * in_norm_w + in_norm_b

    bias_full = jnp.concatenate([jnp.zeros((3 * C,), f32), mlp_bias])
    y = jnp.einsum("bnc,dc->bnd", y.astype(bf16), in_proj_w.astype(bf16),
                   preferred_element_type=f32) + bias_full

    x_mlp = y[..., :mlp_hidden]
    q = y[..., mlp_hidden:mlp_hidden + C]
    k = y[..., mlp_hidden + C:mlp_hidden + 2 * C]
    v = y[..., mlp_hidden + 2 * C:]

    def heads(t):
        return t.reshape(B, N, num_heads, head_dim).transpose(0, 2, 1, 3)

    q, k, v = heads(q), heads(k), heads(v)
    scale = head_dim ** -0.5
    attn = jnp.einsum("bhqd,bhkd->bhqk", (q * scale).astype(bf16), k.astype(bf16),
                      preferred_element_type=f32)
    attn = jax.nn.softmax(attn, axis=-1)
    x_attn = jnp.einsum("bhqk,bhkd->bhqd", attn.astype(bf16), v.astype(bf16),
                        preferred_element_type=f32)
    x_attn = x_attn.transpose(0, 2, 1, 3).reshape(B, N, C)
    x_attn = jnp.einsum("bnc,dc->bnd", x_attn.astype(bf16), attn_out_w.astype(bf16),
                        preferred_element_type=f32) + attn_out_b

    x_mlp = jax.nn.gelu(x_mlp, approximate=False)
    x_mlp = jnp.einsum("bnh,dh->bnd", x_mlp.astype(bf16), mlp_out_w.astype(bf16),
                       preferred_element_type=f32) + mlp_out_b

    return x + x_attn + x_mlp


# ---------------------------------- demo --------------------------------------

if __name__ == "__main__":
    # Small deterministic shapes; C=128 keeps the output lane-dense on TPU.
    B, N, C = 2, 16, 128
    num_heads = 4
    mlp_ratio = 4.0
    mlp_hidden = int(mlp_ratio * C)          # 512
    d_out = mlp_hidden + 3 * C               # 896

    key = jax.random.PRNGKey(0)
    ks = jax.random.split(key, 9)
    x = jax.random.normal(ks[0], (B, N, C), dtype=jnp.float32)
    in_norm_w = 1.0 + 0.1 * jax.random.normal(ks[1], (C,), dtype=jnp.float32)
    in_norm_b = 0.1 * jax.random.normal(ks[2], (C,), dtype=jnp.float32)
    bnd = 1.0 / math.sqrt(C)
    in_proj_w = jax.random.uniform(ks[3], (d_out, C), minval=-bnd, maxval=bnd,
                                   dtype=jnp.float32)
    mlp_bias = 0.1 * jax.random.normal(ks[4], (mlp_hidden,), dtype=jnp.float32)
    attn_out_w = jax.random.uniform(ks[5], (C, C), minval=-bnd, maxval=bnd,
                                    dtype=jnp.float32)
    attn_out_b = 0.1 * jax.random.normal(ks[6], (C,), dtype=jnp.float32)
    bnd_m = 1.0 / math.sqrt(mlp_hidden)
    mlp_out_w = jax.random.uniform(ks[7], (C, mlp_hidden), minval=-bnd_m, maxval=bnd_m,
                                   dtype=jnp.float32)
    mlp_out_b = 0.1 * jax.random.normal(ks[8], (C,), dtype=jnp.float32)

    # One-time parameter prep (transposes / stacking / scale folding / bf16 casts).
    params = prepare_psb_params(in_norm_w, in_norm_b, in_proj_w, mlp_bias,
                                attn_out_w, attn_out_b, mlp_out_w, mlp_out_b,
                                num_heads=num_heads)

    out = parallel_scaling_block_forward(x, params, num_heads=num_heads)
    out = jax.block_until_ready(out)

    ref = _reference_forward(x, in_norm_w, in_norm_b, in_proj_w, mlp_bias,
                             attn_out_w, attn_out_b, mlp_out_w, mlp_out_b,
                             num_heads=num_heads)

    assert out.shape == (B, N, C), out.shape
    err = jnp.abs(out - ref)
    # Tolerance sized for bf16 MXU operands (the reference uses the same dtype policy).
    tol = 2e-2 + 2e-2 * jnp.abs(ref)
    max_err = float(jnp.max(err))
    assert bool(jnp.all(err <= tol)), f"max abs error {max_err}"
    print("KERNEL_OK")
</pallas_src>

<mosaic_0001>
module attributes {stable_mosaic.version = 11 : i64} {
  func.func @_psb_kernel(%arg0: i32, %arg1: memref<2x16x128xf32, #tpu.memory_space<vmem>>, %arg2: memref<1x128xf32, #tpu.memory_space<vmem>>, %arg3: memref<1x128xf32, #tpu.memory_space<vmem>>, %arg4: memref<128x896xbf16, #tpu.memory_space<vmem>>, %arg5: memref<1x896xf32, #tpu.memory_space<vmem>>, %arg6: memref<640x128xbf16, #tpu.memory_space<vmem>>, %arg7: memref<1x128xf32, #tpu.memory_space<vmem>>, %arg8: memref<2x16x128xf32, #tpu.memory_space<vmem>>, %arg9: memref<32x640xf32, #tpu.memory_space<vmem>>) attributes {dimension_semantics = [#tpu.dimension_semantics<parallel>], iteration_bounds = array<i64: 1>, scalar_prefetch = 0 : i64, scratch_operands = 1 : i64, tpu.core_type = #tpu.core_type<tc>, window_params = [{transform_indices = @transform_0, window_bounds = array<i64: 2, 16, 128>}, {pipeline_mode = #tpu.pipeline_mode<synchronous>, transform_indices = @transform_1, window_bounds = array<i64: 1, 128>}, {pipeline_mode = #tpu.pipeline_mode<synchronous>, transform_indices = @transform_2, window_bounds = array<i64: 1, 128>}, {pipeline_mode = #tpu.pipeline_mode<synchronous>, transform_indices = @transform_3, window_bounds = array<i64: 128, 896>}, {pipeline_mode = #tpu.pipeline_mode<synchronous>, transform_indices = @transform_4, window_bounds = array<i64: 1, 896>}, {pipeline_mode = #tpu.pipeline_mode<synchronous>, transform_indices = @transform_5, window_bounds = array<i64: 640, 128>}, {pipeline_mode = #tpu.pipeline_mode<synchronous>, transform_indices = @transform_6, window_bounds = array<i64: 1, 128>}, {transform_indices = @transform_7, window_bounds = array<i64: 2, 16, 128>}]} {
    %c0 = arith.constant 0 : index
    %c0_0 = arith.constant 0 : index
    %c0_1 = arith.constant 0 : index
    %0 = vector.load %arg1[%c0, %c0_0, %c0_1] : memref<2x16x128xf32, #tpu.memory_space<vmem>>, vector<2x16x128xf32>
    %1 = vector.shape_cast %0 : vector<2x16x128xf32> to vector<32x128xf32>
    %cst = arith.constant dense<0.000000e+00> : vector<32xf32>
    %2 = vector.multi_reduction <add>, %1, %cst [1] : vector<32x128xf32> to vector<32xf32>
    %3 = vector.shape_cast %2 : vector<32xf32> to vector<32x1xf32>
    %cst_2 = arith.constant 1.280000e+02 : f32
    %4 = vector.broadcast %cst_2 : f32 to vector<32x1xf32>
    %5 = arith.divf %3, %4 : vector<32x1xf32>
    %6 = vector.broadcast %5 : vector<32x1xf32> to vector<32x128xf32>
    %7 = arith.subf %1, %6 : vector<32x128xf32>
    %8 = arith.mulf %7, %7 : vector<32x128xf32>
    %cst_3 = arith.constant dense<0.000000e+00> : vector<32xf32>
    %9 = vector.multi_reduction <add>, %8, %cst_3 [1] : vector<32x128xf32> to vector<32xf32>
    %10 = vector.shape_cast %9 : vector<32xf32> to vector<32x1xf32>
    %cst_4 = arith.constant 1.280000e+02 : f32
    %11 = vector.broadcast %cst_4 : f32 to vector<32x1xf32>
    %12 = arith.divf %10, %11 : vector<32x1xf32>
    %cst_5 = arith.constant 9.99999974E-6 : f32
    %13 = vector.broadcast %cst_5 : f32 to vector<32x1xf32>
    %14 = arith.addf %12, %13 : vector<32x1xf32>
    %15 = math.rsqrt %14 : vector<32x1xf32>
    %16 = vector.broadcast %15 : vector<32x1xf32> to vector<32x128xf32>
    %17 = arith.mulf %7, %16 : vector<32x128xf32>
    %c0_6 = arith.constant 0 : index
    %c0_7 = arith.constant 0 : index
    %18 = vector.load %arg2[%c0_6, %c0_7] : memref<1x128xf32, #tpu.memory_space<vmem>>, vector<1x128xf32>
    %19 = vector.broadcast %18 : vector<1x128xf32> to vector<32x128xf32>
    %20 = arith.mulf %17, %19 : vector<32x128xf32>
    %c0_8 = arith.constant 0 : index
    %c0_9 = arith.constant 0 : index
    %21 = vector.load %arg3[%c0_8, %c0_9] : memref<1x128xf32, #tpu.memory_space<vmem>>, vector<1x128xf32>
    %22 = vector.broadcast %21 : vector<1x128xf32> to vector<32x128xf32>
    %23 = arith.addf %20, %22 : vector<32x128xf32>
    %24 = arith.truncf %23 : vector<32x128xf32> to vector<32x128xbf16>
    %c0_10 = arith.constant 0 : index
    %c0_11 = arith.constant 0 : index
    %25 = vector.load %arg4[%c0_10, %c0_11] : memref<128x896xbf16, #tpu.memory_space<vmem>>, vector<128x896xbf16>
    %cst_12 = arith.constant dense<0.000000e+00> : vector<32x896xf32>
    %26 = tpu.matmul %24, %25, %cst_12 {dimension_numbers = #tpu.dot_dimension_numbers<[1], [0], [0], [1], [0, 0, 1, 1], [], []>} : vector<32x128xbf16>, vector<128x896xbf16>, vector<32x896xf32> -> vector<32x896xf32>
    %c0_13 = arith.constant 0 : index
    %c0_14 = arith.constant 0 : index
    %27 = vector.load %arg5[%c0_13, %c0_14] : memref<1x896xf32, #tpu.memory_space<vmem>>, vector<1x896xf32>
    %28 = vector.broadcast %27 : vector<1x896xf32> to vector<32x896xf32>
    %29 = arith.addf %26, %28 : vector<32x896xf32>
    %30 = vector.extract_strided_slice %29 {offsets = [0, 0], sizes = [32, 512], strides = [1, 1]} : vector<32x896xf32> to vector<32x512xf32>
    %cst_15 = arith.constant 5.000000e-01 : f32
    %31 = vector.broadcast %cst_15 : f32 to vector<32x512xf32>
    %32 = arith.mulf %31, %30 : vector<32x512xf32>
    %cst_16 = arith.constant 0.707106769 : f32
    %33 = vector.broadcast %cst_16 : f32 to vector<32x512xf32>
    %34 = arith.mulf %30, %33 : vector<32x512xf32>
    %35 = math.absf %34 : vector<32x512xf32>
    %cst_17 = arith.constant 0.327591091 : f32
    %36 = vector.broadcast %cst_17 : f32 to vector<32x512xf32>
    %37 = arith.mulf %36, %35 : vector<32x512xf32>
    %cst_18 = arith.constant 1.000000e+00 : f32
    %38 = vector.broadcast %cst_18 : f32 to vector<32x512xf32>
    %39 = arith.addf %38, %37 : vector<32x512xf32>
    %40 = tpu.reciprocal %39 {approx = true} : vector<32x512xf32> -> vector<32x512xf32>
    %cst_19 = arith.constant 1.06140542 : f32
    %41 = vector.broadcast %cst_19 : f32 to vector<32x512xf32>
    %42 = arith.mulf %41, %40 : vector<32x512xf32>
    %cst_20 = arith.constant -1.45315206 : f32
    %43 = vector.broadcast %cst_20 : f32 to vector<32x512xf32>
    %44 = arith.addf %42, %43 : vector<32x512xf32>
    %45 = arith.mulf %44, %40 : vector<32x512xf32>
    %cst_21 = arith.constant 1.42141378 : f32
    %46 = vector.broadcast %cst_21 : f32 to vector<32x512xf32>
    %47 = arith.addf %45, %46 : vector<32x512xf32>
    %48 = arith.mulf %47, %40 : vector<32x512xf32>
    %cst_22 = arith.constant -0.284496725 : f32
    %49 = vector.broadcast %cst_22 : f32 to vector<32x512xf32>
    %50 = arith.addf %48, %49 : vector<32x512xf32>
    %51 = arith.mulf %50, %40 : vector<32x512xf32>
    %cst_23 = arith.constant 0.254829586 : f32
    %52 = vector.broadcast %cst_23 : f32 to vector<32x512xf32>
    %53 = arith.addf %51, %52 : vector<32x512xf32>
    %54 = arith.mulf %53, %40 : vector<32x512xf32>
    %cst_24 = arith.constant 0.000000e+00 : f32
    %55 = vector.broadcast %cst_24 : f32 to vector<32x512xf32>
    %56 = arith.subf %55, %35 : vector<32x512xf32>
    %57 = arith.mulf %56, %35 : vector<32x512xf32>
    %58 = math.exp %57 : vector<32x512xf32>
    %59 = arith.mulf %54, %58 : vector<32x512xf32>
    %cst_25 = arith.constant 1.000000e+00 : f32
    %60 = vector.broadcast %cst_25 : f32 to vector<32x512xf32>
    %61 = arith.subf %60, %59 : vector<32x512xf32>
    %cst_26 = arith.constant 0.000000e+00 : f32
    %62 = vector.broadcast %cst_26 : f32 to vector<32x512xf32>
    %63 = arith.cmpf oge, %34, %62 : vector<32x512xf32>
    %cst_27 = arith.constant 0.000000e+00 : f32
    %64 = vector.broadcast %cst_27 : f32 to vector<32x512xf32>
    %65 = arith.subf %64, %61 : vector<32x512xf32>
    %66 = arith.select %63, %61, %65 : vector<32x512xi1>, vector<32x512xf32>
    %cst_28 = arith.constant 1.000000e+00 : f32
    %67 = vector.broadcast %cst_28 : f32 to vector<32x512xf32>
    %68 = arith.addf %67, %66 : vector<32x512xf32>
    %69 = arith.mulf %32, %68 : vector<32x512xf32>
    %c0_29 = arith.constant 0 : index
    %c128 = arith.constant 128 : index
    %70 = vector.load %arg9[%c0_29, %c128] : memref<32x640xf32, #tpu.memory_space<vmem>>, vector<32x512xf32>
    tpu.vector_store %arg9[%c0_29, %c128], %69 {strides = array<i32>} : memref<32x640xf32, #tpu.memory_space<vmem>>, vector<32x512xf32>,
    %71 = vector.extract_strided_slice %29 {offsets = [0, 512], sizes = [16, 32], strides = [1, 1]} : vector<32x896xf32> to vector<16x32xf32>
    %72 = arith.truncf %71 : vector<16x32xf32> to vector<16x32xbf16>
    %73 = vector.extract_strided_slice %29 {offsets = [0, 640], sizes = [16, 32], strides = [1, 1]} : vector<32x896xf32> to vector<16x32xf32>
    %74 = arith.truncf %73 : vector<16x32xf32> to vector<16x32xbf16>
    %75 = vector.extract_strided_slice %29 {offsets = [0, 768], sizes = [16, 32], strides = [1, 1]} : vector<32x896xf32> to vector<16x32xf32>
    %76 = arith.truncf %75 : vector<16x32xf32> to vector<16x32xbf16>
    %cst_30 = arith.constant dense<0.000000e+00> : vector<16x16xf32>
    %77 = tpu.matmul %72, %74, %cst_30 {dimension_numbers = #tpu.dot_dimension_numbers<[1], [1], [0], [0], [0, 0, 1, 0], [], []>} : vector<16x32xbf16>, vector<16x32xbf16>, vector<16x16xf32> -> vector<16x16xf32>
    %cst_31 = arith.constant dense<0xFF800000> : vector<16xf32>
    %78 = vector.multi_reduction <maximumf>, %77, %cst_31 [1] : vector<16x16xf32> to vector<16xf32>
    %79 = vector.shape_cast %78 : vector<16xf32> to vector<16x1xf32>
    %80 = vector.broadcast %79 : vector<16x1xf32> to vector<16x16xf32>
    %81 = arith.subf %77, %80 : vector<16x16xf32>
    %82 = math.exp %81 : vector<16x16xf32>
    %cst_32 = arith.constant dense<0.000000e+00> : vector<16xf32>
    %83 = vector.multi_reduction <add>, %82, %cst_32 [1] : vector<16x16xf32> to vector<16xf32>
    %84 = vector.shape_cast %83 : vector<16xf32> to vector<16x1xf32>
    %85 = arith.truncf %82 : vector<16x16xf32> to vector<16x16xbf16>
    %cst_33 = arith.constant dense<0.000000e+00> : vector<16x32xf32>
    %86 = tpu.matmul %85, %76, %cst_33 {dimension_numbers = #tpu.dot_dimension_numbers<[1], [0], [0], [1], [0, 0, 1, 1], [], []>} : vector<16x16xbf16>, vector<16x32xbf16>, vector<16x32xf32> -> vector<16x32xf32>
    %87 = tpu.reciprocal %84 {approx = true} : vector<16x1xf32> -> vector<16x1xf32>
    %88 = vector.broadcast %87 : vector<16x1xf32> to vector<16x32xf32>
    %89 = arith.mulf %86, %88 : vector<16x32xf32>
    %c0_34 = arith.constant 0 : index
    %c0_35 = arith.constant 0 : index
    %90 = vector.load %arg9[%c0_34, %c0_35] : memref<32x640xf32, #tpu.memory_space<vmem>>, vector<16x32xf32>
    tpu.vector_store %arg9[%c0_34, %c0_35], %89 {strides = array<i32>} : memref<32x640xf32, #tpu.memory_space<vmem>>, vector<16x32xf32>,
    %91 = vector.extract_strided_slice %29 {offsets = [0, 544], sizes = [16, 32], strides = [1, 1]} : vector<32x896xf32> to vector<16x32xf32>
    %92 = arith.truncf %91 : vector<16x32xf32> to vector<16x32xbf16>
    %93 = vector.extract_strided_slice %29 {offsets = [0, 672], sizes = [16, 32], strides = [1, 1]} : vector<32x896xf32> to vector<16x32xf32>
    %94 = arith.truncf %93 : vector<16x32xf32> to vector<16x32xbf16>
    %95 = vector.extract_strided_slice %29 {offsets = [0, 800], sizes = [16, 32], strides = [1, 1]} : vector<32x896xf32> to vector<16x32xf32>
    %96 = arith.truncf %95 : vector<16x32xf32> to vector<16x32xbf16>
    %cst_36 = arith.constant dense<0.000000e+00> : vector<16x16xf32>
    %97 = tpu.matmul %92, %94, %cst_36 {dimension_numbers = #tpu.dot_dimension_numbers<[1], [1], [0], [0], [0, 0, 1, 0], [], []>} : vector<16x32xbf16>, vector<16x32xbf16>, vector<16x16xf32> -> vector<16x16xf32>
    %cst_37 = arith.constant dense<0xFF800000> : vector<16xf32>
    %98 = vector.multi_reduction <maximumf>, %97, %cst_37 [1] : vector<16x16xf32> to vector<16xf32>
    %99 = vector.shape_cast %98 : vector<16xf32> to vector<16x1xf32>
    %100 = vector.broadcast %99 : vector<16x1xf32> to vector<16x16xf32>
    %101 = arith.subf %97, %100 : vector<16x16xf32>
    %102 = math.exp %101 : vector<16x16xf32>
    %cst_38 = arith.constant dense<0.000000e+00> : vector<16xf32>
    %103 = vector.multi_reduction <add>, %102, %cst_38 [1] : vector<16x16xf32> to vector<16xf32>
    %104 = vector.shape_cast %103 : vector<16xf32> to vector<16x1xf32>
    %105 = arith.truncf %102 : vector<16x16xf32> to vector<16x16xbf16>
    %cst_39 = arith.constant dense<0.000000e+00> : vector<16x32xf32>
    %106 = tpu.matmul %105, %96, %cst_39 {dimension_numbers = #tpu.dot_dimension_numbers<[1], [0], [0], [1], [0, 0, 1, 1], [], []>} : vector<16x16xbf16>, vector<16x32xbf16>, vector<16x32xf32> -> vector<16x32xf32>
    %107 = tpu.reciprocal %104 {approx = true} : vector<16x1xf32> -> vector<16x1xf32>
    %108 = vector.broadcast %107 : vector<16x1xf32> to vector<16x32xf32>
    %109 = arith.mulf %106, %108 : vector<16x32xf32>
    %c0_40 = arith.constant 0 : index
    %c32 = arith.constant 32 : index
    %110 = vector.load %arg9[%c0_40, %c32] : memref<32x640xf32, #tpu.memory_space<vmem>>, vector<16x32xf32>
    tpu.vector_store %arg9[%c0_40, %c32], %109 {strides = array<i32>} : memref<32x640xf32, #tpu.memory_space<vmem>>, vector<16x32xf32>,
    %111 = vector.extract_strided_slice %29 {offsets = [0, 576], sizes = [16, 32], strides = [1, 1]} : vector<32x896xf32> to vector<16x32xf32>
    %112 = arith.truncf %111 : vector<16x32xf32> to vector<16x32xbf16>
    %113 = vector.extract_strided_slice %29 {offsets = [0, 704], sizes = [16, 32], strides = [1, 1]} : vector<32x896xf32> to vector<16x32xf32>
    %114 = arith.truncf %113 : vector<16x32xf32> to vector<16x32xbf16>
    %115 = vector.extract_strided_slice %29 {offsets = [0, 832], sizes = [16, 32], strides = [1, 1]} : vector<32x896xf32> to vector<16x32xf32>
    %116 = arith.truncf %115 : vector<16x32xf32> to vector<16x32xbf16>
    %cst_41 = arith.constant dense<0.000000e+00> : vector<16x16xf32>
    %117 = tpu.matmul %112, %114, %cst_41 {dimension_numbers = #tpu.dot_dimension_numbers<[1], [1], [0], [0], [0, 0, 1, 0], [], []>} : vector<16x32xbf16>, vector<16x32xbf16>, vector<16x16xf32> -> vector<16x16xf32>
    %cst_42 = arith.constant dense<0xFF800000> : vector<16xf32>
    %118 = vector.multi_reduction <maximumf>, %117, %cst_42 [1] : vector<16x16xf32> to vector<16xf32>
    %119 = vector.shape_cast %118 : vector<16xf32> to vector<16x1xf32>
    %120 = vector.broadcast %119 : vector<16x1xf32> to vector<16x16xf32>
    %121 = arith.subf %117, %120 : vector<16x16xf32>
    %122 = math.exp %121 : vector<16x16xf32>
    %cst_43 = arith.constant dense<0.000000e+00> : vector<16xf32>
    %123 = vector.multi_reduction <add>, %122, %cst_43 [1] : vector<16x16xf32> to vector<16xf32>
    %124 = vector.shape_cast %123 : vector<16xf32> to vector<16x1xf32>
    %125 = arith.truncf %122 : vector<16x16xf32> to vector<16x16xbf16>
    %cst_44 = arith.constant dense<0.000000e+00> : vector<16x32xf32>
    %126 = tpu.matmul %125, %116, %cst_44 {dimension_numbers = #tpu.dot_dimension_numbers<[1], [0], [0], [1], [0, 0, 1, 1], [], []>} : vector<16x16xbf16>, vector<16x32xbf16>, vector<16x32xf32> -> vector<16x32xf32>
    %127 = tpu.reciprocal %124 {approx = true} : vector<16x1xf32> -> vector<16x1xf32>
    %128 = vector.broadcast %127 : vector<16x1xf32> to vector<16x32xf32>
    %129 = arith.mulf %126, %128 : vector<16x32xf32>
    %c0_45 = arith.constant 0 : index
    %c64 = arith.constant 64 : index
    %130 = vector.load %arg9[%c0_45, %c64] : memref<32x640xf32, #tpu.memory_space<vmem>>, vector<16x32xf32>
    tpu.vector_store %arg9[%c0_45, %c64], %129 {strides = array<i32>} : memref<32x640xf32, #tpu.memory_space<vmem>>, vector<16x32xf32>,
    %131 = vector.extract_strided_slice %29 {offsets = [0, 608], sizes = [16, 32], strides = [1, 1]} : vector<32x896xf32> to vector<16x32xf32>
    %132 = arith.truncf %131 : vector<16x32xf32> to vector<16x32xbf16>
    %133 = vector.extract_strided_slice %29 {offsets = [0, 736], sizes = [16, 32], strides = [1, 1]} : vector<32x896xf32> to vector<16x32xf32>
    %134 = arith.truncf %133 : vector<16x32xf32> to vector<16x32xbf16>
    %135 = vector.extract_strided_slice %29 {offsets = [0, 864], sizes = [16, 32], strides = [1, 1]} : vector<32x896xf32> to vector<16x32xf32>
    %136 = arith.truncf %135 : vector<16x32xf32> to vector<16x32xbf16>
    %cst_46 = arith.constant dense<0.000000e+00> : vector<16x16xf32>
    %137 = tpu.matmul %132, %134, %cst_46 {dimension_numbers = #tpu.dot_dimension_numbers<[1], [1], [0], [0], [0, 0, 1, 0], [], []>} : vector<16x32xbf16>, vector<16x32xbf16>, vector<16x16xf32> -> vector<16x16xf32>
    %cst_47 = arith.constant dense<0xFF800000> : vector<16xf32>
    %138 = vector.multi_reduction <maximumf>, %137, %cst_47 [1] : vector<16x16xf32> to vector<16xf32>
    %139 = vector.shape_cast %138 : vector<16xf32> to vector<16x1xf32>
    %140 = vector.broadcast %139 : vector<16x1xf32> to vector<16x16xf32>
    %141 = arith.subf %137, %140 : vector<16x16xf32>
    %142 = math.exp %141 : vector<16x16xf32>
    %cst_48 = arith.constant dense<0.000000e+00> : vector<16xf32>
    %143 = vector.multi_reduction <add>, %142, %cst_48 [1] : vector<16x16xf32> to vector<16xf32>
    %144 = vector.shape_cast %143 : vector<16xf32> to vector<16x1xf32>
    %145 = arith.truncf %142 : vector<16x16xf32> to vector<16x16xbf16>
    %cst_49 = arith.constant dense<0.000000e+00> : vector<16x32xf32>
    %146 = tpu.matmul %145, %136, %cst_49 {dimension_numbers = #tpu.dot_dimension_numbers<[1], [0], [0], [1], [0, 0, 1, 1], [], []>} : vector<16x16xbf16>, vector<16x32xbf16>, vector<16x32xf32> -> vector<16x32xf32>
    %147 = tpu.reciprocal %144 {approx = true} : vector<16x1xf32> -> vector<16x1xf32>
    %148 = vector.broadcast %147 : vector<16x1xf32> to vector<16x32xf32>
    %149 = arith.mulf %146, %148 : vector<16x32xf32>
    %c0_50 = arith.constant 0 : index
    %c96 = arith.constant 96 : index
    %150 = vector.load %arg9[%c0_50, %c96] : memref<32x640xf32, #tpu.memory_space<vmem>>, vector<16x32xf32>
    tpu.vector_store %arg9[%c0_50, %c96], %149 {strides = array<i32>} : memref<32x640xf32, #tpu.memory_space<vmem>>, vector<16x32xf32>,
    %151 = vector.extract_strided_slice %29 {offsets = [16, 512], sizes = [16, 32], strides = [1, 1]} : vector<32x896xf32> to vector<16x32xf32>
    %152 = arith.truncf %151 : vector<16x32xf32> to vector<16x32xbf16>
    %153 = vector.extract_strided_slice %29 {offsets = [16, 640], sizes = [16, 32], strides = [1, 1]} : vector<32x896xf32> to vector<16x32xf32>
    %154 = arith.truncf %153 : vector<16x32xf32> to vector<16x32xbf16>
    %155 = vector.extract_strided_slice %29 {offsets = [16, 768], sizes = [16, 32], strides = [1, 1]} : vector<32x896xf32> to vector<16x32xf32>
    %156 = arith.truncf %155 : vector<16x32xf32> to vector<16x32xbf16>
    %cst_51 = arith.constant dense<0.000000e+00> : vector<16x16xf32>
    %157 = tpu.matmul %152, %154, %cst_51 {dimension_numbers = #tpu.dot_dimension_numbers<[1], [1], [0], [0], [0, 0, 1, 0], [], []>} : vector<16x32xbf16>, vector<16x32xbf16>, vector<16x16xf32> -> vector<16x16xf32>
    %cst_52 = arith.constant dense<0xFF800000> : vector<16xf32>
    %158 = vector.multi_reduction <maximumf>, %157, %cst_52 [1] : vector<16x16xf32> to vector<16xf32>
    %159 = vector.shape_cast %158 : vector<16xf32> to vector<16x1xf32>
    %160 = vector.broadcast %159 : vector<16x1xf32> to vector<16x16xf32>
    %161 = arith.subf %157, %160 : vector<16x16xf32>
    %162 = math.exp %161 : vector<16x16xf32>
    %cst_53 = arith.constant dense<0.000000e+00> : vector<16xf32>
    %163 = vector.multi_reduction <add>, %162, %cst_53 [1] : vector<16x16xf32> to vector<16xf32>
    %164 = vector.shape_cast %163 : vector<16xf32> to vector<16x1xf32>
    %165 = arith.truncf %162 : vector<16x16xf32> to vector<16x16xbf16>
    %cst_54 = arith.constant dense<0.000000e+00> : vector<16x32xf32>
    %166 = tpu.matmul %165, %156, %cst_54 {dimension_numbers = #tpu.dot_dimension_numbers<[1], [0], [0], [1], [0, 0, 1, 1], [], []>} : vector<16x16xbf16>, vector<16x32xbf16>, vector<16x32xf32> -> vector<16x32xf32>
    %167 = tpu.reciprocal %164 {approx = true} : vector<16x1xf32> -> vector<16x1xf32>
    %168 = vector.broadcast %167 : vector<16x1xf32> to vector<16x32xf32>
    %169 = arith.mulf %166, %168 : vector<16x32xf32>
    %c16 = arith.constant 16 : index
    %c0_55 = arith.constant 0 : index
    %170 = vector.load %arg9[%c16, %c0_55] : memref<32x640xf32, #tpu.memory_space<vmem>>, vector<16x32xf32>
    tpu.vector_store %arg9[%c16, %c0_55], %169 {strides = array<i32>} : memref<32x640xf32, #tpu.memory_space<vmem>>, vector<16x32xf32>,
    %171 = vector.extract_strided_slice %29 {offsets = [16, 544], sizes = [16, 32], strides = [1, 1]} : vector<32x896xf32> to vector<16x32xf32>
    %172 = arith.truncf %171 : vector<16x32xf32> to vector<16x32xbf16>
    %173 = vector.extract_strided_slice %29 {offsets = [16, 672], sizes = [16, 32], strides = [1, 1]} : vector<32x896xf32> to vector<16x32xf32>
    %174 = arith.truncf %173 : vector<16x32xf32> to vector<16x32xbf16>
    %175 = vector.extract_strided_slice %29 {offsets = [16, 800], sizes = [16, 32], strides = [1, 1]} : vector<32x896xf32> to vector<16x32xf32>
    %176 = arith.truncf %175 : vector<16x32xf32> to vector<16x32xbf16>
    %cst_56 = arith.constant dense<0.000000e+00> : vector<16x16xf32>
    %177 = tpu.matmul %172, %174, %cst_56 {dimension_numbers = #tpu.dot_dimension_numbers<[1], [1], [0], [0], [0, 0, 1, 0], [], []>} : vector<16x32xbf16>, vector<16x32xbf16>, vector<16x16xf32> -> vector<16x16xf32>
    %cst_57 = arith.constant dense<0xFF800000> : vector<16xf32>
    %178 = vector.multi_reduction <maximumf>, %177, %cst_57 [1] : vector<16x16xf32> to vector<16xf32>
    %179 = vector.shape_cast %178 : vector<16xf32> to vector<16x1xf32>
    %180 = vector.broadcast %179 : vector<16x1xf32> to vector<16x16xf32>
    %181 = arith.subf %177, %180 : vector<16x16xf32>
    %182 = math.exp %181 : vector<16x16xf32>
    %cst_58 = arith.constant dense<0.000000e+00> : vector<16xf32>
    %183 = vector.multi_reduction <add>, %182, %cst_58 [1] : vector<16x16xf32> to vector<16xf32>
    %184 = vector.shape_cast %183 : vector<16xf32> to vector<16x1xf32>
    %185 = arith.truncf %182 : vector<16x16xf32> to vector<16x16xbf16>
    %cst_59 = arith.constant dense<0.000000e+00> : vector<16x32xf32>
    %186 = tpu.matmul %185, %176, %cst_59 {dimension_numbers = #tpu.dot_dimension_numbers<[1], [0], [0], [1], [0, 0, 1, 1], [], []>} : vector<16x16xbf16>, vector<16x32xbf16>, vector<16x32xf32> -> vector<16x32xf32>
    %187 = tpu.reciprocal %184 {approx = true} : vector<16x1xf32> -> vector<16x1xf32>
    %188 = vector.broadcast %187 : vector<16x1xf32> to vector<16x32xf32>
    %189 = arith.mulf %186, %188 : vector<16x32xf32>
    %c16_60 = arith.constant 16 : index
    %c32_61 = arith.constant 32 : index
    %190 = vector.load %arg9[%c16_60, %c32_61] : memref<32x640xf32, #tpu.memory_space<vmem>>, vector<16x32xf32>
    tpu.vector_store %arg9[%c16_60, %c32_61], %189 {strides = array<i32>} : memref<32x640xf32, #tpu.memory_space<vmem>>, vector<16x32xf32>,
    %191 = vector.extract_strided_slice %29 {offsets = [16, 576], sizes = [16, 32], strides = [1, 1]} : vector<32x896xf32> to vector<16x32xf32>
    %192 = arith.truncf %191 : vector<16x32xf32> to vector<16x32xbf16>
    %193 = vector.extract_strided_slice %29 {offsets = [16, 704], sizes = [16, 32], strides = [1, 1]} : vector<32x896xf32> to vector<16x32xf32>
    %194 = arith.truncf %193 : vector<16x32xf32> to vector<16x32xbf16>
    %195 = vector.extract_strided_slice %29 {offsets = [16, 832], sizes = [16, 32], strides = [1, 1]} : vector<32x896xf32> to vector<16x32xf32>
    %196 = arith.truncf %195 : vector<16x32xf32> to vector<16x32xbf16>
    %cst_62 = arith.constant dense<0.000000e+00> : vector<16x16xf32>
    %197 = tpu.matmul %192, %194, %cst_62 {dimension_numbers = #tpu.dot_dimension_numbers<[1], [1], [0], [0], [0, 0, 1, 0], [], []>} : vector<16x32xbf16>, vector<16x32xbf16>, vector<16x16xf32> -> vector<16x16xf32>
    %cst_63 = arith.constant dense<0xFF800000> : vector<16xf32>
    %198 = vector.multi_reduction <maximumf>, %197, %cst_63 [1] : vector<16x16xf32> to vector<16xf32>
    %199 = vector.shape_cast %198 : vector<16xf32> to vector<16x1xf32>
    %200 = vector.broadcast %199 : vector<16x1xf32> to vector<16x16xf32>
    %201 = arith.subf %197, %200 : vector<16x16xf32>
    %202 = math.exp %201 : vector<16x16xf32>
    %cst_64 = arith.constant dense<0.000000e+00> : vector<16xf32>
    %203 = vector.multi_reduction <add>, %202, %cst_64 [1] : vector<16x16xf32> to vector<16xf32>
    %204 = vector.shape_cast %203 : vector<16xf32> to vector<16x1xf32>
    %205 = arith.truncf %202 : vector<16x16xf32> to vector<16x16xbf16>
    %cst_65 = arith.constant dense<0.000000e+00> : vector<16x32xf32>
    %206 = tpu.matmul %205, %196, %cst_65 {dimension_numbers = #tpu.dot_dimension_numbers<[1], [0], [0], [1], [0, 0, 1, 1], [], []>} : vector<16x16xbf16>, vector<16x32xbf16>, vector<16x32xf32> -> vector<16x32xf32>
    %207 = tpu.reciprocal %204 {approx = true} : vector<16x1xf32> -> vector<16x1xf32>
    %208 = vector.broadcast %207 : vector<16x1xf32> to vector<16x32xf32>
    %209 = arith.mulf %206, %208 : vector<16x32xf32>
    %c16_66 = arith.constant 16 : index
    %c64_67 = arith.constant 64 : index
    %210 = vector.load %arg9[%c16_66, %c64_67] : memref<32x640xf32, #tpu.memory_space<vmem>>, vector<16x32xf32>
    tpu.vector_store %arg9[%c16_66, %c64_67], %209 {strides = array<i32>} : memref<32x640xf32, #tpu.memory_space<vmem>>, vector<16x32xf32>,
    %211 = vector.extract_strided_slice %29 {offsets = [16, 608], sizes = [16, 32], strides = [1, 1]} : vector<32x896xf32> to vector<16x32xf32>
    %212 = arith.truncf %211 : vector<16x32xf32> to vector<16x32xbf16>
    %213 = vector.extract_strided_slice %29 {offsets = [16, 736], sizes = [16, 32], strides = [1, 1]} : vector<32x896xf32> to vector<16x32xf32>
    %214 = arith.truncf %213 : vector<16x32xf32> to vector<16x32xbf16>
    %215 = vector.extract_strided_slice %29 {offsets = [16, 864], sizes = [16, 32], strides = [1, 1]} : vector<32x896xf32> to vector<16x32xf32>
    %216 = arith.truncf %215 : vector<16x32xf32> to vector<16x32xbf16>
    %cst_68 = arith.constant dense<0.000000e+00> : vector<16x16xf32>
    %217 = tpu.matmul %212, %214, %cst_68 {dimension_numbers = #tpu.dot_dimension_numbers<[1], [1], [0], [0], [0, 0, 1, 0], [], []>} : vector<16x32xbf16>, vector<16x32xbf16>, vector<16x16xf32> -> vector<16x16xf32>
    %cst_69 = arith.constant dense<0xFF800000> : vector<16xf32>
    %218 = vector.multi_reduction <maximumf>, %217, %cst_69 [1] : vector<16x16xf32> to vector<16xf32>
    %219 = vector.shape_cast %218 : vector<16xf32> to vector<16x1xf32>
    %220 = vector.broadcast %219 : vector<16x1xf32> to vector<16x16xf32>
    %221 = arith.subf %217, %220 : vector<16x16xf32>
    %222 = math.exp %221 : vector<16x16xf32>
    %cst_70 = arith.constant dense<0.000000e+00> : vector<16xf32>
    %223 = vector.multi_reduction <add>, %222, %cst_70 [1] : vector<16x16xf32> to vector<16xf32>
    %224 = vector.shape_cast %223 : vector<16xf32> to vector<16x1xf32>
    %225 = arith.truncf %222 : vector<16x16xf32> to vector<16x16xbf16>
    %cst_71 = arith.constant dense<0.000000e+00> : vector<16x32xf32>
    %226 = tpu.matmul %225, %216, %cst_71 {dimension_numbers = #tpu.dot_dimension_numbers<[1], [0], [0], [1], [0, 0, 1, 1], [], []>} : vector<16x16xbf16>, vector<16x32xbf16>, vector<16x32xf32> -> vector<16x32xf32>
    %227 = tpu.reciprocal %224 {approx = true} : vector<16x1xf32> -> vector<16x1xf32>
    %228 = vector.broadcast %227 : vector<16x1xf32> to vector<16x32xf32>
    %229 = arith.mulf %226, %228 : vector<16x32xf32>
    %c16_72 = arith.constant 16 : index
    %c96_73 = arith.constant 96 : index
    %230 = vector.load %arg9[%c16_72, %c96_73] : memref<32x640xf32, #tpu.memory_space<vmem>>, vector<16x32xf32>
    tpu.vector_store %arg9[%c16_72, %c96_73], %229 {strides = array<i32>} : memref<32x640xf32, #tpu.memory_space<vmem>>, vector<16x32xf32>,
    %c0_74 = arith.constant 0 : index
    %c0_75 = arith.constant 0 : index
    %231 = vector.load %arg9[%c0_74, %c0_75] : memref<32x640xf32, #tpu.memory_space<vmem>>, vector<32x640xf32>
    %232 = arith.truncf %231 : vector<32x640xf32> to vector<32x640xbf16>
    %c0_76 = arith.constant 0 : index
    %c0_77 = arith.constant 0 : index
    %233 = vector.load %arg6[%c0_76, %c0_77] : memref<640x128xbf16, #tpu.memory_space<vmem>>, vector<640x128xbf16>
    %cst_78 = arith.constant dense<0.000000e+00> : vector<32x128xf32>
    %234 = tpu.matmul %232, %233, %cst_78 {dimension_numbers = #tpu.dot_dimension_numbers<[1], [0], [0], [1], [0, 0, 1, 1], [], []>} : vector<32x640xbf16>, vector<640x128xbf16>, vector<32x128xf32> -> vector<32x128xf32>
    %c0_79 = arith.constant 0 : index
    %c0_80 = arith.constant 0 : index
    %235 = vector.load %arg7[%c0_79, %c0_80] : memref<1x128xf32, #tpu.memory_space<vmem>>, vector<1x128xf32>
    %236 = vector.broadcast %235 : vector<1x128xf32> to vector<32x128xf32>
    %237 = arith.addf %234, %236 : vector<32x128xf32>
    %238 = arith.addf %1, %237 : vector<32x128xf32>
    %239 = vector.shape_cast %238 : vector<32x128xf32> to vector<2x16x128xf32>
    %c0_81 = arith.constant 0 : index
    %c0_82 = arith.constant 0 : index
    %c0_83 = arith.constant 0 : index
    %240 = vector.load %arg8[%c0_81, %c0_82, %c0_83] : memref<2x16x128xf32, #tpu.memory_space<vmem>>, vector<2x16x128xf32>
    tpu.vector_store %arg8[%c0_81, %c0_82, %c0_83], %239 {strides = array<i32>} : memref<2x16x128xf32, #tpu.memory_space<vmem>>, vector<2x16x128xf32>,
    return
  }
  func.func @transform_0(%arg0: i32) -> (i32, i32, i32) {
    %c0_i32 = arith.constant 0 : i32
    %c0_i32_0 = arith.constant 0 : i32
    %c0_i32_1 = arith.constant 0 : i32
    return %arg0, %c0_i32, %c0_i32_0 : i32, i32, i32
  }
  func.func @transform_1(%arg0: i32) -> (i32, i32) {
    %c0_i32 = arith.constant 0 : i32
    %c0_i32_0 = arith.constant 0 : i32
    %c0_i32_1 = arith.constant 0 : i32
    return %c0_i32, %c0_i32_0 : i32, i32
  }
  func.func @transform_2(%arg0: i32) -> (i32, i32) {
    %c0_i32 = arith.constant 0 : i32
    %c0_i32_0 = arith.constant 0 : i32
    %c0_i32_1 = arith.constant 0 : i32
    return %c0_i32, %c0_i32_0 : i32, i32
  }
  func.func @transform_3(%arg0: i32) -> (i32, i32) {
    %c0_i32 = arith.constant 0 : i32
    %c0_i32_0 = arith.constant 0 : i32
    %c0_i32_1 = arith.constant 0 : i32
    return %c0_i32, %c0_i32_0 : i32, i32
  }
  func.func @transform_4(%arg0: i32) -> (i32, i32) {
    %c0_i32 = arith.constant 0 : i32
    %c0_i32_0 = arith.constant 0 : i32
    %c0_i32_1 = arith.constant 0 : i32
    return %c0_i32, %c0_i32_0 : i32, i32
  }
  func.func @transform_5(%arg0: i32) -> (i32, i32) {
    %c0_i32 = arith.constant 0 : i32
    %c0_i32_0 = arith.constant 0 : i32
    %c0_i32_1 = arith.constant 0 : i32
    return %c0_i32, %c0_i32_0 : i32, i32
  }
  func.func @transform_6(%arg0: i32) -> (i32, i32) {
    %c0_i32 = arith.constant 0 : i32
    %c0_i32_0 = arith.constant 0 : i32
    %c0_i32_1 = arith.constant 0 : i32
    return %c0_i32, %c0_i32_0 : i32, i32
  }
  func.func @transform_7(%arg0: i32) -> (i32, i32, i32) {
    %c0_i32 = arith.constant 0 : i32
    %c0_i32_0 = arith.constant 0 : i32
    %c0_i32_1 = arith.constant 0 : i32
    return %arg0, %c0_i32, %c0_i32_0 : i32, i32, i32
  }
}

</mosaic_0001>

<llo_original>
// kernel: parallel_scaling_block_forward.1
$region0: #{parallel_scaling_block_forward.1}
  #allocation0 [shape = 'u32[]', space=smem, size = 0x4, offset = 0x4, fixed_abs, tag = 'smem constant byte address 0x4 - core index']
  #allocation1 [shape = 'u32[144,128]{1,0:T(1,128)}', space=vmem, size = 0x12000, scoped, tag = 'internal scratch']
  #allocation2 [shape = 'f32[32,640]{1,0:T(8,128)}', space=vmem, size = 0x14000, scoped, tag = 'scratch operand']
  %s0 = inlined_call_operand.hbm [shape: f32[2,16,128], index: 0, kind: input, shape index: {}]
  %s1 = inlined_call_operand.vmem [shape: f32[1,128], index: 1, kind: input, shape index: {}]
  %s2 = inlined_call_operand.vmem [shape: f32[1,128], index: 2, kind: input, shape index: {}]
  %s3 = inlined_call_operand.hbm [shape: bf16[128,896], index: 3, kind: input, shape index: {}]
  %s4 = inlined_call_operand.hbm [shape: f32[1,896], index: 4, kind: input, shape index: {}]
  %s5 = inlined_call_operand.hbm [shape: bf16[640,128], index: 5, kind: input, shape index: {}]
  %s6 = inlined_call_operand.vmem [shape: f32[1,128], index: 6, kind: input, shape index: {}]
  %s7 = inlined_call_operand.hbm [shape: f32[2,16,128], index: 7, kind: output, shape index: {}]
  %s8 = sld [smem:[#allocation0]]
  $region54: #{parallel_scaling_block_forward.1} parent=0
    _
  %s10 = ssub.s32 1, %s8
  %s11 = scalar_select 0, %s10, %s8
  $region1: #{parallel_scaling_block_forward.1} parent=0
    #allocation3 [shape = 'u8[16384]{0}', space=vmem, size = 0x4000, scoped, tag = 'input window, operand 0, single buffered']
    #allocation4 [shape = 's32[1]{0}', space=sflag, size = 0x4, scoped, tag = 'scoped memory for parallel_scaling_block_forward.1']
    #allocation5 [shape = 's32[1]{0}', space=sflag, size = 0x4, scoped, tag = 'scoped memory for parallel_scaling_block_forward.1']
    #allocation6 [shape = 'u8[229376]{0}', space=vmem, size = 0x38000, scoped, tag = 'input window, operand 3, single buffered']
    #allocation7 [shape = 's32[1]{0}', space=sflag, size = 0x4, scoped, tag = 'scoped memory for parallel_scaling_block_forward.1']
    #allocation8 [shape = 'u8[3584]{0}', space=vmem, size = 0x1000, scoped, tag = 'input window, operand 4, single buffered']
    #allocation9 [shape = 'u8[163840]{0}', space=vmem, size = 0x28000, scoped, tag = 'input window, operand 5, single buffered']
    #allocation10 [shape = 's32[1]{0}', space=sflag, size = 0x4, scoped, tag = 'scoped memory for parallel_scaling_block_forward.1']
    #allocation11 [shape = 'u8[16384]{0}', space=vmem, size = 0x4000, scoped, tag = 'output window, operand 0, single buffered']
    %12 = vsyncpa [#allocation4], 0
    %13 = vsyncpa [#allocation7], 0
    %14 = vsyncpa [#allocation10], 0
    %15 = vsyncpa [#allocation5], 0
    // Predicated region
    $region2: #{parallel_scaling_block_forward.1} parent=1 // pred_check
      _
    $region3: #{parallel_scaling_block_forward.1} parent=1 // pred_check_branch
      %17 = sbr.rel (0) target = $region5
    $region4: #{parallel_scaling_block_forward.1} parent=1 // pred_region
      %s19 = ssub.s32 512, 512
      %20 = vsyncadd [#allocation4], %s19
      %s21 = sshll.u32 [#allocation3], 4
      %s22 = int_to_ptr.vmem [resolvable:$true] %s21
      %27 = dma.hbm_to_vmem [thread:$0]  %s0, 512, %s22, [#allocation4], 128, 128, 8
    $region5: #{parallel_scaling_block_forward.1} parent=1 // pred_fallthru
      _
    // Predicated region
    $region6: #{parallel_scaling_block_forward.1} parent=1 // pred_check
      _
    $region7: #{parallel_scaling_block_forward.1} parent=1 // pred_check_branch
      %29 = sbr.rel (0) target = $region9
    $region8: #{parallel_scaling_block_forward.1} parent=1 // pred_region
      _
    $region9: #{parallel_scaling_block_forward.1} parent=1 // pred_fallthru
      _
    // Predicated region
    $region10: #{parallel_scaling_block_forward.1} parent=1 // pred_check
      _
    $region11: #{parallel_scaling_block_forward.1} parent=1 // pred_check_branch
      %31 = sbr.rel (0) target = $region13
    $region12: #{parallel_scaling_block_forward.1} parent=1 // pred_region
      _
    $region13: #{parallel_scaling_block_forward.1} parent=1 // pred_fallthru
      _
    // Predicated region
    $region14: #{parallel_scaling_block_forward.1} parent=1 // pred_check
      _
    $region15: #{parallel_scaling_block_forward.1} parent=1 // pred_check_branch
      %33 = sbr.rel (0) target = $region17
    $region16: #{parallel_scaling_block_forward.1} parent=1 // pred_region
      %s35 = ssub.s32 7168, 7168
      %36 = vsyncadd [#allocation7], %s35
      %s37 = sshll.u32 [#allocation6], 4
      %s38 = int_to_ptr.vmem [resolvable:$true] %s37
      %43 = dma.hbm_to_vmem [thread:$0]  %s3, 7168, %s38, [#allocation7], 448, 448, 28
    $region17: #{parallel_scaling_block_forward.1} parent=1 // pred_fallthru
      _
    // Predicated region
    $region18: #{parallel_scaling_block_forward.1} parent=1 // pred_check
      _
    $region19: #{parallel_scaling_block_forward.1} parent=1 // pred_check_branch
      %45 = sbr.rel (0) target = $region21
    $region20: #{parallel_scaling_block_forward.1} parent=1 // pred_region
      %s47 = ssub.s32 112, 112
      %48 = vsyncadd [#allocation7], %s47
      %s50 = sshll.u32 [#allocation8], 4
      %s51 = int_to_ptr.vmem [resolvable:$true] %s50
      %53 = dma.hbm_to_vmem [thread:$0]  %s4, 112, %s51, [#allocation7]
    $region21: #{parallel_scaling_block_forward.1} parent=1 // pred_fallthru
      _
    // Predicated region
    $region22: #{parallel_scaling_block_forward.1} parent=1 // pred_check
      _
    $region23: #{parallel_scaling_block_forward.1} parent=1 // pred_check_branch
      %55 = sbr.rel (0) target = $region25
    $region24: #{parallel_scaling_block_forward.1} parent=1 // pred_region
      %s57 = ssub.s32 5120, 5120
      %58 = vsyncadd [#allocation10], %s57
      %s59 = sshll.u32 [#allocation9], 4
      %s60 = int_to_ptr.vmem [resolvable:$true] %s59
      %65 = dma.hbm_to_vmem [thread:$0]  %s5, 5120, %s60, [#allocation10], 64, 64, 4
    $region25: #{parallel_scaling_block_forward.1} parent=1 // pred_fallthru
      _
    // Predicated region
    $region26: #{parallel_scaling_block_forward.1} parent=1 // pred_check
      _
    $region27: #{parallel_scaling_block_forward.1} parent=1 // pred_check_branch
      %67 = sbr.rel (0) target = $region29
    $region28: #{parallel_scaling_block_forward.1} parent=1 // pred_region
      _
    $region29: #{parallel_scaling_block_forward.1} parent=1 // pred_fallthru
      _
    // Predicated region
    $region30: #{parallel_scaling_block_forward.1} parent=1 // pred_check
      _
    $region31: #{parallel_scaling_block_forward.1} parent=1 // pred_check_branch
      %69 = sbr.rel (0) target = $region33
    $region32: #{parallel_scaling_block_forward.1} parent=1 // pred_region
      %70 = dma.done [#allocation4], 512
    $region33: #{parallel_scaling_block_forward.1} parent=1 // pred_fallthru
      _
    // Predicated region
    $region34: #{parallel_scaling_block_forward.1} parent=1 // pred_check
      _
    $region35: #{parallel_scaling_block_forward.1} parent=1 // pred_check_branch
      %72 = sbr.rel (0) target = $region37
    $region36: #{parallel_scaling_block_forward.1} parent=1 // pred_region
      %73 = dma.done [#allocation7], 7168
    $region37: #{parallel_scaling_block_forward.1} parent=1 // pred_fallthru
      _
    // Predicated region
    $region38: #{parallel_scaling_block_forward.1} parent=1 // pred_check
      _
    $region39: #{parallel_scaling_block_forward.1} parent=1 // pred_check_branch
      %75 = sbr.rel (0) target = $region41
    $region40: #{parallel_scaling_block_forward.1} parent=1 // pred_region
      %76 = dma.done [#allocation7], 112
    $region41: #{parallel_scaling_block_forward.1} parent=1 // pred_fallthru
      _
    // Predicated region
    $region42: #{parallel_scaling_block_forward.1} parent=1 // pred_check
      _
    $region43: #{parallel_scaling_block_forward.1} parent=1 // pred_check_branch
      %78 = sbr.rel (0) target = $region45
    $region44: #{parallel_scaling_block_forward.1} parent=1 // pred_region
      %79 = dma.done [#allocation10], 5120
    $region45: #{parallel_scaling_block_forward.1} parent=1 // pred_fallthru
      _
    %v81 = vld [vmem:[#allocation3] sm:$0xff]
    %v82 = vld [vmem:[#allocation3 + $0x8] sm:$0xff]
    %v83 = vld [vmem:[#allocation3 + $0x10] sm:$0xff]
    %v84 = vld [vmem:[#allocation3 + $0x18] sm:$0xff]
    %85 = vadd.xlane.f32.xlu0 %v81
    %v86 = vpop.xlane.xlu0 %85
    %87 = vadd.xlane.f32.xlu0 %v82
    %v88 = vpop.xlane.xlu0 %87
    %89 = vadd.xlane.f32.xlu0 %v83
    %v90 = vpop.xlane.xlu0 %89
    %91 = vadd.xlane.f32.xlu0 %v84
    %v92 = vpop.xlane.xlu0 %91
    %v93 = vrcp.pop 128.0
    %v94 = vmul.f32 %v86, %v93
    %v95 = vmul.f32 %v88, %v93
    %v96 = vmul.f32 %v90, %v93
    %v97 = vmul.f32 %v92, %v93
    %v98 = vsub.f32 %v81, %v94
    %v99 = vsub.f32 %v82, %v95
    %v100 = vsub.f32 %v83, %v96
    %v101 = vsub.f32 %v84, %v97
    %v102 = vmul.f32 %v98, %v98
    %v103 = vmul.f32 %v99, %v99
    %v104 = vmul.f32 %v100, %v100
    %v105 = vmul.f32 %v101, %v101
    %106 = vadd.xlane.f32.xlu0 %v102
    %v107 = vpop.xlane.xlu0 %106
    %108 = vadd.xlane.f32.xlu0 %v103
    %v109 = vpop.xlane.xlu0 %108
    %110 = vadd.xlane.f32.xlu0 %v104
    %v111 = vpop.xlane.xlu0 %110
    %112 = vadd.xlane.f32.xlu0 %v105
    %v113 = vpop.xlane.xlu0 %112
    %v114 = vmul.f32 %v107, %v93
    %v115 = vmul.f32 %v109, %v93
    %v116 = vmul.f32 %v111, %v93
    %v117 = vmul.f32 %v113, %v93
    %v118 = vadd.f32 %v114, 1e-05
    %v119 = vadd.f32 %v115, 1e-05
    %v120 = vadd.f32 %v116, 1e-05
    %v121 = vadd.f32 %v117, 1e-05
    %v122 = vrsqrt.pop %v118
    %v123 = vrsqrt.pop %v119
    %v124 = vrsqrt.pop %v120
    %v125 = vrsqrt.pop %v121
    %v126 = vmul.f32 %v98, %v122
    %v127 = vmul.f32 %v99, %v123
    %v128 = vmul.f32 %v100, %v124
    %v129 = vmul.f32 %v101, %v125
    %v130 = vld [vmem:[%s1] sm:$0x1]
    %v132 = vlaneseq
    %v133 = vshrl.u32 %v132, 7
    %v134 = vsub.s32 0, %v133
    %v135 = vrot.slane %v130, %v134
    %v137 = vmul.f32 %v126, %v135
    %v138 = vmul.f32 %v127, %v135
    %v139 = vmul.f32 %v128, %v135
    %v140 = vmul.f32 %v129, %v135
    %v141 = vld [vmem:[%s2] sm:$0x1]
    %v143 = vlaneseq
    %v144 = vshrl.u32 %v143, 7
    %v145 = vsub.s32 0, %v144
    %v146 = vrot.slane %v141, %v145
    %v148 = vadd.f32 %v137, %v146
    %v149 = vadd.f32 %v138, %v146
    %v150 = vadd.f32 %v139, %v146
    %v151 = vadd.f32 %v140, %v146
    %v152 = vpack.c.bf16 %v149, %v148
    %v153 = vpack.c.bf16 %v151, %v150
    %v154 = vld [vmem:[#allocation6] sm:$0xff]
    %v155 = vld [vmem:[#allocation6 + $0x8] sm:$0xff]
    %v156 = vld [vmem:[#allocation6 + $0x10] sm:$0xff]
    %v157 = vld [vmem:[#allocation6 + $0x18] sm:$0xf]
    %v158 = vld [vmem:[#allocation6 + $0x1c] sm:$0xff]
    %v159 = vld [vmem:[#allocation6 + $0x24] sm:$0xff]
    %v160 = vld [vmem:[#allocation6 + $0x2c] sm:$0xff]
    %v161 = vld [vmem:[#allocation6 + $0x34] sm:$0xf]
    %v162 = vld [vmem:[#allocation6 + $0x38] sm:$0xff]
    %v163 = vld [vmem:[#allocation6 + $0x40] sm:$0xff]
    %v164 = vld [vmem:[#allocation6 + $0x48] sm:$0xff]
    %v165 = vld [vmem:[#allocation6 + $0x50] sm:$0xf]
    %v166 = vld [vmem:[#allocation6 + $0x54] sm:$0xff]
    %v167 = vld [vmem:[#allocation6 + $0x5c] sm:$0xff]
    %v168 = vld [vmem:[#allocation6 + $0x64] sm:$0xff]
    %v169 = vld [vmem:[#allocation6 + $0x6c] sm:$0xf]
    %v170 = vld [vmem:[#allocation6 + $0x70] sm:$0xff]
    %v171 = vld [vmem:[#allocation6 + $0x78] sm:$0xff]
    %v172 = vld [vmem:[#allocation6 + $0x80] sm:$0xff]
    %v173 = vld [vmem:[#allocation6 + $0x88] sm:$0xf]
    %v174 = vld [vmem:[#allocation6 + $0x8c] sm:$0xff]
    %v175 = vld [vmem:[#allocation6 + $0x94] sm:$0xff]
    %v176 = vld [vmem:[#allocation6 + $0x9c] sm:$0xff]
    %v177 = vld [vmem:[#allocation6 + $0xa4] sm:$0xf]
    %v178 = vld [vmem:[#allocation6 + $0xa8] sm:$0xff]
    %v179 = vld [vmem:[#allocation6 + $0xb0] sm:$0xff]
    %v180 = vld [vmem:[#allocation6 + $0xb8] sm:$0xff]
    %v181 = vld [vmem:[#allocation6 + $0xc0] sm:$0xf]
    %v182 = vld [vmem:[#allocation6 + $0xc4] sm:$0xff]
    %v183 = vld [vmem:[#allocation6 + $0xcc] sm:$0xff]
    %v184 = vld [vmem:[#allocation6 + $0xd4] sm:$0xff]
    %v185 = vld [vmem:[#allocation6 + $0xdc] sm:$0xf]
    %v186 = vld [vmem:[#allocation6 + $0xe0] sm:$0xff]
    %v187 = vld [vmem:[#allocation6 + $0xe8] sm:$0xff]
    %v188 = vld [vmem:[#allocation6 + $0xf0] sm:$0xff]
    %v189 = vld [vmem:[#allocation6 + $0xf8] sm:$0xf]
    %v190 = vld [vmem:[#allocation6 + $0xfc] sm:$0xff]
    %v191 = vld [vmem:[#allocation6 + $0x104] sm:$0xff]
    %v192 = vld [vmem:[#allocation6 + $0x10c] sm:$0xff]
    %v193 = vld [vmem:[#allocation6 + $0x114] sm:$0xf]
    %v194 = vld [vmem:[#allocation6 + $0x118] sm:$0xff]
    %v195 = vld [vmem:[#allocation6 + $0x120] sm:$0xff]
    %v196 = vld [vmem:[#allocation6 + $0x128] sm:$0xff]
    %v197 = vld [vmem:[#allocation6 + $0x130] sm:$0xf]
    %v198 = vld [vmem:[#allocation6 + $0x134] sm:$0xff]
    %v199 = vld [vmem:[#allocation6 + $0x13c] sm:$0xff]
    %v200 = vld [vmem:[#allocation6 + $0x144] sm:$0xff]
    %v201 = vld [vmem:[#allocation6 + $0x14c] sm:$0xf]
    %v202 = vld [vmem:[#allocation6 + $0x150] sm:$0xff]
    %v203 = vld [vmem:[#allocation6 + $0x158] sm:$0xff]
    %v204 = vld [vmem:[#allocation6 + $0x160] sm:$0xff]
    %v205 = vld [vmem:[#allocation6 + $0x168] sm:$0xf]
    %v206 = vld [vmem:[#allocation6 + $0x16c] sm:$0xff]
    %v207 = vld [vmem:[#allocation6 + $0x174] sm:$0xff]
    %v208 = vld [vmem:[#allocation6 + $0x17c] sm:$0xff]
    %v209 = vld [vmem:[#allocation6 + $0x184] sm:$0xf]
    %v210 = vld [vmem:[#allocation6 + $0x188] sm:$0xff]
    %v211 = vld [vmem:[#allocation6 + $0x190] sm:$0xff]
    %v212 = vld [vmem:[#allocation6 + $0x198] sm:$0xff]
    %v213 = vld [vmem:[#allocation6 + $0x1a0] sm:$0xf]
    %v214 = vld [vmem:[#allocation6 + $0x1a4] sm:$0xff]
    %v215 = vld [vmem:[#allocation6 + $0x1ac] sm:$0xff]
    %v216 = vld [vmem:[#allocation6 + $0x1b4] sm:$0xff]
    %v217 = vld [vmem:[#allocation6 + $0x1bc] sm:$0xf]
    %v218 = vld [vmem:[#allocation8] sm:$0xff]
    %v220 = vlaneseq
    %v221 = vshrl.u32 %v220, 7
    %v222 = vsub.s32 0, %v221
    %v223 = vrot.slane %v218, %v222
    %v224 = vlaneseq
    %v225 = vshrl.u32 %v224, 7
    %v226 = vsub.s32 1, %v225
    %v227 = vrot.slane %v218, %v226
    %v228 = vlaneseq
    %v229 = vshrl.u32 %v228, 7
    %v230 = vsub.s32 2, %v229
    %v231 = vrot.slane %v218, %v230
    %v232 = vlaneseq
    %v233 = vshrl.u32 %v232, 7
    %v234 = vsub.s32 3, %v233
    %v235 = vrot.slane %v218, %v234
    %v236 = vlaneseq
    %v237 = vshrl.u32 %v236, 7
    %v238 = vsub.s32 4, %v237
    %v239 = vrot.slane %v218, %v238
    %v240 = vlaneseq
    %v241 = vshrl.u32 %v240, 7
    %v242 = vsub.s32 5, %v241
    %v243 = vrot.slane %v218, %v242
    %v244 = vlaneseq
    %v245 = vshrl.u32 %v244, 7
    %v246 = vsub.s32 6, %v245
    %v247 = vrot.slane %v218, %v246
    %v319 = vunpack.c.l.b16 %v154
    %v320 = vunpack.c.h.b16 %v154
    %v321 = vunpack.c.l.b16 %v155
    %v322 = vunpack.c.h.b16 %v155
    %v323 = vunpack.c.l.b16 %v156
    %v324 = vunpack.c.h.b16 %v156
    %v325 = vunpack.c.l.b16 %v157
    %v326 = vunpack.c.l.b16 %v158
    %v327 = vunpack.c.h.b16 %v158
    %v328 = vunpack.c.l.b16 %v159
    %v329 = vunpack.c.h.b16 %v159
    %v330 = vunpack.c.l.b16 %v160
    %v331 = vunpack.c.h.b16 %v160
    %v332 = vunpack.c.l.b16 %v161
    %v333 = vunpack.c.l.b16 %v162
    %v334 = vunpack.c.h.b16 %v162
    %v335 = vunpack.c.l.b16 %v163
    %v336 = vunpack.c.h.b16 %v163
    %v337 = vunpack.c.l.b16 %v164
    %v338 = vunpack.c.h.b16 %v164
    %v339 = vunpack.c.l.b16 %v165
    %v340 = vunpack.c.l.b16 %v166
    %v341 = vunpack.c.h.b16 %v166
    %v342 = vunpack.c.l.b16 %v167
    %v343 = vunpack.c.h.b16 %v167
    %v344 = vunpack.c.l.b16 %v168
    %v345 = vunpack.c.h.b16 %v168
    %v346 = vunpack.c.l.b16 %v169
    %v347 = vunpack.c.l.b16 %v170
    %v348 = vunpack.c.h.b16 %v170
    %v349 = vunpack.c.l.b16 %v171
    %v350 = vunpack.c.h.b16 %v171
    %v351 = vunpack.c.l.b16 %v172
    %v352 = vunpack.c.h.b16 %v172
    %v353 = vunpack.c.l.b16 %v173
    %v354 = vunpack.c.l.b16 %v174
    %v355 = vunpack.c.h.b16 %v174
    %v356 = vunpack.c.l.b16 %v175
    %v357 = vunpack.c.h.b16 %v175
    %v358 = vunpack.c.l.b16 %v176
    %v359 = vunpack.c.h.b16 %v176
    %v360 = vunpack.c.l.b16 %v177
    %v361 = vunpack.c.l.b16 %v178
    %v362 = vunpack.c.h.b16 %v178
    %v363 = vunpack.c.l.b16 %v179
    %v364 = vunpack.c.h.b16 %v179
    %v365 = vunpack.c.l.b16 %v180
    %v366 = vunpack.c.h.b16 %v180
    %v367 = vunpack.c.l.b16 %v181
    %v368 = vunpack.c.l.b16 %v182
    %v369 = vunpack.c.h.b16 %v182
    %v370 = vunpack.c.l.b16 %v183
    %v371 = vunpack.c.h.b16 %v183
    %v372 = vunpack.c.l.b16 %v184
    %v373 = vunpack.c.h.b16 %v184
    %v374 = vunpack.c.l.b16 %v185
    %v375 = vunpack.c.l.b16 %v186
    %v376 = vunpack.c.h.b16 %v186
    %v377 = vunpack.c.l.b16 %v187
    %v378 = vunpack.c.h.b16 %v187
    %v379 = vunpack.c.l.b16 %v188
    %v380 = vunpack.c.h.b16 %v188
    %v381 = vunpack.c.l.b16 %v189
    %v382 = vunpack.c.l.b16 %v190
    %v383 = vunpack.c.h.b16 %v190
    %v384 = vunpack.c.l.b16 %v191
    %v385 = vunpack.c.h.b16 %v191
    %v386 = vunpack.c.l.b16 %v192
    %v387 = vunpack.c.h.b16 %v192
    %v388 = vunpack.c.l.b16 %v193
    %v389 = vunpack.c.l.b16 %v194
    %v390 = vunpack.c.h.b16 %v194
    %v391 = vunpack.c.l.b16 %v195
    %v392 = vunpack.c.h.b16 %v195
    %v393 = vunpack.c.l.b16 %v196
    %v394 = vunpack.c.h.b16 %v196
    %v395 = vunpack.c.l.b16 %v197
    %v396 = vunpack.c.l.b16 %v198
    %v397 = vunpack.c.h.b16 %v198
    %v398 = vunpack.c.l.b16 %v199
    %v399 = vunpack.c.h.b16 %v199
    %v400 = vunpack.c.l.b16 %v200
    %v401 = vunpack.c.h.b16 %v200
    %v402 = vunpack.c.l.b16 %v201
    %v403 = vunpack.c.l.b16 %v202
    %v404 = vunpack.c.h.b16 %v202
    %v405 = vunpack.c.l.b16 %v203
    %v406 = vunpack.c.h.b16 %v203
    %v407 = vunpack.c.l.b16 %v204
    %v408 = vunpack.c.h.b16 %v204
    %v409 = vunpack.c.l.b16 %v205
    %v410 = vunpack.c.l.b16 %v206
    %v411 = vunpack.c.h.b16 %v206
    %v412 = vunpack.c.l.b16 %v207
    %v413 = vunpack.c.h.b16 %v207
    %v414 = vunpack.c.l.b16 %v208
    %v415 = vunpack.c.h.b16 %v208
    %v416 = vunpack.c.l.b16 %v209
    %v417 = vunpack.c.l.b16 %v210
    %v418 = vunpack.c.h.b16 %v210
    %v419 = vunpack.c.l.b16 %v211
    %v420 = vunpack.c.h.b16 %v211
    %v421 = vunpack.c.l.b16 %v212
    %v422 = vunpack.c.h.b16 %v212
    %v423 = vunpack.c.l.b16 %v213
    %v424 = vunpack.c.l.b16 %v214
    %v425 = vunpack.c.h.b16 %v214
    %v426 = vunpack.c.l.b16 %v215
    %v427 = vunpack.c.h.b16 %v215
    %v428 = vunpack.c.l.b16 %v216
    %v429 = vunpack.c.h.b16 %v216
    %v430 = vunpack.c.l.b16 %v217
    %v431 = vpack.c.b16 %v326, %v319
    %v432 = vpack.c.b16 %v327, %v320
    %v433 = vpack.c.b16 %v328, %v321
    %v434 = vpack.c.b16 %v329, %v322
    %v435 = vpack.c.b16 %v330, %v323
    %v436 = vpack.c.b16 %v331, %v324
    %v437 = vpack.c.b16 %v332, %v325
    %v438 = vpack.c.b16 %v340, %v333
    %v439 = vpack.c.b16 %v341, %v334
    %v440 = vpack.c.b16 %v342, %v335
    %v441 = vpack.c.b16 %v343, %v336
    %v442 = vpack.c.b16 %v344, %v337
    %v443 = vpack.c.b16 %v345, %v338
    %v444 = vpack.c.b16 %v346, %v339
    %v445 = vpack.c.b16 %v354, %v347
    %v446 = vpack.c.b16 %v355, %v348
    %v447 = vpack.c.b16 %v356, %v349
    %v448 = vpack.c.b16 %v357, %v350
    %v449 = vpack.c.b16 %v358, %v351
    %v450 = vpack.c.b16 %v359, %v352
    %v451 = vpack.c.b16 %v360, %v353
    %v452 = vpack.c.b16 %v368, %v361
    %v453 = vpack.c.b16 %v369, %v362
    %v454 = vpack.c.b16 %v370, %v363
    %v455 = vpack.c.b16 %v371, %v364
    %v456 = vpack.c.b16 %v372, %v365
    %v457 = vpack.c.b16 %v373, %v366
    %v458 = vpack.c.b16 %v374, %v367
    %v459 = vpack.c.b16 %v382, %v375
    %v460 = vpack.c.b16 %v383, %v376
    %v461 = vpack.c.b16 %v384, %v377
    %v462 = vpack.c.b16 %v385, %v378
    %v463 = vpack.c.b16 %v386, %v379
    %v464 = vpack.c.b16 %v387, %v380
    %v465 = vpack.c.b16 %v388, %v381
    %v466 = vpack.c.b16 %v396, %v389
    %v467 = vpack.c.b16 %v397, %v390
    %v468 = vpack.c.b16 %v398, %v391
    %v469 = vpack.c.b16 %v399, %v392
    %v470 = vpack.c.b16 %v400, %v393
    %v471 = vpack.c.b16 %v401, %v394
    %v472 = vpack.c.b16 %v402, %v395
    %v473 = vpack.c.b16 %v410, %v403
    %v474 = vpack.c.b16 %v411, %v404
    %v475 = vpack.c.b16 %v412, %v405
    %v476 = vpack.c.b16 %v413, %v406
    %v477 = vpack.c.b16 %v414, %v407
    %v478 = vpack.c.b16 %v415, %v408
    %v479 = vpack.c.b16 %v416, %v409
    %v480 = vpack.c.b16 %v424, %v417
    %v481 = vpack.c.b16 %v425, %v418
    %v482 = vpack.c.b16 %v426, %v419
    %v483 = vpack.c.b16 %v427, %v420
    %v484 = vpack.c.b16 %v428, %v421
    %v485 = vpack.c.b16 %v429, %v422
    %v486 = vpack.c.b16 %v430, %v423
    %543 = vmatprep.subr.bf16.mxu0 %v481
    %544 = vmatpush1.bf16.msra.mxu0 %v480
    %545 = vmatprep.subr.bf16.mxu0 %v474
    %546 = vmatpush1.bf16.msra.mxu0 %v473
    %547 = vmatprep.subr.bf16.mxu0 %v467
    %548 = vmatpush1.bf16.msra.mxu0 %v466
    %549 = vmatprep.subr.bf16.mxu0 %v460
    %550 = vmatpush1.bf16.msra.mxu0 %v459
    %551 = vmatprep.subr.bf16.mxu0 %v453
    %552 = vmatpush1.bf16.msra.mxu0 %v452
    %553 = vmatprep.subr.bf16.mxu0 %v446
    %554 = vmatpush1.bf16.msra.mxu0 %v445
    %555 = vmatprep.subr.bf16.mxu0 %v439
    %556 = vmatpush1.bf16.msra.mxu0 %v438
    %557 = vmatprep.subr.bf16.mxu0 %v432
    %558 = vmatpush1.bf16.msra.mxu0 %v431
    %559 = vmatprep.subr.bf16.mxu0 0
    %560 = vmatpush2.bf16.msra.mxu0 0
    %561 = vmatprep.subr.bf16.mxu0 0
    %562 = vmatpush2.bf16.msra.mxu0 0
    %563 = vmatprep.subr.bf16.mxu0 0
    %564 = vmatpush2.bf16.msra.mxu0 0
    %565 = vmatprep.subr.bf16.mxu0 0
    %566 = vmatpush2.bf16.msra.mxu0 0
    %567 = vmatprep.subr.bf16.mxu0 0
    %568 = vmatpush2.bf16.msra.mxu0 0
    %569 = vmatprep.subr.bf16.mxu0 0
    %570 = vmatpush2.bf16.msra.mxu0 0
    %571 = vmatprep.subr.bf16.mxu0 0
    %572 = vmatpush2.bf16.msra.mxu0 0
    %573 = vmatprep.subr.bf16.mxu0 0
    %574 = vmatpush2.bf16.msra.mxu0 0
    %575 = vmatprep.mubr.bf16.mxu0 0
    %576 = vmatmul.mubr.bf16.gmra.mxu0 %v152
    %v577 = vpop.f32.mrf.mxu0
    %v578 = vadd.f32 %v223, %v577
    %v579 = vpop.f32.mrf.mxu0
    %v580 = vadd.f32 %v227, %v579
    %v581 = vpop.f32.mrf.mxu0
    %v582 = vadd.f32 %v223, %v581
    %v583 = vpop.f32.mrf.mxu0
    %v584 = vadd.f32 %v227, %v583
    %585 = vmatprep.mubr.bf16.mxu0 0
    %586 = vmatmul.mubr.bf16.gmra.mxu0 %v153
    %v587 = vpop.f32.mrf.mxu0
    %v588 = vadd.f32 %v223, %v587
    %v589 = vpop.f32.mrf.mxu0
    %v590 = vadd.f32 %v227, %v589
    %v591 = vpop.f32.mrf.mxu0
    %v592 = vadd.f32 %v223, %v591
    %v593 = vpop.f32.mrf.mxu0
    %v594 = vadd.f32 %v227, %v593
    %595 = vdwg.mxu0
    %596 = vmatprep.subr.bf16.mxu0 %v483
    %597 = vmatpush1.bf16.msra.mxu0 %v482
    %598 = vmatprep.subr.bf16.mxu0 %v476
    %599 = vmatpush1.bf16.msra.mxu0 %v475
    %600 = vmatprep.subr.bf16.mxu0 %v469
    %601 = vmatpush1.bf16.msra.mxu0 %v468
    %602 = vmatprep.subr.bf16.mxu0 %v462
    %603 = vmatpush1.bf16.msra.mxu0 %v461
    %604 = vmatprep.subr.bf16.mxu0 %v455
    %605 = vmatpush1.bf16.msra.mxu0 %v454
    %606 = vmatprep.subr.bf16.mxu0 %v448
    %607 = vmatpush1.bf16.msra.mxu0 %v447
    %608 = vmatprep.subr.bf16.mxu0 %v441
    %609 = vmatpush1.bf16.msra.mxu0 %v440
    %610 = vmatprep.subr.bf16.mxu0 %v434
    %611 = vmatpush1.bf16.msra.mxu0 %v433
    %612 = vmatprep.subr.bf16.mxu0 0
    %613 = vmatpush2.bf16.msra.mxu0 0
    %614 = vmatprep.subr.bf16.mxu0 0
    %615 = vmatpush2.bf16.msra.mxu0 0
    %616 = vmatprep.subr.bf16.mxu0 0
    %617 = vmatpush2.bf16.msra.mxu0 0
    %618 = vmatprep.subr.bf16.mxu0 0
    %619 = vmatpush2.bf16.msra.mxu0 0
    %620 = vmatprep.subr.bf16.mxu0 0
    %621 = vmatpush2.bf16.msra.mxu0 0
    %622 = vmatprep.subr.bf16.mxu0 0
    %623 = vmatpush2.bf16.msra.mxu0 0
    %624 = vmatprep.subr.bf16.mxu0 0
    %625 = vmatpush2.bf16.msra.mxu0 0
    %626 = vmatprep.subr.bf16.mxu0 0
    %627 = vmatpush2.bf16.msra.mxu0 0
    %628 = vmatprep.mubr.bf16.mxu0 0
    %629 = vmatmul.mubr.bf16.gmra.mxu0 %v152
    %v630 = vpop.f32.mrf.mxu0
    %v631 = vadd.f32 %v231, %v630
    %v632 = vpop.f32.mrf.mxu0
    %v633 = vadd.f32 %v235, %v632
    %v634 = vpop.f32.mrf.mxu0
    %v635 = vadd.f32 %v231, %v634
    %v636 = vpop.f32.mrf.mxu0
    %v637 = vadd.f32 %v235, %v636
    %638 = vmatprep.mubr.bf16.mxu0 0
    %639 = vmatmul.mubr.bf16.gmra.mxu0 %v153
    %v640 = vpop.f32.mrf.mxu0
    %v641 = vadd.f32 %v231, %v640
    %v642 = vpop.f32.mrf.mxu0
    %v643 = vadd.f32 %v235, %v642
    %v644 = vpop.f32.mrf.mxu0
    %v645 = vadd.f32 %v231, %v644
    %v646 = vpop.f32.mrf.mxu0
    %v647 = vadd.f32 %v235, %v646
    %648 = vdwg.mxu0
    %649 = vmatprep.subr.bf16.mxu0 %v485
    %650 = vmatpush1.bf16.msra.mxu0 %v484
    %651 = vmatprep.subr.bf16.mxu0 %v478
    %652 = vmatpush1.bf16.msra.mxu0 %v477
    %653 = vmatprep.subr.bf16.mxu0 %v471
    %654 = vmatpush1.bf16.msra.mxu0 %v470
    %655 = vmatprep.subr.bf16.mxu0 %v464
    %656 = vmatpush1.bf16.msra.mxu0 %v463
    %657 = vmatprep.subr.bf16.mxu0 %v457
    %658 = vmatpush1.bf16.msra.mxu0 %v456
    %659 = vmatprep.subr.bf16.mxu0 %v450
    %660 = vmatpush1.bf16.msra.mxu0 %v449
    %661 = vmatprep.subr.bf16.mxu0 %v443
    %662 = vmatpush1.bf16.msra.mxu0 %v442
    %663 = vmatprep.subr.bf16.mxu0 %v436
    %664 = vmatpush1.bf16.msra.mxu0 %v435
    %665 = vmatprep.subr.bf16.mxu0 0
    %666 = vmatpush2.bf16.msra.mxu0 0
    %667 = vmatprep.subr.bf16.mxu0 0
    %668 = vmatpush2.bf16.msra.mxu0 0
    %669 = vmatprep.subr.bf16.mxu0 0
    %670 = vmatpush2.bf16.msra.mxu0 0
    %671 = vmatprep.subr.bf16.mxu0 0
    %672 = vmatpush2.bf16.msra.mxu0 0
    %673 = vmatprep.subr.bf16.mxu0 0
    %674 = vmatpush2.bf16.msra.mxu0 0
    %675 = vmatprep.subr.bf16.mxu0 0
    %676 = vmatpush2.bf16.msra.mxu0 0
    %677 = vmatprep.subr.bf16.mxu0 0
    %678 = vmatpush2.bf16.msra.mxu0 0
    %679 = vmatprep.subr.bf16.mxu0 0
    %680 = vmatpush2.bf16.msra.mxu0 0
    %681 = vmatprep.mubr.bf16.mxu0 0
    %682 = vmatmul.mubr.bf16.gmra.mxu0 %v152
    %v683 = vpop.f32.mrf.mxu0
    %v684 = vadd.f32 %v239, %v683
    %v685 = vpop.f32.mrf.mxu0
    %v686 = vadd.f32 %v243, %v685
    %v687 = vpop.f32.mrf.mxu0
    %v688 = vadd.f32 %v239, %v687
    %v689 = vpop.f32.mrf.mxu0
    %v690 = vadd.f32 %v243, %v689
    %691 = vmatprep.mubr.bf16.mxu0 0
    %692 = vmatmul.mubr.bf16.gmra.mxu0 %v153
    %v693 = vpop.f32.mrf.mxu0
    %v694 = vadd.f32 %v239, %v693
    %v695 = vpop.f32.mrf.mxu0
    %v696 = vadd.f32 %v243, %v695
    %v697 = vpop.f32.mrf.mxu0
    %v698 = vadd.f32 %v239, %v697
    %v699 = vpop.f32.mrf.mxu0
    %v700 = vadd.f32 %v243, %v699
    %701 = vdwg.mxu0
    %702 = vmatprep.subr.bf16.mxu0 0
    %703 = vmatpush1.bf16.msra.mxu0 %v486
    %704 = vmatprep.subr.bf16.mxu0 0
    %705 = vmatpush1.bf16.msra.mxu0 %v479
    %706 = vmatprep.subr.bf16.mxu0 0
    %707 = vmatpush1.bf16.msra.mxu0 %v472
    %708 = vmatprep.subr.bf16.mxu0 0
    %709 = vmatpush1.bf16.msra.mxu0 %v465
    %710 = vmatprep.subr.bf16.mxu0 0
    %711 = vmatpush1.bf16.msra.mxu0 %v458
    %712 = vmatprep.subr.bf16.mxu0 0
    %713 = vmatpush1.bf16.msra.mxu0 %v451
    %714 = vmatprep.subr.bf16.mxu0 0
    %715 = vmatpush1.bf16.msra.mxu0 %v444
    %716 = vmatprep.subr.bf16.mxu0 0
    %717 = vmatpush1.bf16.msra.mxu0 %v437
    %718 = vmatprep.subr.bf16.mxu0 0
    %719 = vmatpush2.bf16.msra.mxu0 0
    %720 = vmatprep.subr.bf16.mxu0 0
    %721 = vmatpush2.bf16.msra.mxu0 0
    %722 = vmatprep.subr.bf16.mxu0 0
    %723 = vmatpush2.bf16.msra.mxu0 0
    %724 = vmatprep.subr.bf16.mxu0 0
    %725 = vmatpush2.bf16.msra.mxu0 0
    %726 = vmatprep.subr.bf16.mxu0 0
    %727 = vmatpush2.bf16.msra.mxu0 0
    %728 = vmatprep.subr.bf16.mxu0 0
    %729 = vmatpush2.bf16.msra.mxu0 0
    %730 = vmatprep.subr.bf16.mxu0 0
    %731 = vmatpush2.bf16.msra.mxu0 0
    %732 = vmatprep.subr.bf16.mxu0 0
    %733 = vmatpush2.bf16.msra.mxu0 0
    %734 = vmatprep.mubr.bf16.mxu0 0
    %735 = vmatmul.mubr.bf16.gmra.mxu0 %v152
    %v736 = vpop.f32.mrf.mxu0
    %v737 = vadd.f32 %v247, %v736
    %v738 = vpop.f32.mrf.mxu0
    %v739 = vpop.f32.mrf.mxu0
    %v740 = vadd.f32 %v247, %v739
    %v741 = vpop.f32.mrf.mxu0
    %742 = vmatprep.mubr.bf16.mxu0 0
    %743 = vmatmul.mubr.bf16.gmra.mxu0 %v153
    %v744 = vpop.f32.mrf.mxu0
    %v745 = vadd.f32 %v247, %v744
    %v746 = vpop.f32.mrf.mxu0
    %v747 = vpop.f32.mrf.mxu0
    %v748 = vadd.f32 %v247, %v747
    %v749 = vpop.f32.mrf.mxu0
    %750 = vdwg.mxu0
    %v751 = vmul.f32 %v578, 0.5
    %v752 = vmul.f32 %v580, 0.5
    %v753 = vmul.f32 %v631, 0.5
    %v754 = vmul.f32 %v633, 0.5
    %v755 = vmul.f32 %v582, 0.5
    %v756 = vmul.f32 %v584, 0.5
    %v757 = vmul.f32 %v635, 0.5
    %v758 = vmul.f32 %v637, 0.5
    %v759 = vmul.f32 %v588, 0.5
    %v760 = vmul.f32 %v590, 0.5
    %v761 = vmul.f32 %v641, 0.5
    %v762 = vmul.f32 %v643, 0.5
    %v763 = vmul.f32 %v592, 0.5
    %v764 = vmul.f32 %v594, 0.5
    %v765 = vmul.f32 %v645, 0.5
    %v766 = vmul.f32 %v647, 0.5
    %v767 = vmul.f32 %v578, 0.70710677
    %v768 = vmul.f32 %v580, 0.70710677
    %v769 = vmul.f32 %v631, 0.70710677
    %v770 = vmul.f32 %v633, 0.70710677
    %v771 = vmul.f32 %v582, 0.70710677
    %v772 = vmul.f32 %v584, 0.70710677
    %v773 = vmul.f32 %v635, 0.70710677
    %v774 = vmul.f32 %v637, 0.70710677
    %v775 = vmul.f32 %v588, 0.70710677
    %v776 = vmul.f32 %v590, 0.70710677
    %v777 = vmul.f32 %v641, 0.70710677
    %v778 = vmul.f32 %v643, 0.70710677
    %v779 = vmul.f32 %v592, 0.70710677
    %v780 = vmul.f32 %v594, 0.70710677
    %v781 = vmul.f32 %v645, 0.70710677
    %v782 = vmul.f32 %v647, 0.70710677
    %v783 = vand.u32 2147483647, %v767
    %v784 = vand.u32 2147483647, %v768
    %v785 = vand.u32 2147483647, %v769
    %v786 = vand.u32 2147483647, %v770
    %v787 = vand.u32 2147483647, %v771
    %v788 = vand.u32 2147483647, %v772
    %v789 = vand.u32 2147483647, %v773
    %v790 = vand.u32 2147483647, %v774
    %v791 = vand.u32 2147483647, %v775
    %v792 = vand.u32 2147483647, %v776
    %v793 = vand.u32 2147483647, %v777
    %v794 = vand.u32 2147483647, %v778
    %v795 = vand.u32 2147483647, %v779
    %v796 = vand.u32 2147483647, %v780
    %v797 = vand.u32 2147483647, %v781
    %v798 = vand.u32 2147483647, %v782
    %v799 = vmul.f32 %v783, 0.3275911
    %v800 = vmul.f32 %v784, 0.3275911
    %v801 = vmul.f32 %v785, 0.3275911
    %v802 = vmul.f32 %v786, 0.3275911
    %v803 = vmul.f32 %v787, 0.3275911
    %v804 = vmul.f32 %v788, 0.3275911
    %v805 = vmul.f32 %v789, 0.3275911
    %v806 = vmul.f32 %v790, 0.3275911
    %v807 = vmul.f32 %v791, 0.3275911
    %v808 = vmul.f32 %v792, 0.3275911
    %v809 = vmul.f32 %v793, 0.3275911
    %v810 = vmul.f32 %v794, 0.3275911
    %v811 = vmul.f32 %v795, 0.3275911
    %v812 = vmul.f32 %v796, 0.3275911
    %v813 = vmul.f32 %v797, 0.3275911
    %v814 = vmul.f32 %v798, 0.3275911
    %v815 = vadd.f32 %v799, 1.0
    %v816 = vadd.f32 %v800, 1.0
    %v817 = vadd.f32 %v801, 1.0
    %v818 = vadd.f32 %v802, 1.0
    %v819 = vadd.f32 %v803, 1.0
    %v820 = vadd.f32 %v804, 1.0
    %v821 = vadd.f32 %v805, 1.0
    %v822 = vadd.f32 %v806, 1.0
    %v823 = vadd.f32 %v807, 1.0
    %v824 = vadd.f32 %v808, 1.0
    %v825 = vadd.f32 %v809, 1.0
    %v826 = vadd.f32 %v810, 1.0
    %v827 = vadd.f32 %v811, 1.0
    %v828 = vadd.f32 %v812, 1.0
    %v829 = vadd.f32 %v813, 1.0
    %v830 = vadd.f32 %v814, 1.0
    %v831 = vrcp.pop %v815
    %v832 = vrcp.pop %v816
    %v833 = vrcp.pop %v817
    %v834 = vrcp.pop %v818
    %v835 = vrcp.pop %v819
    %v836 = vrcp.pop %v820
    %v837 = vrcp.pop %v821
    %v838 = vrcp.pop %v822
    %v839 = vrcp.pop %v823
    %v840 = vrcp.pop %v824
    %v841 = vrcp.pop %v825
    %v842 = vrcp.pop %v826
    %v843 = vrcp.pop %v827
    %v844 = vrcp.pop %v828
    %v845 = vrcp.pop %v829
    %v846 = vrcp.pop %v830
    %v847 = vmul.f32 %v831, 1.0614054
    %v848 = vmul.f32 %v832, 1.0614054
    %v849 = vmul.f32 %v833, 1.0614054
    %v850 = vmul.f32 %v834, 1.0614054
    %v851 = vmul.f32 %v835, 1.0614054
    %v852 = vmul.f32 %v836, 1.0614054
    %v853 = vmul.f32 %v837, 1.0614054
    %v854 = vmul.f32 %v838, 1.0614054
    %v855 = vmul.f32 %v839, 1.0614054
    %v856 = vmul.f32 %v840, 1.0614054
    %v857 = vmul.f32 %v841, 1.0614054
    %v858 = vmul.f32 %v842, 1.0614054
    %v859 = vmul.f32 %v843, 1.0614054
    %v860 = vmul.f32 %v844, 1.0614054
    %v861 = vmul.f32 %v845, 1.0614054
    %v862 = vmul.f32 %v846, 1.0614054
    %v863 = vadd.f32 %v847, -1.4531521
    %v864 = vadd.f32 %v848, -1.4531521
    %v865 = vadd.f32 %v849, -1.4531521
    %v866 = vadd.f32 %v850, -1.4531521
    %v867 = vadd.f32 %v851, -1.4531521
    %v868 = vadd.f32 %v852, -1.4531521
    %v869 = vadd.f32 %v853, -1.4531521
    %v870 = vadd.f32 %v854, -1.4531521
    %v871 = vadd.f32 %v855, -1.4531521
    %v872 = vadd.f32 %v856, -1.4531521
    %v873 = vadd.f32 %v857, -1.4531521
    %v874 = vadd.f32 %v858, -1.4531521
    %v875 = vadd.f32 %v859, -1.4531521
    %v876 = vadd.f32 %v860, -1.4531521
    %v877 = vadd.f32 %v861, -1.4531521
    %v878 = vadd.f32 %v862, -1.4531521
    %v879 = vmul.f32 %v863, %v831
    %v880 = vmul.f32 %v864, %v832
    %v881 = vmul.f32 %v865, %v833
    %v882 = vmul.f32 %v866, %v834
    %v883 = vmul.f32 %v867, %v835
    %v884 = vmul.f32 %v868, %v836
    %v885 = vmul.f32 %v869, %v837
    %v886 = vmul.f32 %v870, %v838
    %v887 = vmul.f32 %v871, %v839
    %v888 = vmul.f32 %v872, %v840
    %v889 = vmul.f32 %v873, %v841
    %v890 = vmul.f32 %v874, %v842
    %v891 = vmul.f32 %v875, %v843
    %v892 = vmul.f32 %v876, %v844
    %v893 = vmul.f32 %v877, %v845
    %v894 = vmul.f32 %v878, %v846
    %v895 = vadd.f32 %v879, 1.4214138
    %v896 = vadd.f32 %v880, 1.4214138
    %v897 = vadd.f32 %v881, 1.4214138
    %v898 = vadd.f32 %v882, 1.4214138
    %v899 = vadd.f32 %v883, 1.4214138
    %v900 = vadd.f32 %v884, 1.4214138
    %v901 = vadd.f32 %v885, 1.4214138
    %v902 = vadd.f32 %v886, 1.4214138
    %v903 = vadd.f32 %v887, 1.4214138
    %v904 = vadd.f32 %v888, 1.4214138
    %v905 = vadd.f32 %v889, 1.4214138
    %v906 = vadd.f32 %v890, 1.4214138
    %v907 = vadd.f32 %v891, 1.4214138
    %v908 = vadd.f32 %v892, 1.4214138
    %v909 = vadd.f32 %v893, 1.4214138
    %v910 = vadd.f32 %v894, 1.4214138
    %v911 = vmul.f32 %v895, %v831
    %v912 = vmul.f32 %v896, %v832
    %v913 = vmul.f32 %v897, %v833
    %v914 = vmul.f32 %v898, %v834
    %v915 = vmul.f32 %v899, %v835
    %v916 = vmul.f32 %v900, %v836
    %v917 = vmul.f32 %v901, %v837
    %v918 = vmul.f32 %v902, %v838
    %v919 = vmul.f32 %v903, %v839
    %v920 = vmul.f32 %v904, %v840
    %v921 = vmul.f32 %v905, %v841
    %v922 = vmul.f32 %v906, %v842
    %v923 = vmul.f32 %v907, %v843
    %v924 = vmul.f32 %v908, %v844
    %v925 = vmul.f32 %v909, %v845
    %v926 = vmul.f32 %v910, %v846
    %v927 = vadd.f32 %v911, -0.28449672
    %v928 = vadd.f32 %v912, -0.28449672
    %v929 = vadd.f32 %v913, -0.28449672
    %v930 = vadd.f32 %v914, -0.28449672
    %v931 = vadd.f32 %v915, -0.28449672
    %v932 = vadd.f32 %v916, -0.28449672
    %v933 = vadd.f32 %v917, -0.28449672
    %v934 = vadd.f32 %v918, -0.28449672
    %v935 = vadd.f32 %v919, -0.28449672
    %v936 = vadd.f32 %v920, -0.28449672
    %v937 = vadd.f32 %v921, -0.28449672
    %v938 = vadd.f32 %v922, -0.28449672
    %v939 = vadd.f32 %v923, -0.28449672
    %v940 = vadd.f32 %v924, -0.28449672
    %v941 = vadd.f32 %v925, -0.28449672
    %v942 = vadd.f32 %v926, -0.28449672
    %v943 = vmul.f32 %v927, %v831
    %v944 = vmul.f32 %v928, %v832
    %v945 = vmul.f32 %v929, %v833
    %v946 = vmul.f32 %v930, %v834
    %v947 = vmul.f32 %v931, %v835
    %v948 = vmul.f32 %v932, %v836
    %v949 = vmul.f32 %v933, %v837
    %v950 = vmul.f32 %v934, %v838
    %v951 = vmul.f32 %v935, %v839
    %v952 = vmul.f32 %v936, %v840
    %v953 = vmul.f32 %v937, %v841
    %v954 = vmul.f32 %v938, %v842
    %v955 = vmul.f32 %v939, %v843
    %v956 = vmul.f32 %v940, %v844
    %v957 = vmul.f32 %v941, %v845
    %v958 = vmul.f32 %v942, %v846
    %v959 = vadd.f32 %v943, 0.2548296
    %v960 = vadd.f32 %v944, 0.2548296
    %v961 = vadd.f32 %v945, 0.2548296
    %v962 = vadd.f32 %v946, 0.2548296
    %v963 = vadd.f32 %v947, 0.2548296
    %v964 = vadd.f32 %v948, 0.2548296
    %v965 = vadd.f32 %v949, 0.2548296
    %v966 = vadd.f32 %v950, 0.2548296
    %v967 = vadd.f32 %v951, 0.2548296
    %v968 = vadd.f32 %v952, 0.2548296
    %v969 = vadd.f32 %v953, 0.2548296
    %v970 = vadd.f32 %v954, 0.2548296
    %v971 = vadd.f32 %v955, 0.2548296
    %v972 = vadd.f32 %v956, 0.2548296
    %v973 = vadd.f32 %v957, 0.2548296
    %v974 = vadd.f32 %v958, 0.2548296
    %v975 = vmul.f32 %v959, %v831
    %v976 = vmul.f32 %v960, %v832
    %v977 = vmul.f32 %v961, %v833
    %v978 = vmul.f32 %v962, %v834
    %v979 = vmul.f32 %v963, %v835
    %v980 = vmul.f32 %v964, %v836
    %v981 = vmul.f32 %v965, %v837
    %v982 = vmul.f32 %v966, %v838
    %v983 = vmul.f32 %v967, %v839
    %v984 = vmul.f32 %v968, %v840
    %v985 = vmul.f32 %v969, %v841
    %v986 = vmul.f32 %v970, %v842
    %v987 = vmul.f32 %v971, %v843
    %v988 = vmul.f32 %v972, %v844
    %v989 = vmul.f32 %v973, %v845
    %v990 = vmul.f32 %v974, %v846
    %v991 = vsub.f32 0.0, %v783
    %v992 = vsub.f32 0.0, %v784
    %v993 = vsub.f32 0.0, %v785
    %v994 = vsub.f32 0.0, %v786
    %v995 = vsub.f32 0.0, %v787
    %v996 = vsub.f32 0.0, %v788
    %v997 = vsub.f32 0.0, %v789
    %v998 = vsub.f32 0.0, %v790
    %v999 = vsub.f32 0.0, %v791
    %v1000 = vsub.f32 0.0, %v792
    %v1001 = vsub.f32 0.0, %v793
    %v1002 = vsub.f32 0.0, %v794
    %v1003 = vsub.f32 0.0, %v795
    %v1004 = vsub.f32 0.0, %v796
    %v1005 = vsub.f32 0.0, %v797
    %v1006 = vsub.f32 0.0, %v798
    %v1007 = vmul.f32 %v991, %v783
    %v1008 = vmul.f32 %v992, %v784
    %v1009 = vmul.f32 %v993, %v785
    %v1010 = vmul.f32 %v994, %v786
    %v1011 = vmul.f32 %v995, %v787
    %v1012 = vmul.f32 %v996, %v788
    %v1013 = vmul.f32 %v997, %v789
    %v1014 = vmul.f32 %v998, %v790
    %v1015 = vmul.f32 %v999, %v791
    %v1016 = vmul.f32 %v1000, %v792
    %v1017 = vmul.f32 %v1001, %v793
    %v1018 = vmul.f32 %v1002, %v794
    %v1019 = vmul.f32 %v1003, %v795
    %v1020 = vmul.f32 %v1004, %v796
    %v1021 = vmul.f32 %v1005, %v797
    %v1022 = vmul.f32 %v1006, %v798
    %v1023 = vmul.f32 %v1007, 1.442695
    %v1024 = vpow.pop %v1023
    %v1025 = vmul.f32 %v1008, 1.442695
    %v1026 = vpow.pop %v1025
    %v1027 = vmul.f32 %v1009, 1.442695
    %v1028 = vpow.pop %v1027
    %v1029 = vmul.f32 %v1010, 1.442695
    %v1030 = vpow.pop %v1029
    %v1031 = vmul.f32 %v1011, 1.442695
    %v1032 = vpow.pop %v1031
    %v1033 = vmul.f32 %v1012, 1.442695
    %v1034 = vpow.pop %v1033
    %v1035 = vmul.f32 %v1013, 1.442695
    %v1036 = vpow.pop %v1035
    %v1037 = vmul.f32 %v1014, 1.442695
    %v1038 = vpow.pop %v1037
    %v1039 = vmul.f32 %v1015, 1.442695
    %v1040 = vpow.pop %v1039
    %v1041 = vmul.f32 %v1016, 1.442695
    %v1042 = vpow.pop %v1041
    %v1043 = vmul.f32 %v1017, 1.442695
    %v1044 = vpow.pop %v1043
    %v1045 = vmul.f32 %v1018, 1.442695
    %v1046 = vpow.pop %v1045
    %v1047 = vmul.f32 %v1019, 1.442695
    %v1048 = vpow.pop %v1047
    %v1049 = vmul.f32 %v1020, 1.442695
    %v1050 = vpow.pop %v1049
    %v1051 = vmul.f32 %v1021, 1.442695
    %v1052 = vpow.pop %v1051
    %v1053 = vmul.f32 %v1022, 1.442695
    %v1054 = vpow.pop %v1053
    %v1055 = vmul.f32 %v975, %v1024
    %v1056 = vmul.f32 %v976, %v1026
    %v1057 = vmul.f32 %v977, %v1028
    %v1058 = vmul.f32 %v978, %v1030
    %v1059 = vmul.f32 %v979, %v1032
    %v1060 = vmul.f32 %v980, %v1034
    %v1061 = vmul.f32 %v981, %v1036
    %v1062 = vmul.f32 %v982, %v1038
    %v1063 = vmul.f32 %v983, %v1040
    %v1064 = vmul.f32 %v984, %v1042
    %v1065 = vmul.f32 %v985, %v1044
    %v1066 = vmul.f32 %v986, %v1046
    %v1067 = vmul.f32 %v987, %v1048
    %v1068 = vmul.f32 %v988, %v1050
    %v1069 = vmul.f32 %v989, %v1052
    %v1070 = vmul.f32 %v990, %v1054
    %v1071 = vsub.f32 1.0, %v1055
    %v1072 = vsub.f32 1.0, %v1056
    %v1073 = vsub.f32 1.0, %v1057
    %v1074 = vsub.f32 1.0, %v1058
    %v1075 = vsub.f32 1.0, %v1059
    %v1076 = vsub.f32 1.0, %v1060
    %v1077 = vsub.f32 1.0, %v1061
    %v1078 = vsub.f32 1.0, %v1062
    %v1079 = vsub.f32 1.0, %v1063
    %v1080 = vsub.f32 1.0, %v1064
    %v1081 = vsub.f32 1.0, %v1065
    %v1082 = vsub.f32 1.0, %v1066
    %v1083 = vsub.f32 1.0, %v1067
    %v1084 = vsub.f32 1.0, %v1068
    %v1085 = vsub.f32 1.0, %v1069
    %v1086 = vsub.f32 1.0, %v1070
    %vm1087 = vcmp.ge.f32.partialorder %v767, 0.0
    %vm1088 = vcmp.ge.f32.partialorder %v768, 0.0
    %vm1089 = vcmp.ge.f32.partialorder %v769, 0.0
    %vm1090 = vcmp.ge.f32.partialorder %v770, 0.0
    %vm1091 = vcmp.ge.f32.partialorder %v771, 0.0
    %vm1092 = vcmp.ge.f32.partialorder %v772, 0.0
    %vm1093 = vcmp.ge.f32.partialorder %v773, 0.0
    %vm1094 = vcmp.ge.f32.partialorder %v774, 0.0
    %vm1095 = vcmp.ge.f32.partialorder %v775, 0.0
    %vm1096 = vcmp.ge.f32.partialorder %v776, 0.0
    %vm1097 = vcmp.ge.f32.partialorder %v777, 0.0
    %vm1098 = vcmp.ge.f32.partialorder %v778, 0.0
    %vm1099 = vcmp.ge.f32.partialorder %v779, 0.0
    %vm1100 = vcmp.ge.f32.partialorder %v780, 0.0
    %vm1101 = vcmp.ge.f32.partialorder %v781, 0.0
    %vm1102 = vcmp.ge.f32.partialorder %v782, 0.0
    %v1103 = vsub.f32 0.0, %v1071
    %v1104 = vsub.f32 0.0, %v1072
    %v1105 = vsub.f32 0.0, %v1073
    %v1106 = vsub.f32 0.0, %v1074
    %v1107 = vsub.f32 0.0, %v1075
    %v1108 = vsub.f32 0.0, %v1076
    %v1109 = vsub.f32 0.0, %v1077
    %v1110 = vsub.f32 0.0, %v1078
    %v1111 = vsub.f32 0.0, %v1079
    %v1112 = vsub.f32 0.0, %v1080
    %v1113 = vsub.f32 0.0, %v1081
    %v1114 = vsub.f32 0.0, %v1082
    %v1115 = vsub.f32 0.0, %v1083
    %v1116 = vsub.f32 0.0, %v1084
    %v1117 = vsub.f32 0.0, %v1085
    %v1118 = vsub.f32 0.0, %v1086
    %v1119 = vsel %vm1087, %v1071, %v1103
    %v1120 = vsel %vm1088, %v1072, %v1104
    %v1121 = vsel %vm1089, %v1073, %v1105
    %v1122 = vsel %vm1090, %v1074, %v1106
    %v1123 = vsel %vm1091, %v1075, %v1107
    %v1124 = vsel %vm1092, %v1076, %v1108
    %v1125 = vsel %vm1093, %v1077, %v1109
    %v1126 = vsel %vm1094, %v1078, %v1110
    %v1127 = vsel %vm1095, %v1079, %v1111
    %v1128 = vsel %vm1096, %v1080, %v1112
    %v1129 = vsel %vm1097, %v1081, %v1113
    %v1130 = vsel %vm1098, %v1082, %v1114
    %v1131 = vsel %vm1099, %v1083, %v1115
    %v1132 = vsel %vm1100, %v1084, %v1116
    %v1133 = vsel %vm1101, %v1085, %v1117
    %v1134 = vsel %vm1102, %v1086, %v1118
    %v1135 = vadd.f32 %v1119, 1.0
    %v1136 = vadd.f32 %v1120, 1.0
    %v1137 = vadd.f32 %v1121, 1.0
    %v1138 = vadd.f32 %v1122, 1.0
    %v1139 = vadd.f32 %v1123, 1.0
    %v1140 = vadd.f32 %v1124, 1.0
    %v1141 = vadd.f32 %v1125, 1.0
    %v1142 = vadd.f32 %v1126, 1.0
    %v1143 = vadd.f32 %v1127, 1.0
    %v1144 = vadd.f32 %v1128, 1.0
    %v1145 = vadd.f32 %v1129, 1.0
    %v1146 = vadd.f32 %v1130, 1.0
    %v1147 = vadd.f32 %v1131, 1.0
    %v1148 = vadd.f32 %v1132, 1.0
    %v1149 = vadd.f32 %v1133, 1.0
    %v1150 = vadd.f32 %v1134, 1.0
    %v1151 = vmul.f32 %v751, %v1135
    %v1152 = vmul.f32 %v752, %v1136
    %v1153 = vmul.f32 %v753, %v1137
    %v1154 = vmul.f32 %v754, %v1138
    %v1155 = vmul.f32 %v755, %v1139
    %v1156 = vmul.f32 %v756, %v1140
    %v1157 = vmul.f32 %v757, %v1141
    %v1158 = vmul.f32 %v758, %v1142
    %v1159 = vmul.f32 %v759, %v1143
    %v1160 = vmul.f32 %v760, %v1144
    %v1161 = vmul.f32 %v761, %v1145
    %v1162 = vmul.f32 %v762, %v1146
    %v1163 = vmul.f32 %v763, %v1147
    %v1164 = vmul.f32 %v764, %v1148
    %v1165 = vmul.f32 %v765, %v1149
    %v1166 = vmul.f32 %v766, %v1150
    %1167 = vst [vmem:[#allocation2 + $0x8] sm:$0xff] %v1151
    %1168 = vst [vmem:[#allocation2 + $0x10] sm:$0xff] %v1152
    %1169 = vst [vmem:[#allocation2 + $0x18] sm:$0xff] %v1153
    %1170 = vst [vmem:[#allocation2 + $0x20] sm:$0xff] %v1154
    %1171 = vst [vmem:[#allocation2 + $0x30] sm:$0xff] %v1155
    %1172 = vst [vmem:[#allocation2 + $0x38] sm:$0xff] %v1156
    %1173 = vst [vmem:[#allocation2 + $0x40] sm:$0xff] %v1157
    %1174 = vst [vmem:[#allocation2 + $0x48] sm:$0xff] %v1158
    %1175 = vst [vmem:[#allocation2 + $0x58] sm:$0xff] %v1159
    %1176 = vst [vmem:[#allocation2 + $0x60] sm:$0xff] %v1160
    %1177 = vst [vmem:[#allocation2 + $0x68] sm:$0xff] %v1161
    %1178 = vst [vmem:[#allocation2 + $0x70] sm:$0xff] %v1162
    %1179 = vst [vmem:[#allocation2 + $0x80] sm:$0xff] %v1163
    %1180 = vst [vmem:[#allocation2 + $0x88] sm:$0xff] %v1164
    %1181 = vst [vmem:[#allocation2 + $0x90] sm:$0xff] %v1165
    %1182 = vst [vmem:[#allocation2 + $0x98] sm:$0xff] %v1166
    %v1183 = vpack.c.bf16 %v688, %v684
    %v1184 = vpack.c.bf16 %v690, %v686
    %v1185 = vpack.c.bf16 %v740, %v737
    %vm1186 = vcmask 261120
    %v1188 = vsel %vm1186, %v1183, 0
    %v1191 = vsel %vm1186, %v1184, 0
    %1193 = vmatprep.subr.bf16.mxu0 0
    %1194 = vmatpush1.bf16.xpose.msra.mxu0 0
    %1195 = vmatprep.subr.bf16.mxu0 0
    %1196 = vmatpush1.bf16.xpose.msra.mxu0 0
    %1197 = vmatprep.subr.bf16.mxu0 0
    %1198 = vmatpush1.bf16.xpose.msra.mxu0 0
    %1199 = vmatprep.subr.bf16.mxu0 0
    %1200 = vmatpush1.bf16.xpose.msra.mxu0 0
    %1201 = vmatprep.subr.bf16.mxu0 0
    %1202 = vmatpush1.bf16.xpose.msra.mxu0 0
    %1203 = vmatprep.subr.bf16.mxu0 0
    %1204 = vmatpush1.bf16.xpose.msra.mxu0 0
    %1205 = vmatprep.subr.bf16.mxu0 0
    %1206 = vmatpush1.bf16.xpose.msra.mxu0 0
    %1207 = vmatprep.subr.bf16.mxu0 0
    %1208 = vmatpush1.bf16.xpose.msra.mxu0 %v1191
    %1209 = vmatprep.subr.bf16.mxu0 0
    %1210 = vmatpush2.bf16.xpose.msra.mxu0 0
    %1211 = vmatprep.subr.bf16.mxu0 0
    %1212 = vmatpush2.bf16.xpose.msra.mxu0 0
    %1213 = vmatprep.subr.bf16.mxu0 0
    %1214 = vmatpush2.bf16.xpose.msra.mxu0 0
    %1215 = vmatprep.subr.bf16.mxu0 0
    %1216 = vmatpush2.bf16.xpose.msra.mxu0 0
    %1217 = vmatprep.subr.bf16.mxu0 0
    %1218 = vmatpush2.bf16.xpose.msra.mxu0 0
    %1219 = vmatprep.subr.bf16.mxu0 0
    %1220 = vmatpush2.bf16.xpose.msra.mxu0 0
    %1221 = vmatprep.subr.bf16.mxu0 0
    %1222 = vmatpush2.bf16.xpose.msra.mxu0 0
    %1223 = vmatprep.subr.bf16.mxu0 0
    %1224 = vmatpush2.bf16.xpose.msra.mxu0 0
    %1225 = vmatprep.mubr.bf16.mxu0 0
    %1226 = vmatmul.mubr.bf16.gmra.mxu0 %v1188
    %v1227 = vpop.f32.mrf.mxu0
    %v1228 = vadd.f32 0.0, %v1227
    %v1229 = vpop.f32.mrf.mxu0
    %v1230 = vpop.f32.mrf.mxu0
    %v1231 = vadd.f32 0.0, %v1230
    %v1232 = vpop.f32.mrf.mxu0
    %1233 = vdwg.mxu0
    %vm1234 = vcmask 130048
    %v1235 = vsel %vm1234, %v1228, -inf
    %1236 = vmax.xlane.f32.xlu0 %v1235
    %v1237 = vpop.xlane.xlu0 %1236
    %v1238 = vsel %vm1234, %v1231, -inf
    %1239 = vmax.xlane.f32.xlu0 %v1238
    %v1240 = vpop.xlane.xlu0 %1239
    %v1241 = vsub.f32 %v1228, %v1237
    %v1242 = vsub.f32 %v1231, %v1240
    %v1243 = vmul.f32 %v1241, 1.442695
    %v1244 = vpow.pop %v1243
    %v1245 = vmul.f32 %v1242, 1.442695
    %v1246 = vpow.pop %v1245
    %v1247 = vsel %vm1234, %v1244, 0.0
    %1248 = vadd.xlane.f32.xlu0 %v1247
    %v1249 = vpop.xlane.xlu0 %1248
    %v1250 = vsel %vm1234, %v1246, 0.0
    %1251 = vadd.xlane.f32.xlu0 %v1250
    %v1252 = vpop.xlane.xlu0 %1251
    %v1253 = vpack.c.bf16 %v1246, %v1244
    %v1255 = vsel %vm1234, %v1253, 0
    %1257 = vmatprep.subr.bf16.mxu0 0
    %1258 = vmatpush1.bf16.msra.mxu0 0
    %1259 = vmatprep.subr.bf16.mxu0 0
    %1260 = vmatpush1.bf16.msra.mxu0 0
    %1261 = vmatprep.subr.bf16.mxu0 0
    %1262 = vmatpush1.bf16.msra.mxu0 0
    %1263 = vmatprep.subr.bf16.mxu0 0
    %1264 = vmatpush1.bf16.msra.mxu0 0
    %1265 = vmatprep.subr.bf16.mxu0 0
    %1266 = vmatpush1.bf16.msra.mxu0 0
    %1267 = vmatprep.subr.bf16.mxu0 0
    %1268 = vmatpush1.bf16.msra.mxu0 0
    %1269 = vmatprep.subr.bf16.mxu0 0
    %1270 = vmatpush1.bf16.msra.mxu0 0
    %1271 = vmatprep.subr.bf16.mxu0 0
    %1272 = vmatpush1.bf16.msra.mxu0 %v1185
    %1273 = vmatprep.subr.bf16.mxu0 0
    %1274 = vmatpush2.bf16.msra.mxu0 0
    %1275 = vmatprep.subr.bf16.mxu0 0
    %1276 = vmatpush2.bf16.msra.mxu0 0
    %1277 = vmatprep.subr.bf16.mxu0 0
    %1278 = vmatpush2.bf16.msra.mxu0 0
    %1279 = vmatprep.subr.bf16.mxu0 0
    %1280 = vmatpush2.bf16.msra.mxu0 0
    %1281 = vmatprep.subr.bf16.mxu0 0
    %1282 = vmatpush2.bf16.msra.mxu0 0
    %1283 = vmatprep.subr.bf16.mxu0 0
    %1284 = vmatpush2.bf16.msra.mxu0 0
    %1285 = vmatprep.subr.bf16.mxu0 0
    %1286 = vmatpush2.bf16.msra.mxu0 0
    %1287 = vmatprep.subr.bf16.mxu0 0
    %1288 = vmatpush2.bf16.msra.mxu0 0
    %1289 = vmatprep.mubr.bf16.mxu0 0
    %1290 = vmatmul.mubr.bf16.gmra.mxu0 %v1255
    %v1291 = vpop.f32.mrf.mxu0
    %v1292 = vadd.f32 0.0, %v1291
    %v1293 = vpop.f32.mrf.mxu0
    %v1294 = vpop.f32.mrf.mxu0
    %v1295 = vadd.f32 0.0, %v1294
    %v1296 = vpop.f32.mrf.mxu0
    %1297 = vdwg.mxu0
    %v1298 = vrcp.pop %v1249
    %v1299 = vrcp.pop %v1252
    %v1300 = vmul.f32 %v1292, %v1298
    %v1301 = vmul.f32 %v1295, %v1299
    %1302 = vst.msk [vmem:[#allocation2] sm:$0xff] %vm1186, %v1300
    %1303 = vst.msk [vmem:[#allocation2 + $0x28] sm:$0xff] %vm1186, %v1301
    %1305 = vrot.lane.b32.xlu0 %v1183, 96
    %v1306 = vpop.permute.xlu0 %1305
    %1308 = vrot.lane.b32.xlu0 %v1184, 96
    %v1309 = vpop.permute.xlu0 %1308
    %v1311 = vsel %vm1186, %v1306, 0
    %v1314 = vsel %vm1186, %v1309, 0
    %1316 = vmatprep.subr.bf16.mxu0 0
    %1317 = vmatpush1.bf16.xpose.msra.mxu0 0
    %1318 = vmatprep.subr.bf16.mxu0 0
    %1319 = vmatpush1.bf16.xpose.msra.mxu0 0
    %1320 = vmatprep.subr.bf16.mxu0 0
    %1321 = vmatpush1.bf16.xpose.msra.mxu0 0
    %1322 = vmatprep.subr.bf16.mxu0 0
    %1323 = vmatpush1.bf16.xpose.msra.mxu0 0
    %1324 = vmatprep.subr.bf16.mxu0 0
    %1325 = vmatpush1.bf16.xpose.msra.mxu0 0
    %1326 = vmatprep.subr.bf16.mxu0 0
    %1327 = vmatpush1.bf16.xpose.msra.mxu0 0
    %1328 = vmatprep.subr.bf16.mxu0 0
    %1329 = vmatpush1.bf16.xpose.msra.mxu0 0
    %1330 = vmatprep.subr.bf16.mxu0 0
    %1331 = vmatpush1.bf16.xpose.msra.mxu0 %v1314
    %1332 = vmatprep.subr.bf16.mxu0 0
    %1333 = vmatpush2.bf16.xpose.msra.mxu0 0
    %1334 = vmatprep.subr.bf16.mxu0 0
    %1335 = vmatpush2.bf16.xpose.msra.mxu0 0
    %1336 = vmatprep.subr.bf16.mxu0 0
    %1337 = vmatpush2.bf16.xpose.msra.mxu0 0
    %1338 = vmatprep.subr.bf16.mxu0 0
    %1339 = vmatpush2.bf16.xpose.msra.mxu0 0
    %1340 = vmatprep.subr.bf16.mxu0 0
    %1341 = vmatpush2.bf16.xpose.msra.mxu0 0
    %1342 = vmatprep.subr.bf16.mxu0 0
    %1343 = vmatpush2.bf16.xpose.msra.mxu0 0
    %1344 = vmatprep.subr.bf16.mxu0 0
    %1345 = vmatpush2.bf16.xpose.msra.mxu0 0
    %1346 = vmatprep.subr.bf16.mxu0 0
    %1347 = vmatpush2.bf16.xpose.msra.mxu0 0
    %1348 = vmatprep.mubr.bf16.mxu0 0
    %1349 = vmatmul.mubr.bf16.gmra.mxu0 %v1311
    %v1350 = vpop.f32.mrf.mxu0
    %v1351 = vadd.f32 0.0, %v1350
    %v1352 = vpop.f32.mrf.mxu0
    %v1353 = vpop.f32.mrf.mxu0
    %v1354 = vadd.f32 0.0, %v1353
    %v1355 = vpop.f32.mrf.mxu0
    %1356 = vdwg.mxu0
    %v1357 = vsel %vm1234, %v1351, -inf
    %1358 = vmax.xlane.f32.xlu0 %v1357
    %v1359 = vpop.xlane.xlu0 %1358
    %v1360 = vsel %vm1234, %v1354, -inf
    %1361 = vmax.xlane.f32.xlu0 %v1360
    %v1362 = vpop.xlane.xlu0 %1361
    %v1363 = vsub.f32 %v1351, %v1359
    %v1364 = vsub.f32 %v1354, %v1362
    %v1365 = vmul.f32 %v1363, 1.442695
    %v1366 = vpow.pop %v1365
    %v1367 = vmul.f32 %v1364, 1.442695
    %v1368 = vpow.pop %v1367
    %v1369 = vsel %vm1234, %v1366, 0.0
    %1370 = vadd.xlane.f32.xlu0 %v1369
    %v1371 = vpop.xlane.xlu0 %1370
    %v1372 = vsel %vm1234, %v1368, 0.0
    %1373 = vadd.xlane.f32.xlu0 %v1372
    %v1374 = vpop.xlane.xlu0 %1373
    %v1375 = vpack.c.bf16 %v1368, %v1366
    %1377 = vrot.lane.b32.xlu0 %v1185, 96
    %v1378 = vpop.permute.xlu0 %1377
    %v1381 = vsel %vm1234, %v1375, 0
    %1383 = vmatprep.subr.bf16.mxu0 0
    %1384 = vmatpush1.bf16.msra.mxu0 0
    %1385 = vmatprep.subr.bf16.mxu0 0
    %1386 = vmatpush1.bf16.msra.mxu0 0
    %1387 = vmatprep.subr.bf16.mxu0 0
    %1388 = vmatpush1.bf16.msra.mxu0 0
    %1389 = vmatprep.subr.bf16.mxu0 0
    %1390 = vmatpush1.bf16.msra.mxu0 0
    %1391 = vmatprep.subr.bf16.mxu0 0
    %1392 = vmatpush1.bf16.msra.mxu0 0
    %1393 = vmatprep.subr.bf16.mxu0 0
    %1394 = vmatpush1.bf16.msra.mxu0 0
    %1395 = vmatprep.subr.bf16.mxu0 0
    %1396 = vmatpush1.bf16.msra.mxu0 0
    %1397 = vmatprep.subr.bf16.mxu0 0
    %1398 = vmatpush1.bf16.msra.mxu0 %v1378
    %1399 = vmatprep.subr.bf16.mxu0 0
    %1400 = vmatpush2.bf16.msra.mxu0 0
    %1401 = vmatprep.subr.bf16.mxu0 0
    %1402 = vmatpush2.bf16.msra.mxu0 0
    %1403 = vmatprep.subr.bf16.mxu0 0
    %1404 = vmatpush2.bf16.msra.mxu0 0
    %1405 = vmatprep.subr.bf16.mxu0 0
    %1406 = vmatpush2.bf16.msra.mxu0 0
    %1407 = vmatprep.subr.bf16.mxu0 0
    %1408 = vmatpush2.bf16.msra.mxu0 0
    %1409 = vmatprep.subr.bf16.mxu0 0
    %1410 = vmatpush2.bf16.msra.mxu0 0
    %1411 = vmatprep.subr.bf16.mxu0 0
    %1412 = vmatpush2.bf16.msra.mxu0 0
    %1413 = vmatprep.subr.bf16.mxu0 0
    %1414 = vmatpush2.bf16.msra.mxu0 0
    %1415 = vmatprep.mubr.bf16.mxu0 0
    %1416 = vmatmul.mubr.bf16.gmra.mxu0 %v1381
    %v1417 = vpop.f32.mrf.mxu0
    %v1418 = vadd.f32 0.0, %v1417
    %v1419 = vpop.f32.mrf.mxu0
    %v1420 = vpop.f32.mrf.mxu0
    %v1421 = vadd.f32 0.0, %v1420
    %v1422 = vpop.f32.mrf.mxu0
    %1423 = vdwg.mxu0
    %v1424 = vrcp.pop %v1371
    %v1425 = vrcp.pop %v1374
    %v1426 = vmul.f32 %v1418, %v1424
    %v1427 = vmul.f32 %v1421, %v1425
    %1430 = vrot.lane.b32.xlu0 %v1426, 32
    %v1431 = vpop.permute.xlu0 %1430
    %1432 = vrot.lane.b32.xlu0 %v1427, 32
    %v1433 = vpop.permute.xlu0 %1432
    %vm1436 = vcmask 523520
    %1437 = vst.msk [vmem:[#allocation2] sm:$0xff] %vm1436, %v1431
    %1438 = vst.msk [vmem:[#allocation2 + $0x28] sm:$0xff] %vm1436, %v1433
    %1439 = vrot.lane.b32.xlu0 %v1183, 64
    %v1440 = vpop.permute.xlu0 %1439
    %1441 = vrot.lane.b32.xlu0 %v1184, 64
    %v1442 = vpop.permute.xlu0 %1441
    %v1444 = vsel %vm1186, %v1440, 0
    %v1447 = vsel %vm1186, %v1442, 0
    %1449 = vmatprep.subr.bf16.mxu0 0
    %1450 = vmatpush1.bf16.xpose.msra.mxu0 0
    %1451 = vmatprep.subr.bf16.mxu0 0
    %1452 = vmatpush1.bf16.xpose.msra.mxu0 0
    %1453 = vmatprep.subr.bf16.mxu0 0
    %1454 = vmatpush1.bf16.xpose.msra.mxu0 0
    %1455 = vmatprep.subr.bf16.mxu0 0
    %1456 = vmatpush1.bf16.xpose.msra.mxu0 0
    %1457 = vmatprep.subr.bf16.mxu0 0
    %1458 = vmatpush1.bf16.xpose.msra.mxu0 0
    %1459 = vmatprep.subr.bf16.mxu0 0
    %1460 = vmatpush1.bf16.xpose.msra.mxu0 0
    %1461 = vmatprep.subr.bf16.mxu0 0
    %1462 = vmatpush1.bf16.xpose.msra.mxu0 0
    %1463 = vmatprep.subr.bf16.mxu0 0
    %1464 = vmatpush1.bf16.xpose.msra.mxu0 %v1447
    %1465 = vmatprep.subr.bf16.mxu0 0
    %1466 = vmatpush2.bf16.xpose.msra.mxu0 0
    %1467 = vmatprep.subr.bf16.mxu0 0
    %1468 = vmatpush2.bf16.xpose.msra.mxu0 0
    %1469 = vmatprep.subr.bf16.mxu0 0
    %1470 = vmatpush2.bf16.xpose.msra.mxu0 0
    %1471 = vmatprep.subr.bf16.mxu0 0
    %1472 = vmatpush2.bf16.xpose.msra.mxu0 0
    %1473 = vmatprep.subr.bf16.mxu0 0
    %1474 = vmatpush2.bf16.xpose.msra.mxu0 0
    %1475 = vmatprep.subr.bf16.mxu0 0
    %1476 = vmatpush2.bf16.xpose.msra.mxu0 0
    %1477 = vmatprep.subr.bf16.mxu0 0
    %1478 = vmatpush2.bf16.xpose.msra.mxu0 0
    %1479 = vmatprep.subr.bf16.mxu0 0
    %1480 = vmatpush2.bf16.xpose.msra.mxu0 0
    %1481 = vmatprep.mubr.bf16.mxu0 0
    %1482 = vmatmul.mubr.bf16.gmra.mxu0 %v1444
    %v1483 = vpop.f32.mrf.mxu0
    %v1484 = vadd.f32 0.0, %v1483
    %v1485 = vpop.f32.mrf.mxu0
    %v1486 = vpop.f32.mrf.mxu0
    %v1487 = vadd.f32 0.0, %v1486
    %v1488 = vpop.f32.mrf.mxu0
    %1489 = vdwg.mxu0
    %v1490 = vsel %vm1234, %v1484, -inf
    %1491 = vmax.xlane.f32.xlu0 %v1490
    %v1492 = vpop.xlane.xlu0 %1491
    %v1493 = vsel %vm1234, %v1487, -inf
    %1494 = vmax.xlane.f32.xlu0 %v1493
    %v1495 = vpop.xlane.xlu0 %1494
    %v1496 = vsub.f32 %v1484, %v1492
    %v1497 = vsub.f32 %v1487, %v1495
    %v1498 = vmul.f32 %v1496, 1.442695
    %v1499 = vpow.pop %v1498
    %v1500 = vmul.f32 %v1497, 1.442695
    %v1501 = vpow.pop %v1500
    %v1502 = vsel %vm1234, %v1499, 0.0
    %1503 = vadd.xlane.f32.xlu0 %v1502
    %v1504 = vpop.xlane.xlu0 %1503
    %v1505 = vsel %vm1234, %v1501, 0.0
    %1506 = vadd.xlane.f32.xlu0 %v1505
    %v1507 = vpop.xlane.xlu0 %1506
    %v1508 = vpack.c.bf16 %v1501, %v1499
    %1509 = vrot.lane.b32.xlu0 %v1185, 64
    %v1510 = vpop.permute.xlu0 %1509
    %v1513 = vsel %vm1234, %v1508, 0
    %1515 = vmatprep.subr.bf16.mxu0 0
    %1516 = vmatpush1.bf16.msra.mxu0 0
    %1517 = vmatprep.subr.bf16.mxu0 0
    %1518 = vmatpush1.bf16.msra.mxu0 0
    %1519 = vmatprep.subr.bf16.mxu0 0
    %1520 = vmatpush1.bf16.msra.mxu0 0
    %1521 = vmatprep.subr.bf16.mxu0 0
    %1522 = vmatpush1.bf16.msra.mxu0 0
    %1523 = vmatprep.subr.bf16.mxu0 0
    %1524 = vmatpush1.bf16.msra.mxu0 0
    %1525 = vmatprep.subr.bf16.mxu0 0
    %1526 = vmatpush1.bf16.msra.mxu0 0
    %1527 = vmatprep.subr.bf16.mxu0 0
    %1528 = vmatpush1.bf16.msra.mxu0 0
    %1529 = vmatprep.subr.bf16.mxu0 0
    %1530 = vmatpush1.bf16.msra.mxu0 %v1510
    %1531 = vmatprep.subr.bf16.mxu0 0
    %1532 = vmatpush2.bf16.msra.mxu0 0
    %1533 = vmatprep.subr.bf16.mxu0 0
    %1534 = vmatpush2.bf16.msra.mxu0 0
    %1535 = vmatprep.subr.bf16.mxu0 0
    %1536 = vmatpush2.bf16.msra.mxu0 0
    %1537 = vmatprep.subr.bf16.mxu0 0
    %1538 = vmatpush2.bf16.msra.mxu0 0
    %1539 = vmatprep.subr.bf16.mxu0 0
    %1540 = vmatpush2.bf16.msra.mxu0 0
    %1541 = vmatprep.subr.bf16.mxu0 0
    %1542 = vmatpush2.bf16.msra.mxu0 0
    %1543 = vmatprep.subr.bf16.mxu0 0
    %1544 = vmatpush2.bf16.msra.mxu0 0
    %1545 = vmatprep.subr.bf16.mxu0 0
    %1546 = vmatpush2.bf16.msra.mxu0 0
    %1547 = vmatprep.mubr.bf16.mxu0 0
    %1548 = vmatmul.mubr.bf16.gmra.mxu0 %v1513
    %v1549 = vpop.f32.mrf.mxu0
    %v1550 = vadd.f32 0.0, %v1549
    %v1551 = vpop.f32.mrf.mxu0
    %v1552 = vpop.f32.mrf.mxu0
    %v1553 = vadd.f32 0.0, %v1552
    %v1554 = vpop.f32.mrf.mxu0
    %1555 = vdwg.mxu0
    %v1556 = vrcp.pop %v1504
    %v1557 = vrcp.pop %v1507
    %v1558 = vmul.f32 %v1550, %v1556
    %v1559 = vmul.f32 %v1553, %v1557
    %1562 = vrot.lane.b32.xlu0 %v1558, 64
    %v1563 = vpop.permute.xlu0 %1562
    %1564 = vrot.lane.b32.xlu0 %v1559, 64
    %v1565 = vpop.permute.xlu0 %1564
    %vm1568 = vcmask 785920
    %1569 = vst.msk [vmem:[#allocation2] sm:$0xff] %vm1568, %v1563
    %1570 = vst.msk [vmem:[#allocation2 + $0x28] sm:$0xff] %vm1568, %v1565
    %1571 = vrot.lane.b32.xlu0 %v1183, 32
    %v1572 = vpop.permute.xlu0 %1571
    %1573 = vrot.lane.b32.xlu0 %v1184, 32
    %v1574 = vpop.permute.xlu0 %1573
    %v1576 = vsel %vm1186, %v1572, 0
    %v1579 = vsel %vm1186, %v1574, 0
    %1581 = vmatprep.subr.bf16.mxu0 0
    %1582 = vmatpush1.bf16.xpose.msra.mxu0 0
    %1583 = vmatprep.subr.bf16.mxu0 0
    %1584 = vmatpush1.bf16.xpose.msra.mxu0 0
    %1585 = vmatprep.subr.bf16.mxu0 0
    %1586 = vmatpush1.bf16.xpose.msra.mxu0 0
    %1587 = vmatprep.subr.bf16.mxu0 0
    %1588 = vmatpush1.bf16.xpose.msra.mxu0 0
    %1589 = vmatprep.subr.bf16.mxu0 0
    %1590 = vmatpush1.bf16.xpose.msra.mxu0 0
    %1591 = vmatprep.subr.bf16.mxu0 0
    %1592 = vmatpush1.bf16.xpose.msra.mxu0 0
    %1593 = vmatprep.subr.bf16.mxu0 0
    %1594 = vmatpush1.bf16.xpose.msra.mxu0 0
    %1595 = vmatprep.subr.bf16.mxu0 0
    %1596 = vmatpush1.bf16.xpose.msra.mxu0 %v1579
    %1597 = vmatprep.subr.bf16.mxu0 0
    %1598 = vmatpush2.bf16.xpose.msra.mxu0 0
    %1599 = vmatprep.subr.bf16.mxu0 0
    %1600 = vmatpush2.bf16.xpose.msra.mxu0 0
    %1601 = vmatprep.subr.bf16.mxu0 0
    %1602 = vmatpush2.bf16.xpose.msra.mxu0 0
    %1603 = vmatprep.subr.bf16.mxu0 0
    %1604 = vmatpush2.bf16.xpose.msra.mxu0 0
    %1605 = vmatprep.subr.bf16.mxu0 0
    %1606 = vmatpush2.bf16.xpose.msra.mxu0 0
    %1607 = vmatprep.subr.bf16.mxu0 0
    %1608 = vmatpush2.bf16.xpose.msra.mxu0 0
    %1609 = vmatprep.subr.bf16.mxu0 0
    %1610 = vmatpush2.bf16.xpose.msra.mxu0 0
    %1611 = vmatprep.subr.bf16.mxu0 0
    %1612 = vmatpush2.bf16.xpose.msra.mxu0 0
    %1613 = vmatprep.mubr.bf16.mxu0 0
    %1614 = vmatmul.mubr.bf16.gmra.mxu0 %v1576
    %v1615 = vpop.f32.mrf.mxu0
    %v1616 = vadd.f32 0.0, %v1615
    %v1617 = vpop.f32.mrf.mxu0
    %v1618 = vpop.f32.mrf.mxu0
    %v1619 = vadd.f32 0.0, %v1618
    %v1620 = vpop.f32.mrf.mxu0
    %1621 = vdwg.mxu0
    %v1622 = vsel %vm1234, %v1616, -inf
    %1623 = vmax.xlane.f32.xlu0 %v1622
    %v1624 = vpop.xlane.xlu0 %1623
    %v1625 = vsel %vm1234, %v1619, -inf
    %1626 = vmax.xlane.f32.xlu0 %v1625
    %v1627 = vpop.xlane.xlu0 %1626
    %v1628 = vsub.f32 %v1616, %v1624
    %v1629 = vsub.f32 %v1619, %v1627
    %v1630 = vmul.f32 %v1628, 1.442695
    %v1631 = vpow.pop %v1630
    %v1632 = vmul.f32 %v1629, 1.442695
    %v1633 = vpow.pop %v1632
    %v1634 = vsel %vm1234, %v1631, 0.0
    %1635 = vadd.xlane.f32.xlu0 %v1634
    %v1636 = vpop.xlane.xlu0 %1635
    %v1637 = vsel %vm1234, %v1633, 0.0
    %1638 = vadd.xlane.f32.xlu0 %v1637
    %v1639 = vpop.xlane.xlu0 %1638
    %v1640 = vpack.c.bf16 %v1633, %v1631
    %1641 = vrot.lane.b32.xlu0 %v1185, 32
    %v1642 = vpop.permute.xlu0 %1641
    %v1645 = vsel %vm1234, %v1640, 0
    %1647 = vmatprep.subr.bf16.mxu0 0
    %1648 = vmatpush1.bf16.msra.mxu0 0
    %1649 = vmatprep.subr.bf16.mxu0 0
    %1650 = vmatpush1.bf16.msra.mxu0 0
    %1651 = vmatprep.subr.bf16.mxu0 0
    %1652 = vmatpush1.bf16.msra.mxu0 0
    %1653 = vmatprep.subr.bf16.mxu0 0
    %1654 = vmatpush1.bf16.msra.mxu0 0
    %1655 = vmatprep.subr.bf16.mxu0 0
    %1656 = vmatpush1.bf16.msra.mxu0 0
    %1657 = vmatprep.subr.bf16.mxu0 0
    %1658 = vmatpush1.bf16.msra.mxu0 0
    %1659 = vmatprep.subr.bf16.mxu0 0
    %1660 = vmatpush1.bf16.msra.mxu0 0
    %1661 = vmatprep.subr.bf16.mxu0 0
    %1662 = vmatpush1.bf16.msra.mxu0 %v1642
    %1663 = vmatprep.subr.bf16.mxu0 0
    %1664 = vmatpush2.bf16.msra.mxu0 0
    %1665 = vmatprep.subr.bf16.mxu0 0
    %1666 = vmatpush2.bf16.msra.mxu0 0
    %1667 = vmatprep.subr.bf16.mxu0 0
    %1668 = vmatpush2.bf16.msra.mxu0 0
    %1669 = vmatprep.subr.bf16.mxu0 0
    %1670 = vmatpush2.bf16.msra.mxu0 0
    %1671 = vmatprep.subr.bf16.mxu0 0
    %1672 = vmatpush2.bf16.msra.mxu0 0
    %1673 = vmatprep.subr.bf16.mxu0 0
    %1674 = vmatpush2.bf16.msra.mxu0 0
    %1675 = vmatprep.subr.bf16.mxu0 0
    %1676 = vmatpush2.bf16.msra.mxu0 0
    %1677 = vmatprep.subr.bf16.mxu0 0
    %1678 = vmatpush2.bf16.msra.mxu0 0
    %1679 = vmatprep.mubr.bf16.mxu0 0
    %1680 = vmatmul.mubr.bf16.gmra.mxu0 %v1645
    %v1681 = vpop.f32.mrf.mxu0
    %v1682 = vadd.f32 0.0, %v1681
    %v1683 = vpop.f32.mrf.mxu0
    %v1684 = vpop.f32.mrf.mxu0
    %v1685 = vadd.f32 0.0, %v1684
    %v1686 = vpop.f32.mrf.mxu0
    %1687 = vdwg.mxu0
    %v1688 = vrcp.pop %v1636
    %v1689 = vrcp.pop %v1639
    %v1690 = vmul.f32 %v1682, %v1688
    %v1691 = vmul.f32 %v1685, %v1689
    %1694 = vrot.lane.b32.xlu0 %v1690, 96
    %v1695 = vpop.permute.xlu0 %1694
    %1696 = vrot.lane.b32.xlu0 %v1691, 96
    %v1697 = vpop.permute.xlu0 %1696
    %vm1700 = vcmask 1048320
    %1701 = vst.msk [vmem:[#allocation2] sm:$0xff] %vm1700, %v1695
    %1702 = vst.msk [vmem:[#allocation2 + $0x28] sm:$0xff] %vm1700, %v1697
    %v1703 = vpack.c.bf16 %v698, %v694
    %v1704 = vpack.c.bf16 %v700, %v696
    %v1705 = vpack.c.bf16 %v748, %v745
    %v1707 = vsel %vm1186, %v1703, 0
    %v1710 = vsel %vm1186, %v1704, 0
    %1712 = vmatprep.subr.bf16.mxu0 0
    %1713 = vmatpush1.bf16.xpose.msra.mxu0 0
    %1714 = vmatprep.subr.bf16.mxu0 0
    %1715 = vmatpush1.bf16.xpose.msra.mxu0 0
    %1716 = vmatprep.subr.bf16.mxu0 0
    %1717 = vmatpush1.bf16.xpose.msra.mxu0 0
    %1718 = vmatprep.subr.bf16.mxu0 0
    %1719 = vmatpush1.bf16.xpose.msra.mxu0 0
    %1720 = vmatprep.subr.bf16.mxu0 0
    %1721 = vmatpush1.bf16.xpose.msra.mxu0 0
    %1722 = vmatprep.subr.bf16.mxu0 0
    %1723 = vmatpush1.bf16.xpose.msra.mxu0 0
    %1724 = vmatprep.subr.bf16.mxu0 0
    %1725 = vmatpush1.bf16.xpose.msra.mxu0 0
    %1726 = vmatprep.subr.bf16.mxu0 0
    %1727 = vmatpush1.bf16.xpose.msra.mxu0 %v1710
    %1728 = vmatprep.subr.bf16.mxu0 0
    %1729 = vmatpush2.bf16.xpose.msra.mxu0 0
    %1730 = vmatprep.subr.bf16.mxu0 0
    %1731 = vmatpush2.bf16.xpose.msra.mxu0 0
    %1732 = vmatprep.subr.bf16.mxu0 0
    %1733 = vmatpush2.bf16.xpose.msra.mxu0 0
    %1734 = vmatprep.subr.bf16.mxu0 0
    %1735 = vmatpush2.bf16.xpose.msra.mxu0 0
    %1736 = vmatprep.subr.bf16.mxu0 0
    %1737 = vmatpush2.bf16.xpose.msra.mxu0 0
    %1738 = vmatprep.subr.bf16.mxu0 0
    %1739 = vmatpush2.bf16.xpose.msra.mxu0 0
    %1740 = vmatprep.subr.bf16.mxu0 0
    %1741 = vmatpush2.bf16.xpose.msra.mxu0 0
    %1742 = vmatprep.subr.bf16.mxu0 0
    %1743 = vmatpush2.bf16.xpose.msra.mxu0 0
    %1744 = vmatprep.mubr.bf16.mxu0 0
    %1745 = vmatmul.mubr.bf16.gmra.mxu0 %v1707
    %v1746 = vpop.f32.mrf.mxu0
    %v1747 = vadd.f32 0.0, %v1746
    %v1748 = vpop.f32.mrf.mxu0
    %v1749 = vpop.f32.mrf.mxu0
    %v1750 = vadd.f32 0.0, %v1749
    %v1751 = vpop.f32.mrf.mxu0
    %1752 = vdwg.mxu0
    %v1753 = vsel %vm1234, %v1747, -inf
    %1754 = vmax.xlane.f32.xlu0 %v1753
    %v1755 = vpop.xlane.xlu0 %1754
    %v1756 = vsel %vm1234, %v1750, -inf
    %1757 = vmax.xlane.f32.xlu0 %v1756
    %v1758 = vpop.xlane.xlu0 %1757
    %v1759 = vsub.f32 %v1747, %v1755
    %v1760 = vsub.f32 %v1750, %v1758
    %v1761 = vmul.f32 %v1759, 1.442695
    %v1762 = vpow.pop %v1761
    %v1763 = vmul.f32 %v1760, 1.442695
    %v1764 = vpow.pop %v1763
    %v1765 = vsel %vm1234, %v1762, 0.0
    %1766 = vadd.xlane.f32.xlu0 %v1765
    %v1767 = vpop.xlane.xlu0 %1766
    %v1768 = vsel %vm1234, %v1764, 0.0
    %1769 = vadd.xlane.f32.xlu0 %v1768
    %v1770 = vpop.xlane.xlu0 %1769
    %v1771 = vpack.c.bf16 %v1764, %v1762
    %v1773 = vsel %vm1234, %v1771, 0
    %1775 = vmatprep.subr.bf16.mxu0 0
    %1776 = vmatpush1.bf16.msra.mxu0 0
    %1777 = vmatprep.subr.bf16.mxu0 0
    %1778 = vmatpush1.bf16.msra.mxu0 0
    %1779 = vmatprep.subr.bf16.mxu0 0
    %1780 = vmatpush1.bf16.msra.mxu0 0
    %1781 = vmatprep.subr.bf16.mxu0 0
    %1782 = vmatpush1.bf16.msra.mxu0 0
    %1783 = vmatprep.subr.bf16.mxu0 0
    %1784 = vmatpush1.bf16.msra.mxu0 0
    %1785 = vmatprep.subr.bf16.mxu0 0
    %1786 = vmatpush1.bf16.msra.mxu0 0
    %1787 = vmatprep.subr.bf16.mxu0 0
    %1788 = vmatpush1.bf16.msra.mxu0 0
    %1789 = vmatprep.subr.bf16.mxu0 0
    %1790 = vmatpush1.bf16.msra.mxu0 %v1705
    %1791 = vmatprep.subr.bf16.mxu0 0
    %1792 = vmatpush2.bf16.msra.mxu0 0
    %1793 = vmatprep.subr.bf16.mxu0 0
    %1794 = vmatpush2.bf16.msra.mxu0 0
    %1795 = vmatprep.subr.bf16.mxu0 0
    %1796 = vmatpush2.bf16.msra.mxu0 0
    %1797 = vmatprep.subr.bf16.mxu0 0
    %1798 = vmatpush2.bf16.msra.mxu0 0
    %1799 = vmatprep.subr.bf16.mxu0 0
    %1800 = vmatpush2.bf16.msra.mxu0 0
    %1801 = vmatprep.subr.bf16.mxu0 0
    %1802 = vmatpush2.bf16.msra.mxu0 0
    %1803 = vmatprep.subr.bf16.mxu0 0
    %1804 = vmatpush2.bf16.msra.mxu0 0
    %1805 = vmatprep.subr.bf16.mxu0 0
    %1806 = vmatpush2.bf16.msra.mxu0 0
    %1807 = vmatprep.mubr.bf16.mxu0 0
    %1808 = vmatmul.mubr.bf16.gmra.mxu0 %v1773
    %v1809 = vpop.f32.mrf.mxu0
    %v1810 = vadd.f32 0.0, %v1809
    %v1811 = vpop.f32.mrf.mxu0
    %v1812 = vpop.f32.mrf.mxu0
    %v1813 = vadd.f32 0.0, %v1812
    %v1814 = vpop.f32.mrf.mxu0
    %1815 = vdwg.mxu0
    %v1816 = vrcp.pop %v1767
    %v1817 = vrcp.pop %v1770
    %v1818 = vmul.f32 %v1810, %v1816
    %v1819 = vmul.f32 %v1813, %v1817
    %1820 = vst.msk [vmem:[#allocation2 + $0x50] sm:$0xff] %vm1186, %v1818
    %1821 = vst.msk [vmem:[#allocation2 + $0x78] sm:$0xff] %vm1186, %v1819
    %1823 = vrot.lane.b32.xlu0 %v1703, 96
    %v1824 = vpop.permute.xlu0 %1823
    %1826 = vrot.lane.b32.xlu0 %v1704, 96
    %v1827 = vpop.permute.xlu0 %1826
    %v1829 = vsel %vm1186, %v1824, 0
    %v1832 = vsel %vm1186, %v1827, 0
    %1834 = vmatprep.subr.bf16.mxu0 0
    %1835 = vmatpush1.bf16.xpose.msra.mxu0 0
    %1836 = vmatprep.subr.bf16.mxu0 0
    %1837 = vmatpush1.bf16.xpose.msra.mxu0 0
    %1838 = vmatprep.subr.bf16.mxu0 0
    %1839 = vmatpush1.bf16.xpose.msra.mxu0 0
    %1840 = vmatprep.subr.bf16.mxu0 0
    %1841 = vmatpush1.bf16.xpose.msra.mxu0 0
    %1842 = vmatprep.subr.bf16.mxu0 0
    %1843 = vmatpush1.bf16.xpose.msra.mxu0 0
    %1844 = vmatprep.subr.bf16.mxu0 0
    %1845 = vmatpush1.bf16.xpose.msra.mxu0 0
    %1846 = vmatprep.subr.bf16.mxu0 0
    %1847 = vmatpush1.bf16.xpose.msra.mxu0 0
    %1848 = vmatprep.subr.bf16.mxu0 0
    %1849 = vmatpush1.bf16.xpose.msra.mxu0 %v1832
    %1850 = vmatprep.subr.bf16.mxu0 0
    %1851 = vmatpush2.bf16.xpose.msra.mxu0 0
    %1852 = vmatprep.subr.bf16.mxu0 0
    %1853 = vmatpush2.bf16.xpose.msra.mxu0 0
    %1854 = vmatprep.subr.bf16.mxu0 0
    %1855 = vmatpush2.bf16.xpose.msra.mxu0 0
    %1856 = vmatprep.subr.bf16.mxu0 0
    %1857 = vmatpush2.bf16.xpose.msra.mxu0 0
    %1858 = vmatprep.subr.bf16.mxu0 0
    %1859 = vmatpush2.bf16.xpose.msra.mxu0 0
    %1860 = vmatprep.subr.bf16.mxu0 0
    %1861 = vmatpush2.bf16.xpose.msra.mxu0 0
    %1862 = vmatprep.subr.bf16.mxu0 0
    %1863 = vmatpush2.bf16.xpose.msra.mxu0 0
    %1864 = vmatprep.subr.bf16.mxu0 0
    %1865 = vmatpush2.bf16.xpose.msra.mxu0 0
    %1866 = vmatprep.mubr.bf16.mxu0 0
    %1867 = vmatmul.mubr.bf16.gmra.mxu0 %v1829
    %v1868 = vpop.f32.mrf.mxu0
    %v1869 = vadd.f32 0.0, %v1868
    %v1870 = vpop.f32.mrf.mxu0
    %v1871 = vpop.f32.mrf.mxu0
    %v1872 = vadd.f32 0.0, %v1871
    %v1873 = vpop.f32.mrf.mxu0
    %1874 = vdwg.mxu0
    %v1875 = vsel %vm1234, %v1869, -inf
    %1876 = vmax.xlane.f32.xlu0 %v1875
    %v1877 = vpop.xlane.xlu0 %1876
    %v1878 = vsel %vm1234, %v1872, -inf
    %1879 = vmax.xlane.f32.xlu0 %v1878
    %v1880 = vpop.xlane.xlu0 %1879
    %v1881 = vsub.f32 %v1869, %v1877
    %v1882 = vsub.f32 %v1872, %v1880
    %v1883 = vmul.f32 %v1881, 1.442695
    %v1884 = vpow.pop %v1883
    %v1885 = vmul.f32 %v1882, 1.442695
    %v1886 = vpow.pop %v1885
    %v1887 = vsel %vm1234, %v1884, 0.0
    %1888 = vadd.xlane.f32.xlu0 %v1887
    %v1889 = vpop.xlane.xlu0 %1888
    %v1890 = vsel %vm1234, %v1886, 0.0
    %1891 = vadd.xlane.f32.xlu0 %v1890
    %v1892 = vpop.xlane.xlu0 %1891
    %v1893 = vpack.c.bf16 %v1886, %v1884
    %1895 = vrot.lane.b32.xlu0 %v1705, 96
    %v1896 = vpop.permute.xlu0 %1895
    %v1899 = vsel %vm1234, %v1893, 0
    %1901 = vmatprep.subr.bf16.mxu0 0
    %1902 = vmatpush1.bf16.msra.mxu0 0
    %1903 = vmatprep.subr.bf16.mxu0 0
    %1904 = vmatpush1.bf16.msra.mxu0 0
    %1905 = vmatprep.subr.bf16.mxu0 0
    %1906 = vmatpush1.bf16.msra.mxu0 0
    %1907 = vmatprep.subr.bf16.mxu0 0
    %1908 = vmatpush1.bf16.msra.mxu0 0
    %1909 = vmatprep.subr.bf16.mxu0 0
    %1910 = vmatpush1.bf16.msra.mxu0 0
    %1911 = vmatprep.subr.bf16.mxu0 0
    %1912 = vmatpush1.bf16.msra.mxu0 0
    %1913 = vmatprep.subr.bf16.mxu0 0
    %1914 = vmatpush1.bf16.msra.mxu0 0
    %1915 = vmatprep.subr.bf16.mxu0 0
    %1916 = vmatpush1.bf16.msra.mxu0 %v1896
    %1917 = vmatprep.subr.bf16.mxu0 0
    %1918 = vmatpush2.bf16.msra.mxu0 0
    %1919 = vmatprep.subr.bf16.mxu0 0
    %1920 = vmatpush2.bf16.msra.mxu0 0
    %1921 = vmatprep.subr.bf16.mxu0 0
    %1922 = vmatpush2.bf16.msra.mxu0 0
    %1923 = vmatprep.subr.bf16.mxu0 0
    %1924 = vmatpush2.bf16.msra.mxu0 0
    %1925 = vmatprep.subr.bf16.mxu0 0
    %1926 = vmatpush2.bf16.msra.mxu0 0
    %1927 = vmatprep.subr.bf16.mxu0 0
    %1928 = vmatpush2.bf16.msra.mxu0 0
    %1929 = vmatprep.subr.bf16.mxu0 0
    %1930 = vmatpush2.bf16.msra.mxu0 0
    %1931 = vmatprep.subr.bf16.mxu0 0
    %1932 = vmatpush2.bf16.msra.mxu0 0
    %1933 = vmatprep.mubr.bf16.mxu0 0
    %1934 = vmatmul.mubr.bf16.gmra.mxu0 %v1899
    %v1935 = vpop.f32.mrf.mxu0
    %v1936 = vadd.f32 0.0, %v1935
    %v1937 = vpop.f32.mrf.mxu0
    %v1938 = vpop.f32.mrf.mxu0
    %v1939 = vadd.f32 0.0, %v1938
    %v1940 = vpop.f32.mrf.mxu0
    %1941 = vdwg.mxu0
    %v1942 = vrcp.pop %v1889
    %v1943 = vrcp.pop %v1892
    %v1944 = vmul.f32 %v1936, %v1942
    %v1945 = vmul.f32 %v1939, %v1943
    %1948 = vrot.lane.b32.xlu0 %v1944, 32
    %v1949 = vpop.permute.xlu0 %1948
    %1950 = vrot.lane.b32.xlu0 %v1945, 32
    %v1951 = vpop.permute.xlu0 %1950
    %1954 = vst.msk [vmem:[#allocation2 + $0x50] sm:$0xff] %vm1436, %v1949
    %1955 = vst.msk [vmem:[#allocation2 + $0x78] sm:$0xff] %vm1436, %v1951
    %1956 = vrot.lane.b32.xlu0 %v1703, 64
    %v1957 = vpop.permute.xlu0 %1956
    %1958 = vrot.lane.b32.xlu0 %v1704, 64
    %v1959 = vpop.permute.xlu0 %1958
    %v1961 = vsel %vm1186, %v1957, 0
    %v1964 = vsel %vm1186, %v1959, 0
    %1966 = vmatprep.subr.bf16.mxu0 0
    %1967 = vmatpush1.bf16.xpose.msra.mxu0 0
    %1968 = vmatprep.subr.bf16.mxu0 0
    %1969 = vmatpush1.bf16.xpose.msra.mxu0 0
    %1970 = vmatprep.subr.bf16.mxu0 0
    %1971 = vmatpush1.bf16.xpose.msra.mxu0 0
    %1972 = vmatprep.subr.bf16.mxu0 0
    %1973 = vmatpush1.bf16.xpose.msra.mxu0 0
    %1974 = vmatprep.subr.bf16.mxu0 0
    %1975 = vmatpush1.bf16.xpose.msra.mxu0 0
    %1976 = vmatprep.subr.bf16.mxu0 0
    %1977 = vmatpush1.bf16.xpose.msra.mxu0 0
    %1978 = vmatprep.subr.bf16.mxu0 0
    %1979 = vmatpush1.bf16.xpose.msra.mxu0 0
    %1980 = vmatprep.subr.bf16.mxu0 0
    %1981 = vmatpush1.bf16.xpose.msra.mxu0 %v1964
    %1982 = vmatprep.subr.bf16.mxu0 0
    %1983 = vmatpush2.bf16.xpose.msra.mxu0 0
    %1984 = vmatprep.subr.bf16.mxu0 0
    %1985 = vmatpush2.bf16.xpose.msra.mxu0 0
    %1986 = vmatprep.subr.bf16.mxu0 0
    %1987 = vmatpush2.bf16.xpose.msra.mxu0 0
    %1988 = vmatprep.subr.bf16.mxu0 0
    %1989 = vmatpush2.bf16.xpose.msra.mxu0 0
    %1990 = vmatprep.subr.bf16.mxu0 0
    %1991 = vmatpush2.bf16.xpose.msra.mxu0 0
    %1992 = vmatprep.subr.bf16.mxu0 0
    %1993 = vmatpush2.bf16.xpose.msra.mxu0 0
    %1994 = vmatprep.subr.bf16.mxu0 0
    %1995 = vmatpush2.bf16.xpose.msra.mxu0 0
    %1996 = vmatprep.subr.bf16.mxu0 0
    %1997 = vmatpush2.bf16.xpose.msra.mxu0 0
    %1998 = vmatprep.mubr.bf16.mxu0 0
    %1999 = vmatmul.mubr.bf16.gmra.mxu0 %v1961
    %v2000 = vpop.f32.mrf.mxu0
    %v2001 = vadd.f32 0.0, %v2000
    %v2002 = vpop.f32.mrf.mxu0
    %v2003 = vpop.f32.mrf.mxu0
    %v2004 = vadd.f32 0.0, %v2003
    %v2005 = vpop.f32.mrf.mxu0
    %2006 = vdwg.mxu0
    %v2007 = vsel %vm1234, %v2001, -inf
    %2008 = vmax.xlane.f32.xlu0 %v2007
    %v2009 = vpop.xlane.xlu0 %2008
    %v2010 = vsel %vm1234, %v2004, -inf
    %2011 = vmax.xlane.f32.xlu0 %v2010
    %v2012 = vpop.xlane.xlu0 %2011
    %v2013 = vsub.f32 %v2001, %v2009
    %v2014 = vsub.f32 %v2004, %v2012
    %v2015 = vmul.f32 %v2013, 1.442695
    %v2016 = vpow.pop %v2015
    %v2017 = vmul.f32 %v2014, 1.442695
    %v2018 = vpow.pop %v2017
    %v2019 = vsel %vm1234, %v2016, 0.0
    %2020 = vadd.xlane.f32.xlu0 %v2019
    %v2021 = vpop.xlane.xlu0 %2020
    %v2022 = vsel %vm1234, %v2018, 0.0
    %2023 = vadd.xlane.f32.xlu0 %v2022
    %v2024 = vpop.xlane.xlu0 %2023
    %v2025 = vpack.c.bf16 %v2018, %v2016
    %2026 = vrot.lane.b32.xlu0 %v1705, 64
    %v2027 = vpop.permute.xlu0 %2026
    %v2030 = vsel %vm1234, %v2025, 0
    %2032 = vmatprep.subr.bf16.mxu0 0
    %2033 = vmatpush1.bf16.msra.mxu0 0
    %2034 = vmatprep.subr.bf16.mxu0 0
    %2035 = vmatpush1.bf16.msra.mxu0 0
    %2036 = vmatprep.subr.bf16.mxu0 0
    %2037 = vmatpush1.bf16.msra.mxu0 0
    %2038 = vmatprep.subr.bf16.mxu0 0
    %2039 = vmatpush1.bf16.msra.mxu0 0
    %2040 = vmatprep.subr.bf16.mxu0 0
    %2041 = vmatpush1.bf16.msra.mxu0 0
    %2042 = vmatprep.subr.bf16.mxu0 0
    %2043 = vmatpush1.bf16.msra.mxu0 0
    %2044 = vmatprep.subr.bf16.mxu0 0
    %2045 = vmatpush1.bf16.msra.mxu0 0
    %2046 = vmatprep.subr.bf16.mxu0 0
    %2047 = vmatpush1.bf16.msra.mxu0 %v2027
    %2048 = vmatprep.subr.bf16.mxu0 0
    %2049 = vmatpush2.bf16.msra.mxu0 0
    %2050 = vmatprep.subr.bf16.mxu0 0
    %2051 = vmatpush2.bf16.msra.mxu0 0
    %2052 = vmatprep.subr.bf16.mxu0 0
    %2053 = vmatpush2.bf16.msra.mxu0 0
    %2054 = vmatprep.subr.bf16.mxu0 0
    %2055 = vmatpush2.bf16.msra.mxu0 0
    %2056 = vmatprep.subr.bf16.mxu0 0
    %2057 = vmatpush2.bf16.msra.mxu0 0
    %2058 = vmatprep.subr.bf16.mxu0 0
    %2059 = vmatpush2.bf16.msra.mxu0 0
    %2060 = vmatprep.subr.bf16.mxu0 0
    %2061 = vmatpush2.bf16.msra.mxu0 0
    %2062 = vmatprep.subr.bf16.mxu0 0
    %2063 = vmatpush2.bf16.msra.mxu0 0
    %2064 = vmatprep.mubr.bf16.mxu0 0
    %2065 = vmatmul.mubr.bf16.gmra.mxu0 %v2030
    %v2066 = vpop.f32.mrf.mxu0
    %v2067 = vadd.f32 0.0, %v2066
    %v2068 = vpop.f32.mrf.mxu0
    %v2069 = vpop.f32.mrf.mxu0
    %v2070 = vadd.f32 0.0, %v2069
    %v2071 = vpop.f32.mrf.mxu0
    %2072 = vdwg.mxu0
    %v2073 = vrcp.pop %v2021
    %v2074 = vrcp.pop %v2024
    %v2075 = vmul.f32 %v2067, %v2073
    %v2076 = vmul.f32 %v2070, %v2074
    %2079 = vrot.lane.b32.xlu0 %v2075, 64
    %v2080 = vpop.permute.xlu0 %2079
    %2081 = vrot.lane.b32.xlu0 %v2076, 64
    %v2082 = vpop.permute.xlu0 %2081
    %2085 = vst.msk [vmem:[#allocation2 + $0x50] sm:$0xff] %vm1568, %v2080
    %2086 = vst.msk [vmem:[#allocation2 + $0x78] sm:$0xff] %vm1568, %v2082
    %2087 = vrot.lane.b32.xlu0 %v1703, 32
    %v2088 = vpop.permute.xlu0 %2087
    %2089 = vrot.lane.b32.xlu0 %v1704, 32
    %v2090 = vpop.permute.xlu0 %2089
    %v2092 = vsel %vm1186, %v2088, 0
    %v2095 = vsel %vm1186, %v2090, 0
    %2097 = vmatprep.subr.bf16.mxu0 0
    %2098 = vmatpush1.bf16.xpose.msra.mxu0 0
    %2099 = vmatprep.subr.bf16.mxu0 0
    %2100 = vmatpush1.bf16.xpose.msra.mxu0 0
    %2101 = vmatprep.subr.bf16.mxu0 0
    %2102 = vmatpush1.bf16.xpose.msra.mxu0 0
    %2103 = vmatprep.subr.bf16.mxu0 0
    %2104 = vmatpush1.bf16.xpose.msra.mxu0 0
    %2105 = vmatprep.subr.bf16.mxu0 0
    %2106 = vmatpush1.bf16.xpose.msra.mxu0 0
    %2107 = vmatprep.subr.bf16.mxu0 0
    %2108 = vmatpush1.bf16.xpose.msra.mxu0 0
    %2109 = vmatprep.subr.bf16.mxu0 0
    %2110 = vmatpush1.bf16.xpose.msra.mxu0 0
    %2111 = vmatprep.subr.bf16.mxu0 0
    %2112 = vmatpush1.bf16.xpose.msra.mxu0 %v2095
    %2113 = vmatprep.subr.bf16.mxu0 0
    %2114 = vmatpush2.bf16.xpose.msra.mxu0 0
    %2115 = vmatprep.subr.bf16.mxu0 0
    %2116 = vmatpush2.bf16.xpose.msra.mxu0 0
    %2117 = vmatprep.subr.bf16.mxu0 0
    %2118 = vmatpush2.bf16.xpose.msra.mxu0 0
    %2119 = vmatprep.subr.bf16.mxu0 0
    %2120 = vmatpush2.bf16.xpose.msra.mxu0 0
    %2121 = vmatprep.subr.bf16.mxu0 0
    %2122 = vmatpush2.bf16.xpose.msra.mxu0 0
    %2123 = vmatprep.subr.bf16.mxu0 0
    %2124 = vmatpush2.bf16.xpose.msra.mxu0 0
    %2125 = vmatprep.subr.bf16.mxu0 0
    %2126 = vmatpush2.bf16.xpose.msra.mxu0 0
    %2127 = vmatprep.subr.bf16.mxu0 0
    %2128 = vmatpush2.bf16.xpose.msra.mxu0 0
    %2129 = vmatprep.mubr.bf16.mxu0 0
    %2130 = vmatmul.mubr.bf16.gmra.mxu0 %v2092
    %v2131 = vpop.f32.mrf.mxu0
    %v2132 = vadd.f32 0.0, %v2131
    %v2133 = vpop.f32.mrf.mxu0
    %v2134 = vpop.f32.mrf.mxu0
    %v2135 = vadd.f32 0.0, %v2134
    %v2136 = vpop.f32.mrf.mxu0
    %2137 = vdwg.mxu0
    %v2138 = vsel %vm1234, %v2132, -inf
    %2139 = vmax.xlane.f32.xlu0 %v2138
    %v2140 = vpop.xlane.xlu0 %2139
    %v2141 = vsel %vm1234, %v2135, -inf
    %2142 = vmax.xlane.f32.xlu0 %v2141
    %v2143 = vpop.xlane.xlu0 %2142
    %v2144 = vsub.f32 %v2132, %v2140
    %v2145 = vsub.f32 %v2135, %v2143
    %v2146 = vmul.f32 %v2144, 1.442695
    %v2147 = vpow.pop %v2146
    %v2148 = vmul.f32 %v2145, 1.442695
    %v2149 = vpow.pop %v2148
    %v2150 = vsel %vm1234, %v2147, 0.0
    %2151 = vadd.xlane.f32.xlu0 %v2150
    %v2152 = vpop.xlane.xlu0 %2151
    %v2153 = vsel %vm1234, %v2149, 0.0
    %2154 = vadd.xlane.f32.xlu0 %v2153
    %v2155 = vpop.xlane.xlu0 %2154
    %v2156 = vpack.c.bf16 %v2149, %v2147
    %2157 = vrot.lane.b32.xlu0 %v1705, 32
    %v2158 = vpop.permute.xlu0 %2157
    %v2161 = vsel %vm1234, %v2156, 0
    %2163 = vmatprep.subr.bf16.mxu0 0
    %2164 = vmatpush1.bf16.msra.mxu0 0
    %2165 = vmatprep.subr.bf16.mxu0 0
    %2166 = vmatpush1.bf16.msra.mxu0 0
    %2167 = vmatprep.subr.bf16.mxu0 0
    %2168 = vmatpush1.bf16.msra.mxu0 0
    %2169 = vmatprep.subr.bf16.mxu0 0
    %2170 = vmatpush1.bf16.msra.mxu0 0
    %2171 = vmatprep.subr.bf16.mxu0 0
    %2172 = vmatpush1.bf16.msra.mxu0 0
    %2173 = vmatprep.subr.bf16.mxu0 0
    %2174 = vmatpush1.bf16.msra.mxu0 0
    %2175 = vmatprep.subr.bf16.mxu0 0
    %2176 = vmatpush1.bf16.msra.mxu0 0
    %2177 = vmatprep.subr.bf16.mxu0 0
    %2178 = vmatpush1.bf16.msra.mxu0 %v2158
    %2179 = vmatprep.subr.bf16.mxu0 0
    %2180 = vmatpush2.bf16.msra.mxu0 0
    %2181 = vmatprep.subr.bf16.mxu0 0
    %2182 = vmatpush2.bf16.msra.mxu0 0
    %2183 = vmatprep.subr.bf16.mxu0 0
    %2184 = vmatpush2.bf16.msra.mxu0 0
    %2185 = vmatprep.subr.bf16.mxu0 0
    %2186 = vmatpush2.bf16.msra.mxu0 0
    %2187 = vmatprep.subr.bf16.mxu0 0
    %2188 = vmatpush2.bf16.msra.mxu0 0
    %2189 = vmatprep.subr.bf16.mxu0 0
    %2190 = vmatpush2.bf16.msra.mxu0 0
    %2191 = vmatprep.subr.bf16.mxu0 0
    %2192 = vmatpush2.bf16.msra.mxu0 0
    %2193 = vmatprep.subr.bf16.mxu0 0
    %2194 = vmatpush2.bf16.msra.mxu0 0
    %2195 = vmatprep.mubr.bf16.mxu0 0
    %2196 = vmatmul.mubr.bf16.gmra.mxu0 %v2161
    %v2197 = vpop.f32.mrf.mxu0
    %v2198 = vadd.f32 0.0, %v2197
    %v2199 = vpop.f32.mrf.mxu0
    %v2200 = vpop.f32.mrf.mxu0
    %v2201 = vadd.f32 0.0, %v2200
    %v2202 = vpop.f32.mrf.mxu0
    %2203 = vdwg.mxu0
    %v2204 = vrcp.pop %v2152
    %v2205 = vrcp.pop %v2155
    %v2206 = vmul.f32 %v2198, %v2204
    %v2207 = vmul.f32 %v2201, %v2205
    %2210 = vrot.lane.b32.xlu0 %v2206, 96
    %v2211 = vpop.permute.xlu0 %2210
    %2212 = vrot.lane.b32.xlu0 %v2207, 96
    %v2213 = vpop.permute.xlu0 %2212
    %2216 = vst.msk [vmem:[#allocation2 + $0x50] sm:$0xff] %vm1700, %v2211
    %2217 = vst.msk [vmem:[#allocation2 + $0x78] sm:$0xff] %vm1700, %v2213
    %v2218 = vld [vmem:[#allocation2] sm:$0xff]
    %v2219 = vld [vmem:[#allocation2 + $0x8] sm:$0xff]
    %v2220 = vld [vmem:[#allocation2 + $0x10] sm:$0xff]
    %v2221 = vld [vmem:[#allocation2 + $0x18] sm:$0xff]
    %v2222 = vld [vmem:[#allocation2 + $0x20] sm:$0xff]
    %v2223 = vld [vmem:[#allocation2 + $0x28] sm:$0xff]
    %v2224 = vld [vmem:[#allocation2 + $0x30] sm:$0xff]
    %v2225 = vld [vmem:[#allocation2 + $0x38] sm:$0xff]
    %v2226 = vld [vmem:[#allocation2 + $0x40] sm:$0xff]
    %v2227 = vld [vmem:[#allocation2 + $0x48] sm:$0xff]
    %v2228 = vld [vmem:[#allocation2 + $0x50] sm:$0xff]
    %v2229 = vld [vmem:[#allocation2 + $0x58] sm:$0xff]
    %v2230 = vld [vmem:[#allocation2 + $0x60] sm:$0xff]
    %v2231 = vld [vmem:[#allocation2 + $0x68] sm:$0xff]
    %v2232 = vld [vmem:[#allocation2 + $0x70] sm:$0xff]
    %v2233 = vld [vmem:[#allocation2 + $0x78] sm:$0xff]
    %v2234 = vld [vmem:[#allocation2 + $0x80] sm:$0xff]
    %v2235 = vld [vmem:[#allocation2 + $0x88] sm:$0xff]
    %v2236 = vld [vmem:[#allocation2 + $0x90] sm:$0xff]
    %v2237 = vld [vmem:[#allocation2 + $0x98] sm:$0xff]
    %v2238 = vpack.c.bf16 %v2223, %v2218
    %v2239 = vpack.c.bf16 %v2224, %v2219
    %v2240 = vpack.c.bf16 %v2225, %v2220
    %v2241 = vpack.c.bf16 %v2226, %v2221
    %v2242 = vpack.c.bf16 %v2227, %v2222
    %v2243 = vpack.c.bf16 %v2233, %v2228
    %v2244 = vpack.c.bf16 %v2234, %v2229
    %v2245 = vpack.c.bf16 %v2235, %v2230
    %v2246 = vpack.c.bf16 %v2236, %v2231
    %v2247 = vpack.c.bf16 %v2237, %v2232
    %v2248 = vld [vmem:[#allocation9] sm:$0xf]
    %v2249 = vld [vmem:[#allocation9 + $0x4] sm:$0xf]
    %v2250 = vld [vmem:[#allocation9 + $0x8] sm:$0xf]
    %v2251 = vld [vmem:[#allocation9 + $0xc] sm:$0xf]
    %v2252 = vld [vmem:[#allocation9 + $0x10] sm:$0xf]
    %v2253 = vld [vmem:[#allocation9 + $0x14] sm:$0xf]
    %v2254 = vld [vmem:[#allocation9 + $0x18] sm:$0xf]
    %v2255 = vld [vmem:[#allocation9 + $0x1c] sm:$0xf]
    %v2256 = vld [vmem:[#allocation9 + $0x20] sm:$0xf]
    %v2257 = vld [vmem:[#allocation9 + $0x24] sm:$0xf]
    %v2258 = vld [vmem:[#allocation9 + $0x28] sm:$0xf]
    %v2259 = vld [vmem:[#allocation9 + $0x2c] sm:$0xf]
    %v2260 = vld [vmem:[#allocation9 + $0x30] sm:$0xf]
    %v2261 = vld [vmem:[#allocation9 + $0x34] sm:$0xf]
    %v2262 = vld [vmem:[#allocation9 + $0x38] sm:$0xf]
    %v2263 = vld [vmem:[#allocation9 + $0x3c] sm:$0xf]
    %v2264 = vld [vmem:[#allocation9 + $0x40] sm:$0xf]
    %v2265 = vld [vmem:[#allocation9 + $0x44] sm:$0xf]
    %v2266 = vld [vmem:[#allocation9 + $0x48] sm:$0xf]
    %v2267 = vld [vmem:[#allocation9 + $0x4c] sm:$0xf]
    %v2268 = vld [vmem:[#allocation9 + $0x50] sm:$0xf]
    %v2269 = vld [vmem:[#allocation9 + $0x54] sm:$0xf]
    %v2270 = vld [vmem:[#allocation9 + $0x58] sm:$0xf]
    %v2271 = vld [vmem:[#allocation9 + $0x5c] sm:$0xf]
    %v2272 = vld [vmem:[#allocation9 + $0x60] sm:$0xf]
    %v2273 = vld [vmem:[#allocation9 + $0x64] sm:$0xf]
    %v2274 = vld [vmem:[#allocation9 + $0x68] sm:$0xf]
    %v2275 = vld [vmem:[#allocation9 + $0x6c] sm:$0xf]
    %v2276 = vld [vmem:[#allocation9 + $0x70] sm:$0xf]
    %v2277 = vld [vmem:[#allocation9 + $0x74] sm:$0xf]
    %v2278 = vld [vmem:[#allocation9 + $0x78] sm:$0xf]
    %v2279 = vld [vmem:[#allocation9 + $0x7c] sm:$0xf]
    %v2280 = vld [vmem:[#allocation9 + $0x80] sm:$0xf]
    %v2281 = vld [vmem:[#allocation9 + $0x84] sm:$0xf]
    %v2282 = vld [vmem:[#allocation9 + $0x88] sm:$0xf]
    %v2283 = vld [vmem:[#allocation9 + $0x8c] sm:$0xf]
    %v2284 = vld [vmem:[#allocation9 + $0x90] sm:$0xf]
    %v2285 = vld [vmem:[#allocation9 + $0x94] sm:$0xf]
    %v2286 = vld [vmem:[#allocation9 + $0x98] sm:$0xf]
    %v2287 = vld [vmem:[#allocation9 + $0x9c] sm:$0xf]
    %v2288 = vld [vmem:[#allocation9 + $0xa0] sm:$0xf]
    %v2289 = vld [vmem:[#allocation9 + $0xa4] sm:$0xf]
    %v2290 = vld [vmem:[#allocation9 + $0xa8] sm:$0xf]
    %v2291 = vld [vmem:[#allocation9 + $0xac] sm:$0xf]
    %v2292 = vld [vmem:[#allocation9 + $0xb0] sm:$0xf]
    %v2293 = vld [vmem:[#allocation9 + $0xb4] sm:$0xf]
    %v2294 = vld [vmem:[#allocation9 + $0xb8] sm:$0xf]
    %v2295 = vld [vmem:[#allocation9 + $0xbc] sm:$0xf]
    %v2296 = vld [vmem:[#allocation9 + $0xc0] sm:$0xf]
    %v2297 = vld [vmem:[#allocation9 + $0xc4] sm:$0xf]
    %v2298 = vld [vmem:[#allocation9 + $0xc8] sm:$0xf]
    %v2299 = vld [vmem:[#allocation9 + $0xcc] sm:$0xf]
    %v2300 = vld [vmem:[#allocation9 + $0xd0] sm:$0xf]
    %v2301 = vld [vmem:[#allocation9 + $0xd4] sm:$0xf]
    %v2302 = vld [vmem:[#allocation9 + $0xd8] sm:$0xf]
    %v2303 = vld [vmem:[#allocation9 + $0xdc] sm:$0xf]
    %v2304 = vld [vmem:[#allocation9 + $0xe0] sm:$0xf]
    %v2305 = vld [vmem:[#allocation9 + $0xe4] sm:$0xf]
    %v2306 = vld [vmem:[#allocation9 + $0xe8] sm:$0xf]
    %v2307 = vld [vmem:[#allocation9 + $0xec] sm:$0xf]
    %v2308 = vld [vmem:[#allocation9 + $0xf0] sm:$0xf]
    %v2309 = vld [vmem:[#allocation9 + $0xf4] sm:$0xf]
    %v2310 = vld [vmem:[#allocation9 + $0xf8] sm:$0xf]
    %v2311 = vld [vmem:[#allocation9 + $0xfc] sm:$0xf]
    %v2312 = vld [vmem:[#allocation9 + $0x100] sm:$0xf]
    %v2313 = vld [vmem:[#allocation9 + $0x104] sm:$0xf]
    %v2314 = vld [vmem:[#allocation9 + $0x108] sm:$0xf]
    %v2315 = vld [vmem:[#allocation9 + $0x10c] sm:$0xf]
    %v2316 = vld [vmem:[#allocation9 + $0x110] sm:$0xf]
    %v2317 = vld [vmem:[#allocation9 + $0x114] sm:$0xf]
    %v2318 = vld [vmem:[#allocation9 + $0x118] sm:$0xf]
    %v2319 = vld [vmem:[#allocation9 + $0x11c] sm:$0xf]
    %v2320 = vld [vmem:[#allocation9 + $0x120] sm:$0xf]
    %v2321 = vld [vmem:[#allocation9 + $0x124] sm:$0xf]
    %v2322 = vld [vmem:[#allocation9 + $0x128] sm:$0xf]
    %v2323 = vld [vmem:[#allocation9 + $0x12c] sm:$0xf]
    %v2324 = vld [vmem:[#allocation9 + $0x130] sm:$0xf]
    %v2325 = vld [vmem:[#allocation9 + $0x134] sm:$0xf]
    %v2326 = vld [vmem:[#allocation9 + $0x138] sm:$0xf]
    %v2327 = vld [vmem:[#allocation9 + $0x13c] sm:$0xf]
    %v2328 = vld [vmem:[%s6] sm:$0x1]
    %v2330 = vlaneseq
    %v2331 = vshrl.u32 %v2330, 7
    %v2332 = vsub.s32 0, %v2331
    %v2333 = vrot.slane %v2328, %v2332
    %v2415 = vunpack.c.l.b16 %v2248
    %v2416 = vunpack.c.l.b16 %v2249
    %v2417 = vunpack.c.l.b16 %v2250
    %v2418 = vunpack.c.l.b16 %v2251
    %v2419 = vunpack.c.l.b16 %v2252
    %v2420 = vunpack.c.l.b16 %v2253
    %v2421 = vunpack.c.l.b16 %v2254
    %v2422 = vunpack.c.l.b16 %v2255
    %v2423 = vunpack.c.l.b16 %v2256
    %v2424 = vunpack.c.l.b16 %v2257
    %v2425 = vunpack.c.l.b16 %v2258
    %v2426 = vunpack.c.l.b16 %v2259
    %v2427 = vunpack.c.l.b16 %v2260
    %v2428 = vunpack.c.l.b16 %v2261
    %v2429 = vunpack.c.l.b16 %v2262
    %v2430 = vunpack.c.l.b16 %v2263
    %v2431 = vunpack.c.l.b16 %v2264
    %v2432 = vunpack.c.l.b16 %v2265
    %v2433 = vunpack.c.l.b16 %v2266
    %v2434 = vunpack.c.l.b16 %v2267
    %v2435 = vunpack.c.l.b16 %v2268
    %v2436 = vunpack.c.l.b16 %v2269
    %v2437 = vunpack.c.l.b16 %v2270
    %v2438 = vunpack.c.l.b16 %v2271
    %v2439 = vunpack.c.l.b16 %v2272
    %v2440 = vunpack.c.l.b16 %v2273
    %v2441 = vunpack.c.l.b16 %v2274
    %v2442 = vunpack.c.l.b16 %v2275
    %v2443 = vunpack.c.l.b16 %v2276
    %v2444 = vunpack.c.l.b16 %v2277
    %v2445 = vunpack.c.l.b16 %v2278
    %v2446 = vunpack.c.l.b16 %v2279
    %v2447 = vunpack.c.l.b16 %v2280
    %v2448 = vunpack.c.l.b16 %v2281
    %v2449 = vunpack.c.l.b16 %v2282
    %v2450 = vunpack.c.l.b16 %v2283
    %v2451 = vunpack.c.l.b16 %v2284
    %v2452 = vunpack.c.l.b16 %v2285
    %v2453 = vunpack.c.l.b16 %v2286
    %v2454 = vunpack.c.l.b16 %v2287
    %v2455 = vunpack.c.l.b16 %v2288
    %v2456 = vunpack.c.l.b16 %v2289
    %v2457 = vunpack.c.l.b16 %v2290
    %v2458 = vunpack.c.l.b16 %v2291
    %v2459 = vunpack.c.l.b16 %v2292
    %v2460 = vunpack.c.l.b16 %v2293
    %v2461 = vunpack.c.l.b16 %v2294
    %v2462 = vunpack.c.l.b16 %v2295
    %v2463 = vunpack.c.l.b16 %v2296
    %v2464 = vunpack.c.l.b16 %v2297
    %v2465 = vunpack.c.l.b16 %v2298
    %v2466 = vunpack.c.l.b16 %v2299
    %v2467 = vunpack.c.l.b16 %v2300
    %v2468 = vunpack.c.l.b16 %v2301
    %v2469 = vunpack.c.l.b16 %v2302
    %v2470 = vunpack.c.l.b16 %v2303
    %v2471 = vunpack.c.l.b16 %v2304
    %v2472 = vunpack.c.l.b16 %v2305
    %v2473 = vunpack.c.l.b16 %v2306
    %v2474 = vunpack.c.l.b16 %v2307
    %v2475 = vunpack.c.l.b16 %v2308
    %v2476 = vunpack.c.l.b16 %v2309
    %v2477 = vunpack.c.l.b16 %v2310
    %v2478 = vunpack.c.l.b16 %v2311
    %v2479 = vunpack.c.l.b16 %v2312
    %v2480 = vunpack.c.l.b16 %v2313
    %v2481 = vunpack.c.l.b16 %v2314
    %v2482 = vunpack.c.l.b16 %v2315
    %v2483 = vunpack.c.l.b16 %v2316
    %v2484 = vunpack.c.l.b16 %v2317
    %v2485 = vunpack.c.l.b16 %v2318
    %v2486 = vunpack.c.l.b16 %v2319
    %v2487 = vunpack.c.l.b16 %v2320
    %v2488 = vunpack.c.l.b16 %v2321
    %v2489 = vunpack.c.l.b16 %v2322
    %v2490 = vunpack.c.l.b16 %v2323
    %v2491 = vunpack.c.l.b16 %v2324
    %v2492 = vunpack.c.l.b16 %v2325
    %v2493 = vunpack.c.l.b16 %v2326
    %v2494 = vunpack.c.l.b16 %v2327
    %v2495 = vpack.c.b16 %v2416, %v2415
    %v2496 = vpack.c.b16 %v2418, %v2417
    %v2497 = vpack.c.b16 %v2420, %v2419
    %v2498 = vpack.c.b16 %v2422, %v2421
    %v2499 = vpack.c.b16 %v2424, %v2423
    %v2500 = vpack.c.b16 %v2426, %v2425
    %v2501 = vpack.c.b16 %v2428, %v2427
    %v2502 = vpack.c.b16 %v2430, %v2429
    %v2503 = vpack.c.b16 %v2432, %v2431
    %v2504 = vpack.c.b16 %v2434, %v2433
    %v2505 = vpack.c.b16 %v2436, %v2435
    %v2506 = vpack.c.b16 %v2438, %v2437
    %v2507 = vpack.c.b16 %v2440, %v2439
    %v2508 = vpack.c.b16 %v2442, %v2441
    %v2509 = vpack.c.b16 %v2444, %v2443
    %v2510 = vpack.c.b16 %v2446, %v2445
    %v2511 = vpack.c.b16 %v2448, %v2447
    %v2512 = vpack.c.b16 %v2450, %v2449
    %v2513 = vpack.c.b16 %v2452, %v2451
    %v2514 = vpack.c.b16 %v2454, %v2453
    %v2515 = vpack.c.b16 %v2456, %v2455
    %v2516 = vpack.c.b16 %v2458, %v2457
    %v2517 = vpack.c.b16 %v2460, %v2459
    %v2518 = vpack.c.b16 %v2462, %v2461
    %v2519 = vpack.c.b16 %v2464, %v2463
    %v2520 = vpack.c.b16 %v2466, %v2465
    %v2521 = vpack.c.b16 %v2468, %v2467
    %v2522 = vpack.c.b16 %v2470, %v2469
    %v2523 = vpack.c.b16 %v2472, %v2471
    %v2524 = vpack.c.b16 %v2474, %v2473
    %v2525 = vpack.c.b16 %v2476, %v2475
    %v2526 = vpack.c.b16 %v2478, %v2477
    %v2527 = vpack.c.b16 %v2480, %v2479
    %v2528 = vpack.c.b16 %v2482, %v2481
    %v2529 = vpack.c.b16 %v2484, %v2483
    %v2530 = vpack.c.b16 %v2486, %v2485
    %v2531 = vpack.c.b16 %v2488, %v2487
    %v2532 = vpack.c.b16 %v2490, %v2489
    %v2533 = vpack.c.b16 %v2492, %v2491
    %v2534 = vpack.c.b16 %v2494, %v2493
    %2575 = vmatprep.subr.bf16.mxu0 0
    %2576 = vmatpush1.bf16.msra.mxu0 %v2502
    %2577 = vmatprep.subr.bf16.mxu0 0
    %2578 = vmatpush1.bf16.msra.mxu0 %v2501
    %2579 = vmatprep.subr.bf16.mxu0 0
    %2580 = vmatpush1.bf16.msra.mxu0 %v2500
    %2581 = vmatprep.subr.bf16.mxu0 0
    %2582 = vmatpush1.bf16.msra.mxu0 %v2499
    %2583 = vmatprep.subr.bf16.mxu0 0
    %2584 = vmatpush1.bf16.msra.mxu0 %v2498
    %2585 = vmatprep.subr.bf16.mxu0 0
    %2586 = vmatpush1.bf16.msra.mxu0 %v2497
    %2587 = vmatprep.subr.bf16.mxu0 0
    %2588 = vmatpush1.bf16.msra.mxu0 %v2496
    %2589 = vmatprep.subr.bf16.mxu0 0
    %2590 = vmatpush1.bf16.msra.mxu0 %v2495
    %2591 = vmatprep.subr.bf16.mxu0 0
    %2592 = vmatpush2.bf16.msra.mxu0 %v2510
    %2593 = vmatprep.subr.bf16.mxu0 0
    %2594 = vmatpush2.bf16.msra.mxu0 %v2509
    %2595 = vmatprep.subr.bf16.mxu0 0
    %2596 = vmatpush2.bf16.msra.mxu0 %v2508
    %2597 = vmatprep.subr.bf16.mxu0 0
    %2598 = vmatpush2.bf16.msra.mxu0 %v2507
    %2599 = vmatprep.subr.bf16.mxu0 0
    %2600 = vmatpush2.bf16.msra.mxu0 %v2506
    %2601 = vmatprep.subr.bf16.mxu0 0
    %2602 = vmatpush2.bf16.msra.mxu0 %v2505
    %2603 = vmatprep.subr.bf16.mxu0 0
    %2604 = vmatpush2.bf16.msra.mxu0 %v2504
    %2605 = vmatprep.subr.bf16.mxu0 0
    %2606 = vmatpush2.bf16.msra.mxu0 %v2503
    %2607 = vmatprep.mubr.bf16.mxu0 %v2239
    %2608 = vmatmul.mubr.bf16.gmra.mxu0 %v2238
    %v2609 = vpop.f32.mrf.mxu0
    %v2610 = vadd.f32 %v2333, %v2609
    %v2611 = vpop.f32.mrf.mxu0
    %v2612 = vpop.f32.mrf.mxu0
    %v2613 = vadd.f32 %v2333, %v2612
    %v2614 = vpop.f32.mrf.mxu0
    %2615 = vmatprep.mubr.bf16.mxu0 %v2244
    %2616 = vmatmul.mubr.bf16.gmra.mxu0 %v2243
    %v2617 = vpop.f32.mrf.mxu0
    %v2618 = vadd.f32 %v2333, %v2617
    %v2619 = vpop.f32.mrf.mxu0
    %v2620 = vpop.f32.mrf.mxu0
    %v2621 = vadd.f32 %v2333, %v2620
    %v2622 = vpop.f32.mrf.mxu0
    %2623 = vdwg.mxu0
    %2624 = vmatprep.subr.bf16.mxu0 0
    %2625 = vmatpush1.bf16.msra.mxu0 %v2518
    %2626 = vmatprep.subr.bf16.mxu0 0
    %2627 = vmatpush1.bf16.msra.mxu0 %v2517
    %2628 = vmatprep.subr.bf16.mxu0 0
    %2629 = vmatpush1.bf16.msra.mxu0 %v2516
    %2630 = vmatprep.subr.bf16.mxu0 0
    %2631 = vmatpush1.bf16.msra.mxu0 %v2515
    %2632 = vmatprep.subr.bf16.mxu0 0
    %2633 = vmatpush1.bf16.msra.mxu0 %v2514
    %2634 = vmatprep.subr.bf16.mxu0 0
    %2635 = vmatpush1.bf16.msra.mxu0 %v2513
    %2636 = vmatprep.subr.bf16.mxu0 0
    %2637 = vmatpush1.bf16.msra.mxu0 %v2512
    %2638 = vmatprep.subr.bf16.mxu0 0
    %2639 = vmatpush1.bf16.msra.mxu0 %v2511
    %2640 = vmatprep.subr.bf16.mxu0 0
    %2641 = vmatpush2.bf16.msra.mxu0 %v2526
    %2642 = vmatprep.subr.bf16.mxu0 0
    %2643 = vmatpush2.bf16.msra.mxu0 %v2525
    %2644 = vmatprep.subr.bf16.mxu0 0
    %2645 = vmatpush2.bf16.msra.mxu0 %v2524
    %2646 = vmatprep.subr.bf16.mxu0 0
    %2647 = vmatpush2.bf16.msra.mxu0 %v2523
    %2648 = vmatprep.subr.bf16.mxu0 0
    %2649 = vmatpush2.bf16.msra.mxu0 %v2522
    %2650 = vmatprep.subr.bf16.mxu0 0
    %2651 = vmatpush2.bf16.msra.mxu0 %v2521
    %2652 = vmatprep.subr.bf16.mxu0 0
    %2653 = vmatpush2.bf16.msra.mxu0 %v2520
    %2654 = vmatprep.subr.bf16.mxu0 0
    %2655 = vmatpush2.bf16.msra.mxu0 %v2519
    %2656 = vmatprep.mubr.bf16.mxu0 %v2241
    %2657 = vmatmul.mubr.bf16.gmra.mxu0 %v2240
    %v2658 = vpop.f32.mrf.mxu0
    %v2659 = vadd.f32 %v2610, %v2658
    %v2660 = vpop.f32.mrf.mxu0
    %v2661 = vpop.f32.mrf.mxu0
    %v2662 = vadd.f32 %v2613, %v2661
    %v2663 = vpop.f32.mrf.mxu0
    %2664 = vmatprep.mubr.bf16.mxu0 %v2246
    %2665 = vmatmul.mubr.bf16.gmra.mxu0 %v2245
    %v2666 = vpop.f32.mrf.mxu0
    %v2667 = vadd.f32 %v2618, %v2666
    %v2668 = vpop.f32.mrf.mxu0
    %v2669 = vpop.f32.mrf.mxu0
    %v2670 = vadd.f32 %v2621, %v2669
    %v2671 = vpop.f32.mrf.mxu0
    %2672 = vdwg.mxu0
    %2673 = vmatprep.subr.bf16.mxu0 0
    %2674 = vmatpush1.bf16.msra.mxu0 %v2534
    %2675 = vmatprep.subr.bf16.mxu0 0
    %2676 = vmatpush1.bf16.msra.mxu0 %v2533
    %2677 = vmatprep.subr.bf16.mxu0 0
    %2678 = vmatpush1.bf16.msra.mxu0 %v2532
    %2679 = vmatprep.subr.bf16.mxu0 0
    %2680 = vmatpush1.bf16.msra.mxu0 %v2531
    %2681 = vmatprep.subr.bf16.mxu0 0
    %2682 = vmatpush1.bf16.msra.mxu0 %v2530
    %2683 = vmatprep.subr.bf16.mxu0 0
    %2684 = vmatpush1.bf16.msra.mxu0 %v2529
    %2685 = vmatprep.subr.bf16.mxu0 0
    %2686 = vmatpush1.bf16.msra.mxu0 %v2528
    %2687 = vmatprep.subr.bf16.mxu0 0
    %2688 = vmatpush1.bf16.msra.mxu0 %v2527
    %2689 = vmatprep.subr.bf16.mxu0 0
    %2690 = vmatpush2.bf16.msra.mxu0 0
    %2691 = vmatprep.subr.bf16.mxu0 0
    %2692 = vmatpush2.bf16.msra.mxu0 0
    %2693 = vmatprep.subr.bf16.mxu0 0
    %2694 = vmatpush2.bf16.msra.mxu0 0
    %2695 = vmatprep.subr.bf16.mxu0 0
    %2696 = vmatpush2.bf16.msra.mxu0 0
    %2697 = vmatprep.subr.bf16.mxu0 0
    %2698 = vmatpush2.bf16.msra.mxu0 0
    %2699 = vmatprep.subr.bf16.mxu0 0
    %2700 = vmatpush2.bf16.msra.mxu0 0
    %2701 = vmatprep.subr.bf16.mxu0 0
    %2702 = vmatpush2.bf16.msra.mxu0 0
    %2703 = vmatprep.subr.bf16.mxu0 0
    %2704 = vmatpush2.bf16.msra.mxu0 0
    %2705 = vmatprep.mubr.bf16.mxu0 0
    %2706 = vmatmul.mubr.bf16.gmra.mxu0 %v2242
    %v2707 = vpop.f32.mrf.mxu0
    %v2708 = vadd.f32 %v2659, %v2707
    %v2709 = vpop.f32.mrf.mxu0
    %v2710 = vpop.f32.mrf.mxu0
    %v2711 = vadd.f32 %v2662, %v2710
    %v2712 = vpop.f32.mrf.mxu0
    %2713 = vmatprep.mubr.bf16.mxu0 0
    %2714 = vmatmul.mubr.bf16.gmra.mxu0 %v2247
    %v2715 = vpop.f32.mrf.mxu0
    %v2716 = vadd.f32 %v2667, %v2715
    %v2717 = vpop.f32.mrf.mxu0
    %v2718 = vpop.f32.mrf.mxu0
    %v2719 = vadd.f32 %v2670, %v2718
    %v2720 = vpop.f32.mrf.mxu0
    %2721 = vdwg.mxu0
    %v2722 = vadd.f32 %v81, %v2708
    %v2723 = vadd.f32 %v82, %v2711
    %v2724 = vadd.f32 %v83, %v2716
    %v2725 = vadd.f32 %v84, %v2719
    %2726 = vst [vmem:[#allocation11] sm:$0xff] %v2722
    %2727 = vst [vmem:[#allocation11 + $0x8] sm:$0xff] %v2723
    %2728 = vst [vmem:[#allocation11 + $0x10] sm:$0xff] %v2724
    %2729 = vst [vmem:[#allocation11 + $0x18] sm:$0xff] %v2725
    // Predicated region
    $region46: #{parallel_scaling_block_forward.1} parent=1 // pred_check
      _
    $region47: #{parallel_scaling_block_forward.1} parent=1 // pred_check_branch
      %2731 = sbr.rel (0) target = $region49
    $region48: #{parallel_scaling_block_forward.1} parent=1 // pred_region
      %s2733 = ssub.s32 512, 512
      %2734 = vsyncadd [#allocation5], %s2733
      %s2735 = sshll.u32 [#allocation11], 4
      %s2736 = int_to_ptr.vmem [resolvable:$true] %s2735
      %2741 = dma.vmem_to_hbm [thread:$0]  %s2736, 512, %s7, [#allocation5], 128, 128, 8
    $region49: #{parallel_scaling_block_forward.1} parent=1 // pred_fallthru
      _
    // Predicated region
    $region50: #{parallel_scaling_block_forward.1} parent=1 // pred_check
      _
    $region51: #{parallel_scaling_block_forward.1} parent=1 // pred_check_branch
      %2743 = sbr.rel (0) target = $region53
    $region52: #{parallel_scaling_block_forward.1} parent=1 // pred_region
      %2744 = dma.done [#allocation5], 512
    $region53: #{parallel_scaling_block_forward.1} parent=1 // pred_fallthru
      _
    %2745 = vsyncpa [#allocation4], 1
    %2746 = vsyncpa [#allocation7], 1
    %2747 = vsyncpa [#allocation10], 1
    %2748 = vsyncpa [#allocation5], 1

</llo_original>
